<compile_context>
chip_gen: v6e
topology: v6e:2x2x1
jax: 0.10.0
libtpu: 0.0.40
codegen_flags: <defaults>
</compile_context>

<pallas_src>
from functools import partial

import numpy as np
import jax
import jax.numpy as jnp
from jax.experimental import pallas as pl
from jax.experimental.pallas import tpu as pltpu


# ----------------------------------------------------------------------------
# Pallas kernel: LayerNorm + wide q/k/v + per-head attention + output proj
# ----------------------------------------------------------------------------
def _pca_kernel(x_ref, py_ref, wq_ref, wk_ref, wv_ref, ln_g_ref, ln_b_ref,
                wp_ref, bproj_ref, o_ref, *, num_heads, mxu_dtype=None):
    nh = num_heads
    bb, N, C = x_ref.shape
    L = py_ref.shape[1]
    hd = C // nh

    cast = (lambda a: a) if mxu_dtype is None else (lambda a: a.astype(mxu_dtype))

    # Whole batch block, loaded once (no per-b Python loop).
    x = x_ref[...].astype(jnp.float32)       # (bb, N, C)
    py = py_ref[...].astype(jnp.float32)     # (bb, L, C)  pre-norm pooled y

    wq = wq_ref[...]                          # (C, C) — attention scale folded
    wk = wk_ref[...]                          # (C, C)
    wv = wv_ref[...]                          # (C, C)
    wp = wp_ref[...]                          # (C, C)
    ln_g = ln_g_ref[...]                      # (1, C)
    ln_b = ln_b_ref[...]                      # (1, C)
    bproj = bproj_ref[...]                    # (1, C)

    # --- LayerNorm over channels, batched over all bb*L rows
    #     (eps=1e-5, biased variance, matching nn.LayerNorm).
    mu = jnp.mean(py, axis=-1, keepdims=True)
    var = jnp.mean((py - mu) * (py - mu), axis=-1, keepdims=True)
    py_n = (py - mu) * jax.lax.rsqrt(var + 1e-5) * ln_g + ln_b   # (bb, L, C)

    # --- Wide, lane-dense projections: one matmul per weight for the whole
    #     batch block (weights pushed to the MXU once per grid step).
    q = jnp.einsum('bnc,cd->bnd', cast(x), cast(wq),
                   preferred_element_type=jnp.float32)           # (bb, N, C)
    k = jnp.einsum('blc,cd->bld', cast(py_n), cast(wk),
                   preferred_element_type=jnp.float32)           # (bb, L, C)
    v = jnp.einsum('blc,cd->bld', cast(py_n), cast(wv),
                   preferred_element_type=jnp.float32)           # (bb, L, C)

    # --- Per-head attention, batched over the batch block.  Heads are split
    #     with static lane slices (head_dim-aligned at production C); only the
    #     score/context matmuls are per-head — no weights re-loaded here.
    ctx_heads = []
    for h in range(nh):
        lo, hi = h * hd, (h + 1) * hd
        qh = q[:, :, lo:hi]                                      # (bb, N, hd)
        kh = k[:, :, lo:hi]                                      # (bb, L, hd)
        vh = v[:, :, lo:hi]                                      # (bb, L, hd)

        logits = jnp.einsum('bnd,bld->bnl', cast(qh), cast(kh),
                            preferred_element_type=jnp.float32)  # (bb, N, L)
        logits = logits - jnp.max(logits, axis=-1, keepdims=True)
        p = jnp.exp(logits)
        denom = jnp.sum(p, axis=-1, keepdims=True)
        p = p * pl.reciprocal(denom, approx=True)                # EUP slot
        ctx_heads.append(
            jnp.einsum('bnl,bld->bnd', cast(p), cast(vh),
                       preferred_element_type=jnp.float32))      # (bb, N, hd)

    # Packed head-major context -> single wide output projection.
    ctx = jnp.concatenate(ctx_heads, axis=-1)                    # (bb, N, C)
    out = jnp.einsum('bnc,cd->bnd', cast(ctx), cast(wp),
                     preferred_element_type=jnp.float32) + bproj # (bb, N, C)

    # Single dense store of the whole block per grid step.
    o_ref[...] = out.astype(o_ref.dtype)


# ----------------------------------------------------------------------------
# Plain-JAX glue: adaptive average pooling (exact PyTorch semantics) + dw conv
# ----------------------------------------------------------------------------
def _adaptive_pool_matrix(in_size, out_size):
    P = np.zeros((out_size, in_size), dtype=np.float32)
    for i in range(out_size):
        start = (i * in_size) // out_size
        end = -(-((i + 1) * in_size) // out_size)  # ceil
        P[i, start:end] = 1.0 / (end - start)
    return jnp.asarray(P)


def _pyramid_pool(tokens, H, W, dw_weights, dw_biases, pool_ratios):
    """tokens: (B, N, C) -> (B, L, C) pooled pyramid features (pre-LayerNorm)."""
    B, N, C = tokens.shape
    feat = jnp.transpose(tokens, (0, 2, 1)).reshape(B, C, H, W)   # NCHW
    pools = []
    for i, pr in enumerate(pool_ratios):
        oh = int(round(H / pr))
        ow = int(round(W / pr))
        Ph = _adaptive_pool_matrix(H, oh)
        Pw = _adaptive_pool_matrix(W, ow)
        pooled = jnp.einsum('oh,pw,bchw->bcop', Ph, Pw, feat)     # (B, C, oh, ow)
        conv = jax.lax.conv_general_dilated(
            pooled, dw_weights[i], window_strides=(1, 1),
            padding=((1, 1), (1, 1)), feature_group_count=C,
            dimension_numbers=('NCHW', 'OIHW', 'NCHW'))
        conv = conv + dw_biases[i][None, :, None, None]
        pooled = pooled + conv
        pools.append(pooled.reshape(B, C, oh * ow))
    pools = jnp.concatenate(pools, axis=2)                        # (B, C, L)
    return jnp.transpose(pools, (0, 2, 1))                        # (B, L, C)


# ----------------------------------------------------------------------------
# Wrapper
# ----------------------------------------------------------------------------
def pooling_cross_attention(x, y, H, W, params, *, num_heads=2,
                            pool_ratios=(1, 2, 3, 6), batch_block=None,
                            mxu_dtype=None):
    B, N, C = x.shape
    head_dim = C // num_heads
    scale = head_dim ** (-0.5)

    # pyramid pooling of y (glue) -> pooled features fed to k/v inside kernel
    pools_y = _pyramid_pool(y, H, W, params['dw_w'], params['dw_b'], pool_ratios)
    L = pools_y.shape[1]

    # Head-fused weight layouts.  q / kv column layout in the PyTorch module is
    # already head-major, so the wide (C, C) weights are used directly; the
    # attention scale is folded into Wq, and Wkv is split into Wk / Wv here.
    wq = params['wq'] * scale                     # (C, C)
    wk = params['wkv'][:, :C]                     # (C, C)
    wv = params['wkv'][:, C:]                     # (C, C)
    wp = params['wproj']                          # (C, C)

    if batch_block is None:
        # v5e / v6e have a single TensorCore: one grid step avoids the
        # ~0.35 us/step pipeline overhead on this tiny, overhead-bound kernel.
        # On dual-TC v7x pass batch_block = max(1, B // 2) so the 'parallel'
        # grid axis gives each core work.
        batch_block = B
    batch_block = max(1, min(batch_block, B))
    while B % batch_block:
        batch_block -= 1
    grid_b = B // batch_block

    kernel = partial(_pca_kernel, num_heads=num_heads, mxu_dtype=mxu_dtype)

    out = pl.pallas_call(
        kernel,
        out_shape=jax.ShapeDtypeStruct((B, N, C), jnp.float32),
        grid=(grid_b,),
        in_specs=[
            pl.BlockSpec((batch_block, N, C), lambda b: (b, 0, 0)),   # x tokens
            pl.BlockSpec((batch_block, L, C), lambda b: (b, 0, 0)),   # pooled y
            pl.BlockSpec((C, C), lambda b: (0, 0)),                   # Wq (scaled)
            pl.BlockSpec((C, C), lambda b: (0, 0)),                   # Wk
            pl.BlockSpec((C, C), lambda b: (0, 0)),                   # Wv
            pl.BlockSpec((1, C), lambda b: (0, 0)),                   # LN gamma
            pl.BlockSpec((1, C), lambda b: (0, 0)),                   # LN beta
            pl.BlockSpec((C, C), lambda b: (0, 0)),                   # Wproj
            pl.BlockSpec((1, C), lambda b: (0, 0)),                   # bproj
        ],
        out_specs=pl.BlockSpec((batch_block, N, C), lambda b: (b, 0, 0)),
        compiler_params=pltpu.CompilerParams(dimension_semantics=("parallel",)),
    )(x, pools_y, wq, wk, wv, params['ln_g'], params['ln_b'], wp,
      params['bproj'])
    return out


# ----------------------------------------------------------------------------
# Pure-JAX reference (same math, no Pallas) for a correctness check
# ----------------------------------------------------------------------------
def reference(x, y, H, W, params, *, num_heads=2, pool_ratios=(1, 2, 3, 6)):
    B, N, C = x.shape
    hd = C // num_heads
    scale = hd ** (-0.5)

    pools_y = _pyramid_pool(y, H, W, params['dw_w'], params['dw_b'], pool_ratios)
    mu = jnp.mean(pools_y, axis=-1, keepdims=True)
    var = jnp.mean((pools_y - mu) ** 2, axis=-1, keepdims=True)
    py_n = (pools_y - mu) / jnp.sqrt(var + 1e-5) * params['ln_g'][0] + params['ln_b'][0]

    q = x @ params['wq']                                  # (B, N, C)
    kv = py_n @ params['wkv']                             # (B, L, 2C)
    k, v = kv[..., :C], kv[..., C:]

    L = k.shape[1]
    q = q.reshape(B, N, num_heads, hd).transpose(0, 2, 1, 3)
    k = k.reshape(B, L, num_heads, hd).transpose(0, 2, 1, 3)
    v = v.reshape(B, L, num_heads, hd).transpose(0, 2, 1, 3)

    attn = jnp.einsum('bhnd,bhld->bhnl', q, k) * scale
    attn = jax.nn.softmax(attn, axis=-1)
    ctx = jnp.einsum('bhnl,bhld->bhnd', attn, v)
    ctx = ctx.transpose(0, 2, 1, 3).reshape(B, N, C)
    return ctx @ params['wproj'] + params['bproj'][0]


# ----------------------------------------------------------------------------
# Main
# ----------------------------------------------------------------------------
if __name__ == "__main__":
    B, C, H, W = 2, 32, 6, 6
    N = H * W
    num_heads = 2
    pool_ratios = (1, 2, 3, 6)

    key = jax.random.PRNGKey(0)
    keys = jax.random.split(key, 16)

    x = jax.random.normal(keys[0], (B, N, C), dtype=jnp.float32)
    y = jax.random.normal(keys[1], (B, N, C), dtype=jnp.float32)

    # Deterministic synthetic parameters (module.__init__ shapes; eval mode,
    # dropout p=0 -> identity).
    params = {
        'wq':    0.05 * jax.random.normal(keys[2], (C, C), jnp.float32),
        'wkv':   0.05 * jax.random.normal(keys[3], (C, 2 * C), jnp.float32),
        'wproj': 0.05 * jax.random.normal(keys[4], (C, C), jnp.float32),
        'bproj': 0.05 * jax.random.normal(keys[5], (1, C), jnp.float32),
        'ln_g':  1.0 + 0.05 * jax.random.normal(keys[6], (1, C), jnp.float32),
        'ln_b':  0.05 * jax.random.normal(keys[7], (1, C), jnp.float32),
        # one depthwise 3x3 conv (groups=C, padding=1, bias=True) per pool level
        'dw_w': [0.05 * jax.random.normal(keys[8 + i], (C, 1, 3, 3), jnp.float32)
                 for i in range(len(pool_ratios))],
        'dw_b': [0.05 * jax.random.normal(keys[12 + i], (C,), jnp.float32)
                 for i in range(len(pool_ratios))],
    }

    out = pooling_cross_attention(x, y, H, W, params,
                                  num_heads=num_heads, pool_ratios=pool_ratios)
    out = jax.block_until_ready(out)

    ref = jax.block_until_ready(
        reference(x, y, H, W, params, num_heads=num_heads, pool_ratios=pool_ratios))
    assert out.shape == (B, N, C)
    np.testing.assert_allclose(np.asarray(out), np.asarray(ref), rtol=1e-3, atol=1e-3)

    print("KERNEL_OK")
</pallas_src>

<mosaic_0001>
module attributes {stable_mosaic.version = 11 : i64} {
  func.func @_pca_kernel(%arg0: i32, %arg1: memref<2x36x32xf32, #tpu.memory_space<vmem>>, %arg2: memref<2x50x32xf32, #tpu.memory_space<vmem>>, %arg3: memref<32x32xf32, #tpu.memory_space<vmem>>, %arg4: memref<32x32xf32, #tpu.memory_space<vmem>>, %arg5: memref<32x32xf32, #tpu.memory_space<vmem>>, %arg6: memref<1x32xf32, #tpu.memory_space<vmem>>, %arg7: memref<1x32xf32, #tpu.memory_space<vmem>>, %arg8: memref<32x32xf32, #tpu.memory_space<vmem>>, %arg9: memref<1x32xf32, #tpu.memory_space<vmem>>, %arg10: memref<2x36x32xf32, #tpu.memory_space<vmem>>) attributes {dimension_semantics = [#tpu.dimension_semantics<parallel>], iteration_bounds = array<i64: 1>, scalar_prefetch = 0 : i64, scratch_operands = 0 : i64, tpu.core_type = #tpu.core_type<tc>, window_params = [{transform_indices = @transform_0, window_bounds = array<i64: 2, 36, 32>}, {transform_indices = @transform_1, window_bounds = array<i64: 2, 50, 32>}, {pipeline_mode = #tpu.pipeline_mode<synchronous>, transform_indices = @transform_2, window_bounds = array<i64: 32, 32>}, {pipeline_mode = #tpu.pipeline_mode<synchronous>, transform_indices = @transform_3, window_bounds = array<i64: 32, 32>}, {pipeline_mode = #tpu.pipeline_mode<synchronous>, transform_indices = @transform_4, window_bounds = array<i64: 32, 32>}, {pipeline_mode = #tpu.pipeline_mode<synchronous>, transform_indices = @transform_5, window_bounds = array<i64: 1, 32>}, {pipeline_mode = #tpu.pipeline_mode<synchronous>, transform_indices = @transform_6, window_bounds = array<i64: 1, 32>}, {pipeline_mode = #tpu.pipeline_mode<synchronous>, transform_indices = @transform_7, window_bounds = array<i64: 32, 32>}, {pipeline_mode = #tpu.pipeline_mode<synchronous>, transform_indices = @transform_8, window_bounds = array<i64: 1, 32>}, {transform_indices = @transform_9, window_bounds = array<i64: 2, 36, 32>}]} {
    %c0 = arith.constant 0 : index
    %c0_0 = arith.constant 0 : index
    %c0_1 = arith.constant 0 : index
    %0 = vector.load %arg1[%c0, %c0_0, %c0_1] : memref<2x36x32xf32, #tpu.memory_space<vmem>>, vector<2x36x32xf32>
    %c0_2 = arith.constant 0 : index
    %c0_3 = arith.constant 0 : index
    %c0_4 = arith.constant 0 : index
    %1 = vector.load %arg2[%c0_2, %c0_3, %c0_4] : memref<2x50x32xf32, #tpu.memory_space<vmem>>, vector<2x50x32xf32>
    %c0_5 = arith.constant 0 : index
    %c0_6 = arith.constant 0 : index
    %2 = vector.load %arg3[%c0_5, %c0_6] : memref<32x32xf32, #tpu.memory_space<vmem>>, vector<32x32xf32>
    %c0_7 = arith.constant 0 : index
    %c0_8 = arith.constant 0 : index
    %3 = vector.load %arg4[%c0_7, %c0_8] : memref<32x32xf32, #tpu.memory_space<vmem>>, vector<32x32xf32>
    %c0_9 = arith.constant 0 : index
    %c0_10 = arith.constant 0 : index
    %4 = vector.load %arg5[%c0_9, %c0_10] : memref<32x32xf32, #tpu.memory_space<vmem>>, vector<32x32xf32>
    %c0_11 = arith.constant 0 : index
    %c0_12 = arith.constant 0 : index
    %5 = vector.load %arg8[%c0_11, %c0_12] : memref<32x32xf32, #tpu.memory_space<vmem>>, vector<32x32xf32>
    %c0_13 = arith.constant 0 : index
    %c0_14 = arith.constant 0 : index
    %6 = vector.load %arg6[%c0_13, %c0_14] : memref<1x32xf32, #tpu.memory_space<vmem>>, vector<1x32xf32>
    %c0_15 = arith.constant 0 : index
    %c0_16 = arith.constant 0 : index
    %7 = vector.load %arg7[%c0_15, %c0_16] : memref<1x32xf32, #tpu.memory_space<vmem>>, vector<1x32xf32>
    %c0_17 = arith.constant 0 : index
    %c0_18 = arith.constant 0 : index
    %8 = vector.load %arg9[%c0_17, %c0_18] : memref<1x32xf32, #tpu.memory_space<vmem>>, vector<1x32xf32>
    %cst = arith.constant dense<0.000000e+00> : vector<2x50xf32>
    %9 = vector.multi_reduction <add>, %1, %cst [2] : vector<2x50x32xf32> to vector<2x50xf32>
    %10 = vector.shape_cast %9 : vector<2x50xf32> to vector<2x50x1xf32>
    %cst_19 = arith.constant 3.200000e+01 : f32
    %11 = vector.broadcast %cst_19 : f32 to vector<2x50x1xf32>
    %12 = arith.divf %10, %11 : vector<2x50x1xf32>
    %13 = vector.broadcast %12 : vector<2x50x1xf32> to vector<2x50x32xf32>
    %14 = arith.subf %1, %13 : vector<2x50x32xf32>
    %15 = vector.broadcast %12 : vector<2x50x1xf32> to vector<2x50x32xf32>
    %16 = arith.subf %1, %15 : vector<2x50x32xf32>
    %17 = arith.mulf %14, %16 : vector<2x50x32xf32>
    %cst_20 = arith.constant dense<0.000000e+00> : vector<2x50xf32>
    %18 = vector.multi_reduction <add>, %17, %cst_20 [2] : vector<2x50x32xf32> to vector<2x50xf32>
    %19 = vector.shape_cast %18 : vector<2x50xf32> to vector<2x50x1xf32>
    %cst_21 = arith.constant 3.200000e+01 : f32
    %20 = vector.broadcast %cst_21 : f32 to vector<2x50x1xf32>
    %21 = arith.divf %19, %20 : vector<2x50x1xf32>
    %22 = vector.broadcast %12 : vector<2x50x1xf32> to vector<2x50x32xf32>
    %23 = arith.subf %1, %22 : vector<2x50x32xf32>
    %cst_22 = arith.constant 9.99999974E-6 : f32
    %24 = vector.broadcast %cst_22 : f32 to vector<2x50x1xf32>
    %25 = arith.addf %21, %24 : vector<2x50x1xf32>
    %26 = math.rsqrt %25 : vector<2x50x1xf32>
    %27 = vector.broadcast %26 : vector<2x50x1xf32> to vector<2x50x32xf32>
    %28 = arith.mulf %23, %27 : vector<2x50x32xf32>
    %29 = vector.shape_cast %6 : vector<1x32xf32> to vector<1x1x32xf32>
    %30 = vector.broadcast %29 : vector<1x1x32xf32> to vector<2x50x32xf32>
    %31 = arith.mulf %28, %30 : vector<2x50x32xf32>
    %32 = vector.shape_cast %7 : vector<1x32xf32> to vector<1x1x32xf32>
    %33 = vector.broadcast %32 : vector<1x1x32xf32> to vector<2x50x32xf32>
    %34 = arith.addf %31, %33 : vector<2x50x32xf32>
    "tpu.trace_start"() <{level = 10 : i32, message = "bnc,cd->bnd"}> : () -> ()
    %cst_23 = arith.constant dense<0.000000e+00> : vector<2x36x32xf32>
    %35 = tpu.matmul %0, %2, %cst_23 {dimension_numbers = #tpu.dot_dimension_numbers<[2], [0], [0, 1], [1], [0, 0, 0, 1, 1, 1], [], []>} : vector<2x36x32xf32>, vector<32x32xf32>, vector<2x36x32xf32> -> vector<2x36x32xf32>
    "tpu.trace_stop"() : () -> ()
    "tpu.trace_start"() <{level = 10 : i32, message = "blc,cd->bld"}> : () -> ()
    %cst_24 = arith.constant dense<0.000000e+00> : vector<2x50x32xf32>
    %36 = tpu.matmul %34, %3, %cst_24 {dimension_numbers = #tpu.dot_dimension_numbers<[2], [0], [0, 1], [1], [0, 0, 0, 1, 1, 1], [], []>} : vector<2x50x32xf32>, vector<32x32xf32>, vector<2x50x32xf32> -> vector<2x50x32xf32>
    %cst_25 = arith.constant dense<0.000000e+00> : vector<2x50x32xf32>
    %37 = tpu.matmul %34, %4, %cst_25 {dimension_numbers = #tpu.dot_dimension_numbers<[2], [0], [0, 1], [1], [0, 0, 0, 1, 1, 1], [], []>} : vector<2x50x32xf32>, vector<32x32xf32>, vector<2x50x32xf32> -> vector<2x50x32xf32>
    "tpu.trace_stop"() : () -> ()
    %38 = vector.extract_strided_slice %35 {offsets = [0, 0, 0], sizes = [2, 36, 16], strides = [1, 1, 1]} : vector<2x36x32xf32> to vector<2x36x16xf32>
    %39 = vector.extract_strided_slice %36 {offsets = [0, 0, 0], sizes = [2, 50, 16], strides = [1, 1, 1]} : vector<2x50x32xf32> to vector<2x50x16xf32>
    %40 = vector.extract_strided_slice %37 {offsets = [0, 0, 0], sizes = [2, 50, 16], strides = [1, 1, 1]} : vector<2x50x32xf32> to vector<2x50x16xf32>
    "tpu.trace_start"() <{level = 10 : i32, message = "bnd,bld->bnl"}> : () -> ()
    %cst_26 = arith.constant dense<0.000000e+00> : vector<2x36x50xf32>
    %41 = tpu.matmul %38, %39, %cst_26 {dimension_numbers = #tpu.dot_dimension_numbers<[2], [2], [1], [1], [0, 0, 0, 1, 1, 1], [0], [0]>} : vector<2x36x16xf32>, vector<2x50x16xf32>, vector<2x36x50xf32> -> vector<2x36x50xf32>
    "tpu.trace_stop"() : () -> ()
    %cst_27 = arith.constant dense<0xFF800000> : vector<2x36xf32>
    %42 = vector.multi_reduction <maximumf>, %41, %cst_27 [2] : vector<2x36x50xf32> to vector<2x36xf32>
    %43 = vector.shape_cast %42 : vector<2x36xf32> to vector<2x36x1xf32>
    %44 = vector.broadcast %43 : vector<2x36x1xf32> to vector<2x36x50xf32>
    %45 = arith.subf %41, %44 : vector<2x36x50xf32>
    %46 = math.exp %45 : vector<2x36x50xf32>
    %cst_28 = arith.constant dense<0.000000e+00> : vector<2x36xf32>
    %47 = vector.multi_reduction <add>, %46, %cst_28 [2] : vector<2x36x50xf32> to vector<2x36xf32>
    %48 = vector.shape_cast %47 : vector<2x36xf32> to vector<2x36x1xf32>
    %49 = tpu.reciprocal %48 {approx = true} : vector<2x36x1xf32> -> vector<2x36x1xf32>
    %50 = vector.broadcast %49 : vector<2x36x1xf32> to vector<2x36x50xf32>
    %51 = arith.mulf %46, %50 : vector<2x36x50xf32>
    "tpu.trace_start"() <{level = 10 : i32, message = "bnl,bld->bnd"}> : () -> ()
    %cst_29 = arith.constant dense<0.000000e+00> : vector<2x36x16xf32>
    %52 = tpu.matmul %51, %40, %cst_29 {dimension_numbers = #tpu.dot_dimension_numbers<[2], [1], [1], [2], [0, 0, 0, 1, 1, 2], [0], [0]>} : vector<2x36x50xf32>, vector<2x50x16xf32>, vector<2x36x16xf32> -> vector<2x36x16xf32>
    "tpu.trace_stop"() : () -> ()
    %53 = vector.extract_strided_slice %35 {offsets = [0, 0, 16], sizes = [2, 36, 16], strides = [1, 1, 1]} : vector<2x36x32xf32> to vector<2x36x16xf32>
    %54 = vector.extract_strided_slice %36 {offsets = [0, 0, 16], sizes = [2, 50, 16], strides = [1, 1, 1]} : vector<2x50x32xf32> to vector<2x50x16xf32>
    %55 = vector.extract_strided_slice %37 {offsets = [0, 0, 16], sizes = [2, 50, 16], strides = [1, 1, 1]} : vector<2x50x32xf32> to vector<2x50x16xf32>
    "tpu.trace_start"() <{level = 10 : i32, message = "bnd,bld->bnl"}> : () -> ()
    %cst_30 = arith.constant dense<0.000000e+00> : vector<2x36x50xf32>
    %56 = tpu.matmul %53, %54, %cst_30 {dimension_numbers = #tpu.dot_dimension_numbers<[2], [2], [1], [1], [0, 0, 0, 1, 1, 1], [0], [0]>} : vector<2x36x16xf32>, vector<2x50x16xf32>, vector<2x36x50xf32> -> vector<2x36x50xf32>
    "tpu.trace_stop"() : () -> ()
    %cst_31 = arith.constant dense<0xFF800000> : vector<2x36xf32>
    %57 = vector.multi_reduction <maximumf>, %56, %cst_31 [2] : vector<2x36x50xf32> to vector<2x36xf32>
    %58 = vector.shape_cast %57 : vector<2x36xf32> to vector<2x36x1xf32>
    %59 = vector.broadcast %58 : vector<2x36x1xf32> to vector<2x36x50xf32>
    %60 = arith.subf %56, %59 : vector<2x36x50xf32>
    %61 = math.exp %60 : vector<2x36x50xf32>
    %cst_32 = arith.constant dense<0.000000e+00> : vector<2x36xf32>
    %62 = vector.multi_reduction <add>, %61, %cst_32 [2] : vector<2x36x50xf32> to vector<2x36xf32>
    %63 = vector.shape_cast %62 : vector<2x36xf32> to vector<2x36x1xf32>
    %64 = tpu.reciprocal %63 {approx = true} : vector<2x36x1xf32> -> vector<2x36x1xf32>
    %65 = vector.broadcast %64 : vector<2x36x1xf32> to vector<2x36x50xf32>
    %66 = arith.mulf %61, %65 : vector<2x36x50xf32>
    "tpu.trace_start"() <{level = 10 : i32, message = "bnl,bld->bnd"}> : () -> ()
    %cst_33 = arith.constant dense<0.000000e+00> : vector<2x36x16xf32>
    %67 = tpu.matmul %66, %55, %cst_33 {dimension_numbers = #tpu.dot_dimension_numbers<[2], [1], [1], [2], [0, 0, 0, 1, 1, 2], [0], [0]>} : vector<2x36x50xf32>, vector<2x50x16xf32>, vector<2x36x16xf32> -> vector<2x36x16xf32>
    "tpu.trace_stop"() : () -> ()
    %68 = tpu.concatenate %52, %67 in 2 : vector<2x36x16xf32>, vector<2x36x16xf32> -> vector<2x36x32xf32>
    "tpu.trace_start"() <{level = 10 : i32, message = "bnc,cd->bnd"}> : () -> ()
    %cst_34 = arith.constant dense<0.000000e+00> : vector<2x36x32xf32>
    %69 = tpu.matmul %68, %5, %cst_34 {dimension_numbers = #tpu.dot_dimension_numbers<[2], [0], [0, 1], [1], [0, 0, 0, 1, 1, 1], [], []>} : vector<2x36x32xf32>, vector<32x32xf32>, vector<2x36x32xf32> -> vector<2x36x32xf32>
    "tpu.trace_stop"() : () -> ()
    %70 = vector.shape_cast %8 : vector<1x32xf32> to vector<1x1x32xf32>
    %71 = vector.broadcast %70 : vector<1x1x32xf32> to vector<2x36x32xf32>
    %72 = arith.addf %69, %71 : vector<2x36x32xf32>
    %c0_35 = arith.constant 0 : index
    %c0_36 = arith.constant 0 : index
    %c0_37 = arith.constant 0 : index
    %73 = vector.load %arg10[%c0_35, %c0_36, %c0_37] : memref<2x36x32xf32, #tpu.memory_space<vmem>>, vector<2x36x32xf32>
    tpu.vector_store %arg10[%c0_35, %c0_36, %c0_37], %72 {strides = array<i32>} : memref<2x36x32xf32, #tpu.memory_space<vmem>>, vector<2x36x32xf32>,
    return
  }
  func.func @transform_0(%arg0: i32) -> (i32, i32, i32) {
    %c0_i32 = arith.constant 0 : i32
    %c0_i32_0 = arith.constant 0 : i32
    %c0_i32_1 = arith.constant 0 : i32
    return %arg0, %c0_i32, %c0_i32_0 : i32, i32, i32
  }
  func.func @transform_1(%arg0: i32) -> (i32, i32, i32) {
    %c0_i32 = arith.constant 0 : i32
    %c0_i32_0 = arith.constant 0 : i32
    %c0_i32_1 = arith.constant 0 : i32
    return %arg0, %c0_i32, %c0_i32_0 : i32, i32, i32
  }
  func.func @transform_2(%arg0: i32) -> (i32, i32) {
    %c0_i32 = arith.constant 0 : i32
    %c0_i32_0 = arith.constant 0 : i32
    %c0_i32_1 = arith.constant 0 : i32
    return %c0_i32, %c0_i32_0 : i32, i32
  }
  func.func @transform_3(%arg0: i32) -> (i32, i32) {
    %c0_i32 = arith.constant 0 : i32
    %c0_i32_0 = arith.constant 0 : i32
    %c0_i32_1 = arith.constant 0 : i32
    return %c0_i32, %c0_i32_0 : i32, i32
  }
  func.func @transform_4(%arg0: i32) -> (i32, i32) {
    %c0_i32 = arith.constant 0 : i32
    %c0_i32_0 = arith.constant 0 : i32
    %c0_i32_1 = arith.constant 0 : i32
    return %c0_i32, %c0_i32_0 : i32, i32
  }
  func.func @transform_5(%arg0: i32) -> (i32, i32) {
    %c0_i32 = arith.constant 0 : i32
    %c0_i32_0 = arith.constant 0 : i32
    %c0_i32_1 = arith.constant 0 : i32
    return %c0_i32, %c0_i32_0 : i32, i32
  }
  func.func @transform_6(%arg0: i32) -> (i32, i32) {
    %c0_i32 = arith.constant 0 : i32
    %c0_i32_0 = arith.constant 0 : i32
    %c0_i32_1 = arith.constant 0 : i32
    return %c0_i32, %c0_i32_0 : i32, i32
  }
  func.func @transform_7(%arg0: i32) -> (i32, i32) {
    %c0_i32 = arith.constant 0 : i32
    %c0_i32_0 = arith.constant 0 : i32
    %c0_i32_1 = arith.constant 0 : i32
    return %c0_i32, %c0_i32_0 : i32, i32
  }
  func.func @transform_8(%arg0: i32) -> (i32, i32) {
    %c0_i32 = arith.constant 0 : i32
    %c0_i32_0 = arith.constant 0 : i32
    %c0_i32_1 = arith.constant 0 : i32
    return %c0_i32, %c0_i32_0 : i32, i32
  }
  func.func @transform_9(%arg0: i32) -> (i32, i32, i32) {
    %c0_i32 = arith.constant 0 : i32
    %c0_i32_0 = arith.constant 0 : i32
    %c0_i32_1 = arith.constant 0 : i32
    return %arg0, %c0_i32, %c0_i32_0 : i32, i32, i32
  }
}

</mosaic_0001>

<llo_original>
// kernel: tpu_custom_call.1
$region0: #{tpu_custom_call.1}
  #allocation0 [shape = 'u32[]', space=smem, size = 0x4, offset = 0x4, fixed_abs, tag = 'smem constant byte address 0x4 - core index']
  #allocation1 [shape = 'u32[144,128]{1,0:T(1,128)}', space=vmem, size = 0x12000, scoped, tag = 'internal scratch']
  %s0 = inlined_call_operand.vmem [shape: f32[2,36,32], index: 0, kind: input, shape index: {}]
  %s1 = inlined_call_operand.vmem [shape: f32[2,50,32], index: 1, kind: input, shape index: {}]
  %s2 = inlined_call_operand.vmem [shape: f32[32,32], index: 2, kind: input, shape index: {}]
  %s3 = inlined_call_operand.vmem [shape: f32[32,32], index: 3, kind: input, shape index: {}]
  %s4 = inlined_call_operand.vmem [shape: f32[32,32], index: 4, kind: input, shape index: {}]
  %s5 = inlined_call_operand.vmem [shape: f32[1,32], index: 5, kind: input, shape index: {}]
  %s6 = inlined_call_operand.vmem [shape: f32[1,32], index: 6, kind: input, shape index: {}]
  %s7 = inlined_call_operand.vmem [shape: f32[32,32], index: 7, kind: input, shape index: {}]
  %s8 = inlined_call_operand.vmem [shape: f32[1,32], index: 8, kind: input, shape index: {}]
  %s9 = inlined_call_operand.vmem [shape: f32[2,36,32], index: 9, kind: output, shape index: {}]
  %s10 = sld [smem:[#allocation0]]
  $region46: #{tpu_custom_call.1} parent=0
    _
  %s12 = ssub.s32 1, %s10
  %s13 = scalar_select 0, %s12, %s10
  // Predicated region
  $region2: #{tpu_custom_call.1} parent=0 // pred_check
    _
  $region3: #{tpu_custom_call.1} parent=0 // pred_check_branch
    %15 = sbr.rel (0) target = $region5
  $region4: #{tpu_custom_call.1} parent=0 // pred_region
    _
  $region5: #{tpu_custom_call.1} parent=0 // pred_fallthru
    _
  // Predicated region
  $region6: #{tpu_custom_call.1} parent=0 // pred_check
    _
  $region7: #{tpu_custom_call.1} parent=0 // pred_check_branch
    %17 = sbr.rel (0) target = $region9
  $region8: #{tpu_custom_call.1} parent=0 // pred_region
    _
  $region9: #{tpu_custom_call.1} parent=0 // pred_fallthru
    _
  // Predicated region
  $region10: #{tpu_custom_call.1} parent=0 // pred_check
    _
  $region11: #{tpu_custom_call.1} parent=0 // pred_check_branch
    %19 = sbr.rel (0) target = $region13
  $region12: #{tpu_custom_call.1} parent=0 // pred_region
    _
  $region13: #{tpu_custom_call.1} parent=0 // pred_fallthru
    _
  // Predicated region
  $region14: #{tpu_custom_call.1} parent=0 // pred_check
    _
  $region15: #{tpu_custom_call.1} parent=0 // pred_check_branch
    %21 = sbr.rel (0) target = $region17
  $region16: #{tpu_custom_call.1} parent=0 // pred_region
    _
  $region17: #{tpu_custom_call.1} parent=0 // pred_fallthru
    _
  // Predicated region
  $region18: #{tpu_custom_call.1} parent=0 // pred_check
    _
  $region19: #{tpu_custom_call.1} parent=0 // pred_check_branch
    %23 = sbr.rel (0) target = $region21
  $region20: #{tpu_custom_call.1} parent=0 // pred_region
    _
  $region21: #{tpu_custom_call.1} parent=0 // pred_fallthru
    _
  // Predicated region
  $region22: #{tpu_custom_call.1} parent=0 // pred_check
    _
  $region23: #{tpu_custom_call.1} parent=0 // pred_check_branch
    %25 = sbr.rel (0) target = $region25
  $region24: #{tpu_custom_call.1} parent=0 // pred_region
    _
  $region25: #{tpu_custom_call.1} parent=0 // pred_fallthru
    _
  // Predicated region
  $region26: #{tpu_custom_call.1} parent=0 // pred_check
    _
  $region27: #{tpu_custom_call.1} parent=0 // pred_check_branch
    %27 = sbr.rel (0) target = $region29
  $region28: #{tpu_custom_call.1} parent=0 // pred_region
    _
  $region29: #{tpu_custom_call.1} parent=0 // pred_fallthru
    _
  // Predicated region
  $region30: #{tpu_custom_call.1} parent=0 // pred_check
    _
  $region31: #{tpu_custom_call.1} parent=0 // pred_check_branch
    %29 = sbr.rel (0) target = $region33
  $region32: #{tpu_custom_call.1} parent=0 // pred_region
    _
  $region33: #{tpu_custom_call.1} parent=0 // pred_fallthru
    _
  // Predicated region
  $region34: #{tpu_custom_call.1} parent=0 // pred_check
    _
  $region35: #{tpu_custom_call.1} parent=0 // pred_check_branch
    %31 = sbr.rel (0) target = $region37
  $region36: #{tpu_custom_call.1} parent=0 // pred_region
    _
  $region37: #{tpu_custom_call.1} parent=0 // pred_fallthru
    _
  %v32 = vld [vmem:[%s0] sm:$0xff]
  %v33 = vld [vmem:[%s0 + $0x8] sm:$0xff]
  %v34 = vld [vmem:[%s0 + $0x10] sm:$0xff]
  %v35 = vld [vmem:[%s0 + $0x18] sm:$0xff]
  %v36 = vld [vmem:[%s0 + $0x20] sm:$0xf]
  %v37 = vld [vmem:[%s0 + $0x28] sm:$0xff]
  %v38 = vld [vmem:[%s0 + $0x30] sm:$0xff]
  %v39 = vld [vmem:[%s0 + $0x38] sm:$0xff]
  %v40 = vld [vmem:[%s0 + $0x40] sm:$0xff]
  %v41 = vld [vmem:[%s0 + $0x48] sm:$0xf]
  %v42 = vld [vmem:[%s1] sm:$0xff]
  %v43 = vld [vmem:[%s1 + $0x8] sm:$0xff]
  %v44 = vld [vmem:[%s1 + $0x10] sm:$0xff]
  %v45 = vld [vmem:[%s1 + $0x18] sm:$0xff]
  %v46 = vld [vmem:[%s1 + $0x20] sm:$0xff]
  %v47 = vld [vmem:[%s1 + $0x28] sm:$0xff]
  %v48 = vld [vmem:[%s1 + $0x30] sm:$0x3]
  %v49 = vld [vmem:[%s1 + $0x38] sm:$0xff]
  %v50 = vld [vmem:[%s1 + $0x40] sm:$0xff]
  %v51 = vld [vmem:[%s1 + $0x48] sm:$0xff]
  %v52 = vld [vmem:[%s1 + $0x50] sm:$0xff]
  %v53 = vld [vmem:[%s1 + $0x58] sm:$0xff]
  %v54 = vld [vmem:[%s1 + $0x60] sm:$0xff]
  %v55 = vld [vmem:[%s1 + $0x68] sm:$0x3]
  %v56 = vld [vmem:[%s2] sm:$0xff]
  %v57 = vld [vmem:[%s2 + $0x8] sm:$0xff]
  %v58 = vld [vmem:[%s2 + $0x10] sm:$0xff]
  %v59 = vld [vmem:[%s2 + $0x18] sm:$0xff]
  %v60 = vld [vmem:[%s3] sm:$0xff]
  %v61 = vld [vmem:[%s3 + $0x8] sm:$0xff]
  %v62 = vld [vmem:[%s3 + $0x10] sm:$0xff]
  %v63 = vld [vmem:[%s3 + $0x18] sm:$0xff]
  %v64 = vld [vmem:[%s4] sm:$0xff]
  %v65 = vld [vmem:[%s4 + $0x8] sm:$0xff]
  %v66 = vld [vmem:[%s4 + $0x10] sm:$0xff]
  %v67 = vld [vmem:[%s4 + $0x18] sm:$0xff]
  %v68 = vld [vmem:[%s7] sm:$0xff]
  %v69 = vld [vmem:[%s7 + $0x8] sm:$0xff]
  %v70 = vld [vmem:[%s7 + $0x10] sm:$0xff]
  %v71 = vld [vmem:[%s7 + $0x18] sm:$0xff]
  %v72 = vld [vmem:[%s5] sm:$0x1]
  %v73 = vld [vmem:[%s6] sm:$0x1]
  %v74 = vld [vmem:[%s8] sm:$0x1]
  %vm75 = vcmask 261120
  %v76 = vsel %vm75, %v42, 0.0
  %77 = vadd.xlane.f32.xlu0 %v76
  %v78 = vpop.xlane.xlu0 %77
  %v79 = vsel %vm75, %v43, 0.0
  %80 = vadd.xlane.f32.xlu0 %v79
  %v81 = vpop.xlane.xlu0 %80
  %v82 = vsel %vm75, %v44, 0.0
  %83 = vadd.xlane.f32.xlu0 %v82
  %v84 = vpop.xlane.xlu0 %83
  %v85 = vsel %vm75, %v45, 0.0
  %86 = vadd.xlane.f32.xlu0 %v85
  %v87 = vpop.xlane.xlu0 %86
  %v88 = vsel %vm75, %v46, 0.0
  %89 = vadd.xlane.f32.xlu0 %v88
  %v90 = vpop.xlane.xlu0 %89
  %v91 = vsel %vm75, %v47, 0.0
  %92 = vadd.xlane.f32.xlu0 %v91
  %v93 = vpop.xlane.xlu0 %92
  %vm94 = vcmask 254976
  %v95 = vsel %vm94, %v48, 0.0
  %96 = vadd.xlane.f32.xlu0 %v95
  %v97 = vpop.xlane.xlu0 %96
  %v98 = vsel %vm75, %v49, 0.0
  %99 = vadd.xlane.f32.xlu0 %v98
  %v100 = vpop.xlane.xlu0 %99
  %v101 = vsel %vm75, %v50, 0.0
  %102 = vadd.xlane.f32.xlu0 %v101
  %v103 = vpop.xlane.xlu0 %102
  %v104 = vsel %vm75, %v51, 0.0
  %105 = vadd.xlane.f32.xlu0 %v104
  %v106 = vpop.xlane.xlu0 %105
  %v107 = vsel %vm75, %v52, 0.0
  %108 = vadd.xlane.f32.xlu0 %v107
  %v109 = vpop.xlane.xlu0 %108
  %v110 = vsel %vm75, %v53, 0.0
  %111 = vadd.xlane.f32.xlu0 %v110
  %v112 = vpop.xlane.xlu0 %111
  %v113 = vsel %vm75, %v54, 0.0
  %114 = vadd.xlane.f32.xlu0 %v113
  %v115 = vpop.xlane.xlu0 %114
  %v116 = vsel %vm94, %v55, 0.0
  %117 = vadd.xlane.f32.xlu0 %v116
  %v118 = vpop.xlane.xlu0 %117
  %v119 = vrcp.pop 32.0
  %v120 = vmul.f32 %v78, %v119
  %v121 = vmul.f32 %v81, %v119
  %v122 = vmul.f32 %v84, %v119
  %v123 = vmul.f32 %v87, %v119
  %v124 = vmul.f32 %v90, %v119
  %v125 = vmul.f32 %v93, %v119
  %v126 = vmul.f32 %v97, %v119
  %v127 = vmul.f32 %v100, %v119
  %v128 = vmul.f32 %v103, %v119
  %v129 = vmul.f32 %v106, %v119
  %v130 = vmul.f32 %v109, %v119
  %v131 = vmul.f32 %v112, %v119
  %v132 = vmul.f32 %v115, %v119
  %v133 = vmul.f32 %v118, %v119
  %v134 = vsub.f32 %v42, %v120
  %v135 = vsub.f32 %v43, %v121
  %v136 = vsub.f32 %v44, %v122
  %v137 = vsub.f32 %v45, %v123
  %v138 = vsub.f32 %v46, %v124
  %v139 = vsub.f32 %v47, %v125
  %v140 = vsub.f32 %v48, %v126
  %v141 = vsub.f32 %v49, %v127
  %v142 = vsub.f32 %v50, %v128
  %v143 = vsub.f32 %v51, %v129
  %v144 = vsub.f32 %v52, %v130
  %v145 = vsub.f32 %v53, %v131
  %v146 = vsub.f32 %v54, %v132
  %v147 = vsub.f32 %v55, %v133
  %v148 = vmul.f32 %v134, %v134
  %v149 = vmul.f32 %v135, %v135
  %v150 = vmul.f32 %v136, %v136
  %v151 = vmul.f32 %v137, %v137
  %v152 = vmul.f32 %v138, %v138
  %v153 = vmul.f32 %v139, %v139
  %v154 = vmul.f32 %v140, %v140
  %v155 = vmul.f32 %v141, %v141
  %v156 = vmul.f32 %v142, %v142
  %v157 = vmul.f32 %v143, %v143
  %v158 = vmul.f32 %v144, %v144
  %v159 = vmul.f32 %v145, %v145
  %v160 = vmul.f32 %v146, %v146
  %v161 = vmul.f32 %v147, %v147
  %v162 = vsel %vm75, %v148, 0.0
  %163 = vadd.xlane.f32.xlu0 %v162
  %v164 = vpop.xlane.xlu0 %163
  %v165 = vsel %vm75, %v149, 0.0
  %166 = vadd.xlane.f32.xlu0 %v165
  %v167 = vpop.xlane.xlu0 %166
  %v168 = vsel %vm75, %v150, 0.0
  %169 = vadd.xlane.f32.xlu0 %v168
  %v170 = vpop.xlane.xlu0 %169
  %v171 = vsel %vm75, %v151, 0.0
  %172 = vadd.xlane.f32.xlu0 %v171
  %v173 = vpop.xlane.xlu0 %172
  %v174 = vsel %vm75, %v152, 0.0
  %175 = vadd.xlane.f32.xlu0 %v174
  %v176 = vpop.xlane.xlu0 %175
  %v177 = vsel %vm75, %v153, 0.0
  %178 = vadd.xlane.f32.xlu0 %v177
  %v179 = vpop.xlane.xlu0 %178
  %v180 = vsel %vm94, %v154, 0.0
  %181 = vadd.xlane.f32.xlu0 %v180
  %v182 = vpop.xlane.xlu0 %181
  %v183 = vsel %vm75, %v155, 0.0
  %184 = vadd.xlane.f32.xlu0 %v183
  %v185 = vpop.xlane.xlu0 %184
  %v186 = vsel %vm75, %v156, 0.0
  %187 = vadd.xlane.f32.xlu0 %v186
  %v188 = vpop.xlane.xlu0 %187
  %v189 = vsel %vm75, %v157, 0.0
  %190 = vadd.xlane.f32.xlu0 %v189
  %v191 = vpop.xlane.xlu0 %190
  %v192 = vsel %vm75, %v158, 0.0
  %193 = vadd.xlane.f32.xlu0 %v192
  %v194 = vpop.xlane.xlu0 %193
  %v195 = vsel %vm75, %v159, 0.0
  %196 = vadd.xlane.f32.xlu0 %v195
  %v197 = vpop.xlane.xlu0 %196
  %v198 = vsel %vm75, %v160, 0.0
  %199 = vadd.xlane.f32.xlu0 %v198
  %v200 = vpop.xlane.xlu0 %199
  %v201 = vsel %vm94, %v161, 0.0
  %202 = vadd.xlane.f32.xlu0 %v201
  %v203 = vpop.xlane.xlu0 %202
  %v204 = vmul.f32 %v164, %v119
  %v205 = vmul.f32 %v167, %v119
  %v206 = vmul.f32 %v170, %v119
  %v207 = vmul.f32 %v173, %v119
  %v208 = vmul.f32 %v176, %v119
  %v209 = vmul.f32 %v179, %v119
  %v210 = vmul.f32 %v182, %v119
  %v211 = vmul.f32 %v185, %v119
  %v212 = vmul.f32 %v188, %v119
  %v213 = vmul.f32 %v191, %v119
  %v214 = vmul.f32 %v194, %v119
  %v215 = vmul.f32 %v197, %v119
  %v216 = vmul.f32 %v200, %v119
  %v217 = vmul.f32 %v203, %v119
  %v218 = vadd.f32 %v204, 1e-05
  %v219 = vadd.f32 %v205, 1e-05
  %v220 = vadd.f32 %v206, 1e-05
  %v221 = vadd.f32 %v207, 1e-05
  %v222 = vadd.f32 %v208, 1e-05
  %v223 = vadd.f32 %v209, 1e-05
  %v224 = vadd.f32 %v210, 1e-05
  %v225 = vadd.f32 %v211, 1e-05
  %v226 = vadd.f32 %v212, 1e-05
  %v227 = vadd.f32 %v213, 1e-05
  %v228 = vadd.f32 %v214, 1e-05
  %v229 = vadd.f32 %v215, 1e-05
  %v230 = vadd.f32 %v216, 1e-05
  %v231 = vadd.f32 %v217, 1e-05
  %v232 = vrsqrt.pop %v218
  %v233 = vrsqrt.pop %v219
  %v234 = vrsqrt.pop %v220
  %v235 = vrsqrt.pop %v221
  %v236 = vrsqrt.pop %v222
  %v237 = vrsqrt.pop %v223
  %v238 = vrsqrt.pop %v224
  %v239 = vrsqrt.pop %v225
  %v240 = vrsqrt.pop %v226
  %v241 = vrsqrt.pop %v227
  %v242 = vrsqrt.pop %v228
  %v243 = vrsqrt.pop %v229
  %v244 = vrsqrt.pop %v230
  %v245 = vrsqrt.pop %v231
  %v246 = vmul.f32 %v134, %v232
  %v247 = vmul.f32 %v135, %v233
  %v248 = vmul.f32 %v136, %v234
  %v249 = vmul.f32 %v137, %v235
  %v250 = vmul.f32 %v138, %v236
  %v251 = vmul.f32 %v139, %v237
  %v252 = vmul.f32 %v140, %v238
  %v253 = vmul.f32 %v141, %v239
  %v254 = vmul.f32 %v142, %v240
  %v255 = vmul.f32 %v143, %v241
  %v256 = vmul.f32 %v144, %v242
  %v257 = vmul.f32 %v145, %v243
  %v258 = vmul.f32 %v146, %v244
  %v259 = vmul.f32 %v147, %v245
  %v261 = vlaneseq
  %v262 = vshrl.u32 %v261, 7
  %v263 = vsub.s32 0, %v262
  %v264 = vrot.slane %v72, %v263
  %v266 = vmul.f32 %v246, %v264
  %v267 = vmul.f32 %v247, %v264
  %v268 = vmul.f32 %v248, %v264
  %v269 = vmul.f32 %v249, %v264
  %v270 = vmul.f32 %v250, %v264
  %v271 = vmul.f32 %v251, %v264
  %v272 = vmul.f32 %v252, %v264
  %v273 = vmul.f32 %v253, %v264
  %v274 = vmul.f32 %v254, %v264
  %v275 = vmul.f32 %v255, %v264
  %v276 = vmul.f32 %v256, %v264
  %v277 = vmul.f32 %v257, %v264
  %v278 = vmul.f32 %v258, %v264
  %v279 = vmul.f32 %v259, %v264
  %v281 = vlaneseq
  %v282 = vshrl.u32 %v281, 7
  %v283 = vsub.s32 0, %v282
  %v284 = vrot.slane %v73, %v283
  %v286 = vadd.f32 %v266, %v284
  %v287 = vadd.f32 %v267, %v284
  %v288 = vadd.f32 %v268, %v284
  %v289 = vadd.f32 %v269, %v284
  %v290 = vadd.f32 %v270, %v284
  %v291 = vadd.f32 %v271, %v284
  %v292 = vadd.f32 %v272, %v284
  %v293 = vadd.f32 %v273, %v284
  %v294 = vadd.f32 %v274, %v284
  %v295 = vadd.f32 %v275, %v284
  %v296 = vadd.f32 %v276, %v284
  %v297 = vadd.f32 %v277, %v284
  %v298 = vadd.f32 %v278, %v284
  %v299 = vadd.f32 %v279, %v284
  %v310 = vcombine.high %v32, %v32
  %v311 = vcombine.high %v33, %v33
  %v312 = vcombine.high %v34, %v34
  %v313 = vcombine.high %v35, %v35
  %v314 = vcombine.high %v37, %v37
  %v315 = vcombine.high %v38, %v38
  %v316 = vcombine.high %v39, %v39
  %v317 = vcombine.high %v40, %v40
  %v318 = vcombine.low %v32, %v310
  %v319 = vcombine.low %v33, %v311
  %v320 = vcombine.low %v34, %v312
  %v321 = vcombine.low %v35, %v313
  %v322 = vcombine.low %v36, %v37
  %v323 = vcombine.low %v314, %v38
  %v324 = vcombine.low %v315, %v39
  %v325 = vcombine.low %v316, %v40
  %v326 = vcombine.low %v317, %v41
  %v327 = vsel %vm75, %v318, 0
  %v329 = vsel %vm75, %v319, 0
  %v331 = vsel %vm75, %v320, 0
  %v333 = vsel %vm75, %v321, 0
  %v335 = vsel %vm75, %v322, 0
  %v337 = vsel %vm75, %v323, 0
  %v339 = vsel %vm75, %v324, 0
  %v341 = vsel %vm75, %v325, 0
  %v343 = vsel %vm75, %v326, 0
  %345 = vmatprep.subr.mxu0 0.0
  %346 = vmatpush1.msra.mxu0 0.0
  %347 = vmatprep.subr.mxu0 0.0
  %348 = vmatpush1.msra.mxu0 0.0
  %349 = vmatprep.subr.mxu0 0.0
  %350 = vmatpush1.msra.mxu0 0.0
  %351 = vmatprep.subr.mxu0 0.0
  %352 = vmatpush1.msra.mxu0 0.0
  %353 = vmatprep.subr.mxu0 0.0
  %354 = vmatpush1.msra.mxu0 0.0
  %355 = vmatprep.subr.mxu0 0.0
  %356 = vmatpush1.msra.mxu0 0.0
  %357 = vmatprep.subr.mxu0 0.0
  %358 = vmatpush1.msra.mxu0 0.0
  %359 = vmatprep.subr.mxu0 0.0
  %360 = vmatpush1.msra.mxu0 0.0
  %361 = vmatprep.subr.mxu0 0.0
  %362 = vmatpush1.msra.mxu0 0.0
  %363 = vmatprep.subr.mxu0 0.0
  %364 = vmatpush1.msra.mxu0 0.0
  %365 = vmatprep.subr.mxu0 0.0
  %366 = vmatpush1.msra.mxu0 0.0
  %367 = vmatprep.subr.mxu0 0.0
  %368 = vmatpush1.msra.mxu0 0.0
  %369 = vmatprep.subr.mxu0 0.0
  %370 = vmatpush1.msra.mxu0 %v59
  %371 = vmatprep.subr.mxu0 0.0
  %372 = vmatpush1.msra.mxu0 %v58
  %373 = vmatprep.subr.mxu0 0.0
  %374 = vmatpush1.msra.mxu0 %v57
  %375 = vmatprep.subr.mxu0 0.0
  %376 = vmatpush1.msra.mxu0 %v56
  %377 = vmatprep.subr.mxu0 0.0
  %378 = vmatpush2.msra.mxu0 0.0
  %379 = vmatprep.subr.mxu0 0.0
  %380 = vmatpush2.msra.mxu0 0.0
  %381 = vmatprep.subr.mxu0 0.0
  %382 = vmatpush2.msra.mxu0 0.0
  %383 = vmatprep.subr.mxu0 0.0
  %384 = vmatpush2.msra.mxu0 0.0
  %385 = vmatprep.subr.mxu0 0.0
  %386 = vmatpush2.msra.mxu0 0.0
  %387 = vmatprep.subr.mxu0 0.0
  %388 = vmatpush2.msra.mxu0 0.0
  %389 = vmatprep.subr.mxu0 0.0
  %390 = vmatpush2.msra.mxu0 0.0
  %391 = vmatprep.subr.mxu0 0.0
  %392 = vmatpush2.msra.mxu0 0.0
  %393 = vmatprep.subr.mxu0 0.0
  %394 = vmatpush2.msra.mxu0 0.0
  %395 = vmatprep.subr.mxu0 0.0
  %396 = vmatpush2.msra.mxu0 0.0
  %397 = vmatprep.subr.mxu0 0.0
  %398 = vmatpush2.msra.mxu0 0.0
  %399 = vmatprep.subr.mxu0 0.0
  %400 = vmatpush2.msra.mxu0 0.0
  %401 = vmatprep.subr.mxu0 0.0
  %402 = vmatpush2.msra.mxu0 0.0
  %403 = vmatprep.subr.mxu0 0.0
  %404 = vmatpush2.msra.mxu0 0.0
  %405 = vmatprep.subr.mxu0 0.0
  %406 = vmatpush2.msra.mxu0 0.0
  %407 = vmatprep.subr.mxu0 0.0
  %408 = vmatpush2.msra.mxu0 0.0
  %409 = vmatprep.mubr.f32.mxu0 0.0
  %410 = vmatmul.mubr.f32.gmra.mxu0 %v327
  %v411 = vpop.f32.mrf.mxu0
  %v412 = vadd.f32 0.0, %v411
  %v413 = vpop.f32.mrf.mxu0
  %414 = vmatprep.mubr.f32.mxu0 0.0
  %415 = vmatmul.mubr.f32.gmra.mxu0 %v329
  %v416 = vpop.f32.mrf.mxu0
  %v417 = vadd.f32 0.0, %v416
  %v418 = vpop.f32.mrf.mxu0
  %419 = vmatprep.mubr.f32.mxu0 0.0
  %420 = vmatmul.mubr.f32.gmra.mxu0 %v331
  %v421 = vpop.f32.mrf.mxu0
  %v422 = vadd.f32 0.0, %v421
  %v423 = vpop.f32.mrf.mxu0
  %424 = vmatprep.mubr.f32.mxu0 0.0
  %425 = vmatmul.mubr.f32.gmra.mxu0 %v333
  %v426 = vpop.f32.mrf.mxu0
  %v427 = vadd.f32 0.0, %v426
  %v428 = vpop.f32.mrf.mxu0
  %429 = vmatprep.mubr.f32.mxu0 0.0
  %430 = vmatmul.mubr.f32.gmra.mxu0 %v335
  %v431 = vpop.f32.mrf.mxu0
  %v432 = vadd.f32 0.0, %v431
  %v433 = vpop.f32.mrf.mxu0
  %434 = vmatprep.mubr.f32.mxu0 0.0
  %435 = vmatmul.mubr.f32.gmra.mxu0 %v337
  %v436 = vpop.f32.mrf.mxu0
  %v437 = vadd.f32 0.0, %v436
  %v438 = vpop.f32.mrf.mxu0
  %439 = vmatprep.mubr.f32.mxu0 0.0
  %440 = vmatmul.mubr.f32.gmra.mxu0 %v339
  %v441 = vpop.f32.mrf.mxu0
  %v442 = vadd.f32 0.0, %v441
  %v443 = vpop.f32.mrf.mxu0
  %444 = vmatprep.mubr.f32.mxu0 0.0
  %445 = vmatmul.mubr.f32.gmra.mxu0 %v341
  %v446 = vpop.f32.mrf.mxu0
  %v447 = vadd.f32 0.0, %v446
  %v448 = vpop.f32.mrf.mxu0
  %449 = vmatprep.mubr.f32.mxu0 0.0
  %450 = vmatmul.mubr.f32.gmra.mxu0 %v343
  %v451 = vpop.f32.mrf.mxu0
  %v452 = vadd.f32 0.0, %v451
  %v453 = vpop.f32.mrf.mxu0
  %454 = vdwg.mxu0
  %v464 = vcombine.high %v412, %v412
  %v465 = vcombine.high %v417, %v417
  %v466 = vcombine.high %v422, %v422
  %v467 = vcombine.high %v427, %v427
  %v468 = vcombine.high %v432, %v432
  %v469 = vcombine.high %v437, %v437
  %v470 = vcombine.high %v442, %v442
  %v471 = vcombine.high %v447, %v447
  %v472 = vcombine.high %v452, %v452
  %v487 = vcombine.high %v286, %v286
  %v489 = vunpack.c.l.s4 1983009808
  %v490 = vunpack.c.0.s8 %v489
  %v491 = vlaneseq
  %v492 = vshrl.u32 %v491, 7
  %v493 = vsub.s32 %v490, %v492
  %v494 = vrot.slane %v286, %v493
  %v496 = vunpack.c.l.s4 1983009808
  %v497 = vunpack.c.0.s8 %v496
  %v498 = vlaneseq
  %v499 = vshrl.u32 %v498, 7
  %v500 = vsub.s32 %v497, %v499
  %v501 = vrot.slane %v487, %v500
  %v502 = vcombine.high %v494, %v494
  %v503 = vcombine.high %v501, %v501
  %v504 = vcombine.high %v287, %v287
  %v506 = vunpack.c.l.s4 1983009808
  %v507 = vunpack.c.0.s8 %v506
  %v508 = vlaneseq
  %v509 = vshrl.u32 %v508, 7
  %v510 = vsub.s32 %v507, %v509
  %v511 = vrot.slane %v287, %v510
  %v513 = vunpack.c.l.s4 1983009808
  %v514 = vunpack.c.0.s8 %v513
  %v515 = vlaneseq
  %v516 = vshrl.u32 %v515, 7
  %v517 = vsub.s32 %v514, %v516
  %v518 = vrot.slane %v504, %v517
  %v519 = vcombine.high %v511, %v511
  %v520 = vcombine.high %v518, %v518
  %v521 = vcombine.high %v288, %v288
  %v523 = vunpack.c.l.s4 1983009808
  %v524 = vunpack.c.0.s8 %v523
  %v525 = vlaneseq
  %v526 = vshrl.u32 %v525, 7
  %v527 = vsub.s32 %v524, %v526
  %v528 = vrot.slane %v288, %v527
  %v530 = vunpack.c.l.s4 1983009808
  %v531 = vunpack.c.0.s8 %v530
  %v532 = vlaneseq
  %v533 = vshrl.u32 %v532, 7
  %v534 = vsub.s32 %v531, %v533
  %v535 = vrot.slane %v521, %v534
  %v536 = vcombine.high %v528, %v528
  %v537 = vcombine.high %v535, %v535
  %v538 = vcombine.high %v289, %v289
  %v540 = vunpack.c.l.s4 1983009808
  %v541 = vunpack.c.0.s8 %v540
  %v542 = vlaneseq
  %v543 = vshrl.u32 %v542, 7
  %v544 = vsub.s32 %v541, %v543
  %v545 = vrot.slane %v289, %v544
  %v547 = vunpack.c.l.s4 1983009808
  %v548 = vunpack.c.0.s8 %v547
  %v549 = vlaneseq
  %v550 = vshrl.u32 %v549, 7
  %v551 = vsub.s32 %v548, %v550
  %v552 = vrot.slane %v538, %v551
  %v553 = vcombine.high %v545, %v545
  %v554 = vcombine.high %v552, %v552
  %v555 = vcombine.high %v290, %v290
  %v557 = vunpack.c.l.s4 1983009808
  %v558 = vunpack.c.0.s8 %v557
  %v559 = vlaneseq
  %v560 = vshrl.u32 %v559, 7
  %v561 = vsub.s32 %v558, %v560
  %v562 = vrot.slane %v290, %v561
  %v564 = vunpack.c.l.s4 1983009808
  %v565 = vunpack.c.0.s8 %v564
  %v566 = vlaneseq
  %v567 = vshrl.u32 %v566, 7
  %v568 = vsub.s32 %v565, %v567
  %v569 = vrot.slane %v555, %v568
  %v570 = vcombine.high %v562, %v562
  %v571 = vcombine.high %v569, %v569
  %v572 = vcombine.high %v291, %v291
  %v574 = vunpack.c.l.s4 1983009808
  %v575 = vunpack.c.0.s8 %v574
  %v576 = vlaneseq
  %v577 = vshrl.u32 %v576, 7
  %v578 = vsub.s32 %v575, %v577
  %v579 = vrot.slane %v291, %v578
  %v581 = vunpack.c.l.s4 1983009808
  %v582 = vunpack.c.0.s8 %v581
  %v583 = vlaneseq
  %v584 = vshrl.u32 %v583, 7
  %v585 = vsub.s32 %v582, %v584
  %v586 = vrot.slane %v572, %v585
  %v587 = vcombine.high %v579, %v579
  %v588 = vcombine.high %v586, %v586
  %v590 = vunpack.c.l.s4 1983009808
  %v591 = vunpack.c.0.s8 %v590
  %v592 = vlaneseq
  %v593 = vshrl.u32 %v592, 7
  %v594 = vsub.s32 %v591, %v593
  %v595 = vrot.slane %v292, %v594
  %v596 = vcombine.high %v293, %v293
  %v598 = vunpack.c.l.s4 1983009808
  %v599 = vunpack.c.0.s8 %v598
  %v600 = vlaneseq
  %v601 = vshrl.u32 %v600, 7
  %v602 = vsub.s32 %v599, %v601
  %v603 = vrot.slane %v293, %v602
  %v605 = vunpack.c.l.s4 1983009808
  %v606 = vunpack.c.0.s8 %v605
  %v607 = vlaneseq
  %v608 = vshrl.u32 %v607, 7
  %v609 = vsub.s32 %v606, %v608
  %v610 = vrot.slane %v596, %v609
  %v611 = vcombine.high %v603, %v603
  %v612 = vcombine.high %v610, %v610
  %v613 = vcombine.high %v294, %v294
  %v615 = vunpack.c.l.s4 1983009808
  %v616 = vunpack.c.0.s8 %v615
  %v617 = vlaneseq
  %v618 = vshrl.u32 %v617, 7
  %v619 = vsub.s32 %v616, %v618
  %v620 = vrot.slane %v294, %v619
  %v622 = vunpack.c.l.s4 1983009808
  %v623 = vunpack.c.0.s8 %v622
  %v624 = vlaneseq
  %v625 = vshrl.u32 %v624, 7
  %v626 = vsub.s32 %v623, %v625
  %v627 = vrot.slane %v613, %v626
  %v628 = vcombine.high %v620, %v620
  %v629 = vcombine.high %v627, %v627
  %v630 = vcombine.high %v295, %v295
  %v632 = vunpack.c.l.s4 1983009808
  %v633 = vunpack.c.0.s8 %v632
  %v634 = vlaneseq
  %v635 = vshrl.u32 %v634, 7
  %v636 = vsub.s32 %v633, %v635
  %v637 = vrot.slane %v295, %v636
  %v639 = vunpack.c.l.s4 1983009808
  %v640 = vunpack.c.0.s8 %v639
  %v641 = vlaneseq
  %v642 = vshrl.u32 %v641, 7
  %v643 = vsub.s32 %v640, %v642
  %v644 = vrot.slane %v630, %v643
  %v645 = vcombine.high %v637, %v637
  %v646 = vcombine.high %v644, %v644
  %v647 = vcombine.high %v296, %v296
  %v649 = vunpack.c.l.s4 1983009808
  %v650 = vunpack.c.0.s8 %v649
  %v651 = vlaneseq
  %v652 = vshrl.u32 %v651, 7
  %v653 = vsub.s32 %v650, %v652
  %v654 = vrot.slane %v296, %v653
  %v656 = vunpack.c.l.s4 1983009808
  %v657 = vunpack.c.0.s8 %v656
  %v658 = vlaneseq
  %v659 = vshrl.u32 %v658, 7
  %v660 = vsub.s32 %v657, %v659
  %v661 = vrot.slane %v647, %v660
  %v662 = vcombine.high %v654, %v654
  %v663 = vcombine.high %v661, %v661
  %v664 = vcombine.high %v297, %v297
  %v666 = vunpack.c.l.s4 1983009808
  %v667 = vunpack.c.0.s8 %v666
  %v668 = vlaneseq
  %v669 = vshrl.u32 %v668, 7
  %v670 = vsub.s32 %v667, %v669
  %v671 = vrot.slane %v297, %v670
  %v673 = vunpack.c.l.s4 1983009808
  %v674 = vunpack.c.0.s8 %v673
  %v675 = vlaneseq
  %v676 = vshrl.u32 %v675, 7
  %v677 = vsub.s32 %v674, %v676
  %v678 = vrot.slane %v664, %v677
  %v679 = vcombine.high %v671, %v671
  %v680 = vcombine.high %v678, %v678
  %v681 = vcombine.high %v298, %v298
  %v683 = vunpack.c.l.s4 1983009808
  %v684 = vunpack.c.0.s8 %v683
  %v685 = vlaneseq
  %v686 = vshrl.u32 %v685, 7
  %v687 = vsub.s32 %v684, %v686
  %v688 = vrot.slane %v298, %v687
  %v690 = vunpack.c.l.s4 1983009808
  %v691 = vunpack.c.0.s8 %v690
  %v692 = vlaneseq
  %v693 = vshrl.u32 %v692, 7
  %v694 = vsub.s32 %v691, %v693
  %v695 = vrot.slane %v681, %v694
  %v696 = vcombine.high %v688, %v688
  %v697 = vcombine.high %v695, %v695
  %v699 = vunpack.c.l.s4 1983009808
  %v700 = vunpack.c.0.s8 %v699
  %v701 = vlaneseq
  %v702 = vshrl.u32 %v701, 7
  %v703 = vsub.s32 %v700, %v702
  %v704 = vrot.slane %v299, %v703
  %v705 = vcombine.low %v494, %v502
  %v706 = vcombine.low %v501, %v503
  %v708 = vunpack.c.l.s4 1983009808
  %v709 = vunpack.c.0.s8 %v708
  %v710 = vlaneseq
  %v711 = vshrl.u32 %v710, 7
  %v712 = vsub.s32 %v709, %v711
  %v713 = vrot.slane %v705, %v712
  %v715 = vunpack.c.l.s4 1983009808
  %v716 = vunpack.c.0.s8 %v715
  %v717 = vlaneseq
  %v718 = vshrl.u32 %v717, 7
  %v719 = vsub.s32 %v716, %v718
  %v720 = vrot.slane %v706, %v719
  %v721 = vcombine.low %v713, %v720
  %v722 = vcombine.low %v511, %v519
  %v723 = vcombine.low %v518, %v520
  %v725 = vunpack.c.l.s4 1983009808
  %v726 = vunpack.c.0.s8 %v725
  %v727 = vlaneseq
  %v728 = vshrl.u32 %v727, 7
  %v729 = vsub.s32 %v726, %v728
  %v730 = vrot.slane %v722, %v729
  %v732 = vunpack.c.l.s4 1983009808
  %v733 = vunpack.c.0.s8 %v732
  %v734 = vlaneseq
  %v735 = vshrl.u32 %v734, 7
  %v736 = vsub.s32 %v733, %v735
  %v737 = vrot.slane %v723, %v736
  %v738 = vcombine.low %v730, %v737
  %v739 = vcombine.low %v528, %v536
  %v740 = vcombine.low %v535, %v537
  %v742 = vunpack.c.l.s4 1983009808
  %v743 = vunpack.c.0.s8 %v742
  %v744 = vlaneseq
  %v745 = vshrl.u32 %v744, 7
  %v746 = vsub.s32 %v743, %v745
  %v747 = vrot.slane %v739, %v746
  %v749 = vunpack.c.l.s4 1983009808
  %v750 = vunpack.c.0.s8 %v749
  %v751 = vlaneseq
  %v752 = vshrl.u32 %v751, 7
  %v753 = vsub.s32 %v750, %v752
  %v754 = vrot.slane %v740, %v753
  %v755 = vcombine.low %v747, %v754
  %v756 = vcombine.low %v545, %v553
  %v757 = vcombine.low %v552, %v554
  %v759 = vunpack.c.l.s4 1983009808
  %v760 = vunpack.c.0.s8 %v759
  %v761 = vlaneseq
  %v762 = vshrl.u32 %v761, 7
  %v763 = vsub.s32 %v760, %v762
  %v764 = vrot.slane %v756, %v763
  %v766 = vunpack.c.l.s4 1983009808
  %v767 = vunpack.c.0.s8 %v766
  %v768 = vlaneseq
  %v769 = vshrl.u32 %v768, 7
  %v770 = vsub.s32 %v767, %v769
  %v771 = vrot.slane %v757, %v770
  %v772 = vcombine.low %v764, %v771
  %v773 = vcombine.low %v562, %v570
  %v774 = vcombine.low %v569, %v571
  %v776 = vunpack.c.l.s4 1983009808
  %v777 = vunpack.c.0.s8 %v776
  %v778 = vlaneseq
  %v779 = vshrl.u32 %v778, 7
  %v780 = vsub.s32 %v777, %v779
  %v781 = vrot.slane %v773, %v780
  %v783 = vunpack.c.l.s4 1983009808
  %v784 = vunpack.c.0.s8 %v783
  %v785 = vlaneseq
  %v786 = vshrl.u32 %v785, 7
  %v787 = vsub.s32 %v784, %v786
  %v788 = vrot.slane %v774, %v787
  %v789 = vcombine.low %v781, %v788
  %v790 = vcombine.low %v579, %v587
  %v791 = vcombine.low %v586, %v588
  %v793 = vunpack.c.l.s4 1983009808
  %v794 = vunpack.c.0.s8 %v793
  %v795 = vlaneseq
  %v796 = vshrl.u32 %v795, 7
  %v797 = vsub.s32 %v794, %v796
  %v798 = vrot.slane %v790, %v797
  %v800 = vunpack.c.l.s4 1983009808
  %v801 = vunpack.c.0.s8 %v800
  %v802 = vlaneseq
  %v803 = vshrl.u32 %v802, 7
  %v804 = vsub.s32 %v801, %v803
  %v805 = vrot.slane %v791, %v804
  %v806 = vcombine.low %v798, %v805
  %v807 = vcombine.low %v595, %v603
  %v808 = vcombine.low %v611, %v610
  %v810 = vunpack.c.l.s4 1983009808
  %v811 = vunpack.c.0.s8 %v810
  %v812 = vlaneseq
  %v813 = vshrl.u32 %v812, 7
  %v814 = vsub.s32 %v811, %v813
  %v815 = vrot.slane %v807, %v814
  %v817 = vunpack.c.l.s4 1983009808
  %v818 = vunpack.c.0.s8 %v817
  %v819 = vlaneseq
  %v820 = vshrl.u32 %v819, 7
  %v821 = vsub.s32 %v818, %v820
  %v822 = vrot.slane %v808, %v821
  %v823 = vcombine.low %v815, %v822
  %v824 = vcombine.low %v612, %v620
  %v825 = vcombine.low %v628, %v627
  %v827 = vunpack.c.l.s4 1983009808
  %v828 = vunpack.c.0.s8 %v827
  %v829 = vlaneseq
  %v830 = vshrl.u32 %v829, 7
  %v831 = vsub.s32 %v828, %v830
  %v832 = vrot.slane %v824, %v831
  %v834 = vunpack.c.l.s4 1983009808
  %v835 = vunpack.c.0.s8 %v834
  %v836 = vlaneseq
  %v837 = vshrl.u32 %v836, 7
  %v838 = vsub.s32 %v835, %v837
  %v839 = vrot.slane %v825, %v838
  %v840 = vcombine.low %v832, %v839
  %v841 = vcombine.low %v629, %v637
  %v842 = vcombine.low %v645, %v644
  %v844 = vunpack.c.l.s4 1983009808
  %v845 = vunpack.c.0.s8 %v844
  %v846 = vlaneseq
  %v847 = vshrl.u32 %v846, 7
  %v848 = vsub.s32 %v845, %v847
  %v849 = vrot.slane %v841, %v848
  %v851 = vunpack.c.l.s4 1983009808
  %v852 = vunpack.c.0.s8 %v851
  %v853 = vlaneseq
  %v854 = vshrl.u32 %v853, 7
  %v855 = vsub.s32 %v852, %v854
  %v856 = vrot.slane %v842, %v855
  %v857 = vcombine.low %v849, %v856
  %v858 = vcombine.low %v646, %v654
  %v859 = vcombine.low %v662, %v661
  %v861 = vunpack.c.l.s4 1983009808
  %v862 = vunpack.c.0.s8 %v861
  %v863 = vlaneseq
  %v864 = vshrl.u32 %v863, 7
  %v865 = vsub.s32 %v862, %v864
  %v866 = vrot.slane %v858, %v865
  %v868 = vunpack.c.l.s4 1983009808
  %v869 = vunpack.c.0.s8 %v868
  %v870 = vlaneseq
  %v871 = vshrl.u32 %v870, 7
  %v872 = vsub.s32 %v869, %v871
  %v873 = vrot.slane %v859, %v872
  %v874 = vcombine.low %v866, %v873
  %v875 = vcombine.low %v663, %v671
  %v876 = vcombine.low %v679, %v678
  %v878 = vunpack.c.l.s4 1983009808
  %v879 = vunpack.c.0.s8 %v878
  %v880 = vlaneseq
  %v881 = vshrl.u32 %v880, 7
  %v882 = vsub.s32 %v879, %v881
  %v883 = vrot.slane %v875, %v882
  %v885 = vunpack.c.l.s4 1983009808
  %v886 = vunpack.c.0.s8 %v885
  %v887 = vlaneseq
  %v888 = vshrl.u32 %v887, 7
  %v889 = vsub.s32 %v886, %v888
  %v890 = vrot.slane %v876, %v889
  %v891 = vcombine.low %v883, %v890
  %v892 = vcombine.low %v680, %v688
  %v893 = vcombine.low %v696, %v695
  %v895 = vunpack.c.l.s4 1983009808
  %v896 = vunpack.c.0.s8 %v895
  %v897 = vlaneseq
  %v898 = vshrl.u32 %v897, 7
  %v899 = vsub.s32 %v896, %v898
  %v900 = vrot.slane %v892, %v899
  %v902 = vunpack.c.l.s4 1983009808
  %v903 = vunpack.c.0.s8 %v902
  %v904 = vlaneseq
  %v905 = vshrl.u32 %v904, 7
  %v906 = vsub.s32 %v903, %v905
  %v907 = vrot.slane %v893, %v906
  %v908 = vcombine.low %v900, %v907
  %v909 = vcombine.low %v697, %v704
  %v911 = vunpack.c.l.s4 1983009808
  %v912 = vunpack.c.0.s8 %v911
  %v913 = vlaneseq
  %v914 = vshrl.u32 %v913, 7
  %v915 = vsub.s32 %v912, %v914
  %v916 = vrot.slane %v909, %v915
  %v917 = vsel %vm75, %v721, 0
  %v919 = vsel %vm75, %v738, 0
  %v921 = vsel %vm75, %v755, 0
  %v923 = vsel %vm75, %v772, 0
  %v925 = vsel %vm75, %v789, 0
  %v927 = vsel %vm75, %v806, 0
  %v929 = vsel %vm75, %v823, 0
  %v931 = vsel %vm75, %v840, 0
  %v933 = vsel %vm75, %v857, 0
  %v935 = vsel %vm75, %v874, 0
  %v937 = vsel %vm75, %v891, 0
  %v939 = vsel %vm75, %v908, 0
  %v941 = vsel %vm75, %v916, 0
  %943 = vmatprep.subr.mxu0 0.0
  %944 = vmatpush1.msra.mxu0 0.0
  %945 = vmatprep.subr.mxu0 0.0
  %946 = vmatpush1.msra.mxu0 0.0
  %947 = vmatprep.subr.mxu0 0.0
  %948 = vmatpush1.msra.mxu0 0.0
  %949 = vmatprep.subr.mxu0 0.0
  %950 = vmatpush1.msra.mxu0 0.0
  %951 = vmatprep.subr.mxu0 0.0
  %952 = vmatpush1.msra.mxu0 0.0
  %953 = vmatprep.subr.mxu0 0.0
  %954 = vmatpush1.msra.mxu0 0.0
  %955 = vmatprep.subr.mxu0 0.0
  %956 = vmatpush1.msra.mxu0 0.0
  %957 = vmatprep.subr.mxu0 0.0
  %958 = vmatpush1.msra.mxu0 0.0
  %959 = vmatprep.subr.mxu0 0.0
  %960 = vmatpush1.msra.mxu0 0.0
  %961 = vmatprep.subr.mxu0 0.0
  %962 = vmatpush1.msra.mxu0 0.0
  %963 = vmatprep.subr.mxu0 0.0
  %964 = vmatpush1.msra.mxu0 0.0
  %965 = vmatprep.subr.mxu0 0.0
  %966 = vmatpush1.msra.mxu0 0.0
  %967 = vmatprep.subr.mxu0 0.0
  %968 = vmatpush1.msra.mxu0 %v63
  %969 = vmatprep.subr.mxu0 0.0
  %970 = vmatpush1.msra.mxu0 %v62
  %971 = vmatprep.subr.mxu0 0.0
  %972 = vmatpush1.msra.mxu0 %v61
  %973 = vmatprep.subr.mxu0 0.0
  %974 = vmatpush1.msra.mxu0 %v60
  %975 = vmatprep.subr.mxu0 0.0
  %976 = vmatpush2.msra.mxu0 0.0
  %977 = vmatprep.subr.mxu0 0.0
  %978 = vmatpush2.msra.mxu0 0.0
  %979 = vmatprep.subr.mxu0 0.0
  %980 = vmatpush2.msra.mxu0 0.0
  %981 = vmatprep.subr.mxu0 0.0
  %982 = vmatpush2.msra.mxu0 0.0
  %983 = vmatprep.subr.mxu0 0.0
  %984 = vmatpush2.msra.mxu0 0.0
  %985 = vmatprep.subr.mxu0 0.0
  %986 = vmatpush2.msra.mxu0 0.0
  %987 = vmatprep.subr.mxu0 0.0
  %988 = vmatpush2.msra.mxu0 0.0
  %989 = vmatprep.subr.mxu0 0.0
  %990 = vmatpush2.msra.mxu0 0.0
  %991 = vmatprep.subr.mxu0 0.0
  %992 = vmatpush2.msra.mxu0 0.0
  %993 = vmatprep.subr.mxu0 0.0
  %994 = vmatpush2.msra.mxu0 0.0
  %995 = vmatprep.subr.mxu0 0.0
  %996 = vmatpush2.msra.mxu0 0.0
  %997 = vmatprep.subr.mxu0 0.0
  %998 = vmatpush2.msra.mxu0 0.0
  %999 = vmatprep.subr.mxu0 0.0
  %1000 = vmatpush2.msra.mxu0 0.0
  %1001 = vmatprep.subr.mxu0 0.0
  %1002 = vmatpush2.msra.mxu0 0.0
  %1003 = vmatprep.subr.mxu0 0.0
  %1004 = vmatpush2.msra.mxu0 0.0
  %1005 = vmatprep.subr.mxu0 0.0
  %1006 = vmatpush2.msra.mxu0 0.0
  %1007 = vmatprep.mubr.f32.mxu0 0.0
  %1008 = vmatmul.mubr.f32.gmra.mxu0 %v917
  %v1009 = vpop.f32.mrf.mxu0
  %v1010 = vadd.f32 0.0, %v1009
  %v1011 = vpop.f32.mrf.mxu0
  %1012 = vmatprep.mubr.f32.mxu0 0.0
  %1013 = vmatmul.mubr.f32.gmra.mxu0 %v919
  %v1014 = vpop.f32.mrf.mxu0
  %v1015 = vadd.f32 0.0, %v1014
  %v1016 = vpop.f32.mrf.mxu0
  %1017 = vmatprep.mubr.f32.mxu0 0.0
  %1018 = vmatmul.mubr.f32.gmra.mxu0 %v921
  %v1019 = vpop.f32.mrf.mxu0
  %v1020 = vadd.f32 0.0, %v1019
  %v1021 = vpop.f32.mrf.mxu0
  %1022 = vmatprep.mubr.f32.mxu0 0.0
  %1023 = vmatmul.mubr.f32.gmra.mxu0 %v923
  %v1024 = vpop.f32.mrf.mxu0
  %v1025 = vadd.f32 0.0, %v1024
  %v1026 = vpop.f32.mrf.mxu0
  %1027 = vmatprep.mubr.f32.mxu0 0.0
  %1028 = vmatmul.mubr.f32.gmra.mxu0 %v925
  %v1029 = vpop.f32.mrf.mxu0
  %v1030 = vadd.f32 0.0, %v1029
  %v1031 = vpop.f32.mrf.mxu0
  %1032 = vmatprep.mubr.f32.mxu0 0.0
  %1033 = vmatmul.mubr.f32.gmra.mxu0 %v927
  %v1034 = vpop.f32.mrf.mxu0
  %v1035 = vadd.f32 0.0, %v1034
  %v1036 = vpop.f32.mrf.mxu0
  %1037 = vmatprep.mubr.f32.mxu0 0.0
  %1038 = vmatmul.mubr.f32.gmra.mxu0 %v929
  %v1039 = vpop.f32.mrf.mxu0
  %v1040 = vadd.f32 0.0, %v1039
  %v1041 = vpop.f32.mrf.mxu0
  %1042 = vmatprep.mubr.f32.mxu0 0.0
  %1043 = vmatmul.mubr.f32.gmra.mxu0 %v931
  %v1044 = vpop.f32.mrf.mxu0
  %v1045 = vadd.f32 0.0, %v1044
  %v1046 = vpop.f32.mrf.mxu0
  %1047 = vmatprep.mubr.f32.mxu0 0.0
  %1048 = vmatmul.mubr.f32.gmra.mxu0 %v933
  %v1049 = vpop.f32.mrf.mxu0
  %v1050 = vadd.f32 0.0, %v1049
  %v1051 = vpop.f32.mrf.mxu0
  %1052 = vmatprep.mubr.f32.mxu0 0.0
  %1053 = vmatmul.mubr.f32.gmra.mxu0 %v935
  %v1054 = vpop.f32.mrf.mxu0
  %v1055 = vadd.f32 0.0, %v1054
  %v1056 = vpop.f32.mrf.mxu0
  %1057 = vmatprep.mubr.f32.mxu0 0.0
  %1058 = vmatmul.mubr.f32.gmra.mxu0 %v937
  %v1059 = vpop.f32.mrf.mxu0
  %v1060 = vadd.f32 0.0, %v1059
  %v1061 = vpop.f32.mrf.mxu0
  %1062 = vmatprep.mubr.f32.mxu0 0.0
  %1063 = vmatmul.mubr.f32.gmra.mxu0 %v939
  %v1064 = vpop.f32.mrf.mxu0
  %v1065 = vadd.f32 0.0, %v1064
  %v1066 = vpop.f32.mrf.mxu0
  %1067 = vmatprep.mubr.f32.mxu0 0.0
  %1068 = vmatmul.mubr.f32.gmra.mxu0 %v941
  %v1069 = vpop.f32.mrf.mxu0
  %v1070 = vadd.f32 0.0, %v1069
  %v1071 = vpop.f32.mrf.mxu0
  %1072 = vdwg.mxu0
  %v1086 = vcombine.high %v1010, %v1010
  %v1088 = vunpack.c.l.s4 1983009808
  %v1089 = vunpack.c.0.s8 %v1088
  %v1090 = vlaneseq
  %v1091 = vshrl.u32 %v1090, 7
  %v1092 = vsub.s32 %v1089, %v1091
  %v1093 = vrot.slane %v1010, %v1092
  %v1095 = vunpack.c.l.s4 1983009808
  %v1096 = vunpack.c.0.s8 %v1095
  %v1097 = vlaneseq
  %v1098 = vshrl.u32 %v1097, 7
  %v1099 = vsub.s32 %v1096, %v1098
  %v1100 = vrot.slane %v1086, %v1099
  %v1101 = vcombine.high %v1093, %v1093
  %v1102 = vcombine.high %v1100, %v1100
  %v1103 = vcombine.high %v1015, %v1015
  %v1105 = vunpack.c.l.s4 1983009808
  %v1106 = vunpack.c.0.s8 %v1105
  %v1107 = vlaneseq
  %v1108 = vshrl.u32 %v1107, 7
  %v1109 = vsub.s32 %v1106, %v1108
  %v1110 = vrot.slane %v1015, %v1109
  %v1112 = vunpack.c.l.s4 1983009808
  %v1113 = vunpack.c.0.s8 %v1112
  %v1114 = vlaneseq
  %v1115 = vshrl.u32 %v1114, 7
  %v1116 = vsub.s32 %v1113, %v1115
  %v1117 = vrot.slane %v1103, %v1116
  %v1118 = vcombine.high %v1110, %v1110
  %v1119 = vcombine.high %v1117, %v1117
  %v1120 = vcombine.high %v1020, %v1020
  %v1122 = vunpack.c.l.s4 1983009808
  %v1123 = vunpack.c.0.s8 %v1122
  %v1124 = vlaneseq
  %v1125 = vshrl.u32 %v1124, 7
  %v1126 = vsub.s32 %v1123, %v1125
  %v1127 = vrot.slane %v1020, %v1126
  %v1129 = vunpack.c.l.s4 1983009808
  %v1130 = vunpack.c.0.s8 %v1129
  %v1131 = vlaneseq
  %v1132 = vshrl.u32 %v1131, 7
  %v1133 = vsub.s32 %v1130, %v1132
  %v1134 = vrot.slane %v1120, %v1133
  %v1135 = vcombine.high %v1127, %v1127
  %v1136 = vcombine.high %v1134, %v1134
  %v1137 = vcombine.high %v1025, %v1025
  %v1139 = vunpack.c.l.s4 1983009808
  %v1140 = vunpack.c.0.s8 %v1139
  %v1141 = vlaneseq
  %v1142 = vshrl.u32 %v1141, 7
  %v1143 = vsub.s32 %v1140, %v1142
  %v1144 = vrot.slane %v1025, %v1143
  %v1146 = vunpack.c.l.s4 1983009808
  %v1147 = vunpack.c.0.s8 %v1146
  %v1148 = vlaneseq
  %v1149 = vshrl.u32 %v1148, 7
  %v1150 = vsub.s32 %v1147, %v1149
  %v1151 = vrot.slane %v1137, %v1150
  %v1152 = vcombine.high %v1144, %v1144
  %v1153 = vcombine.high %v1151, %v1151
  %v1154 = vcombine.high %v1030, %v1030
  %v1156 = vunpack.c.l.s4 1983009808
  %v1157 = vunpack.c.0.s8 %v1156
  %v1158 = vlaneseq
  %v1159 = vshrl.u32 %v1158, 7
  %v1160 = vsub.s32 %v1157, %v1159
  %v1161 = vrot.slane %v1030, %v1160
  %v1163 = vunpack.c.l.s4 1983009808
  %v1164 = vunpack.c.0.s8 %v1163
  %v1165 = vlaneseq
  %v1166 = vshrl.u32 %v1165, 7
  %v1167 = vsub.s32 %v1164, %v1166
  %v1168 = vrot.slane %v1154, %v1167
  %v1169 = vcombine.high %v1161, %v1161
  %v1170 = vcombine.high %v1168, %v1168
  %v1171 = vcombine.high %v1035, %v1035
  %v1173 = vunpack.c.l.s4 1983009808
  %v1174 = vunpack.c.0.s8 %v1173
  %v1175 = vlaneseq
  %v1176 = vshrl.u32 %v1175, 7
  %v1177 = vsub.s32 %v1174, %v1176
  %v1178 = vrot.slane %v1035, %v1177
  %v1180 = vunpack.c.l.s4 1983009808
  %v1181 = vunpack.c.0.s8 %v1180
  %v1182 = vlaneseq
  %v1183 = vshrl.u32 %v1182, 7
  %v1184 = vsub.s32 %v1181, %v1183
  %v1185 = vrot.slane %v1171, %v1184
  %v1186 = vcombine.high %v1178, %v1178
  %v1187 = vcombine.high %v1185, %v1185
  %v1188 = vcombine.high %v1040, %v1040
  %v1190 = vunpack.c.l.s4 1983009808
  %v1191 = vunpack.c.0.s8 %v1190
  %v1192 = vlaneseq
  %v1193 = vshrl.u32 %v1192, 7
  %v1194 = vsub.s32 %v1191, %v1193
  %v1195 = vrot.slane %v1040, %v1194
  %v1197 = vunpack.c.l.s4 1983009808
  %v1198 = vunpack.c.0.s8 %v1197
  %v1199 = vlaneseq
  %v1200 = vshrl.u32 %v1199, 7
  %v1201 = vsub.s32 %v1198, %v1200
  %v1202 = vrot.slane %v1188, %v1201
  %v1203 = vcombine.high %v1195, %v1195
  %v1204 = vcombine.high %v1202, %v1202
  %v1205 = vcombine.high %v1045, %v1045
  %v1207 = vunpack.c.l.s4 1983009808
  %v1208 = vunpack.c.0.s8 %v1207
  %v1209 = vlaneseq
  %v1210 = vshrl.u32 %v1209, 7
  %v1211 = vsub.s32 %v1208, %v1210
  %v1212 = vrot.slane %v1045, %v1211
  %v1214 = vunpack.c.l.s4 1983009808
  %v1215 = vunpack.c.0.s8 %v1214
  %v1216 = vlaneseq
  %v1217 = vshrl.u32 %v1216, 7
  %v1218 = vsub.s32 %v1215, %v1217
  %v1219 = vrot.slane %v1205, %v1218
  %v1220 = vcombine.high %v1212, %v1212
  %v1221 = vcombine.high %v1219, %v1219
  %v1222 = vcombine.high %v1050, %v1050
  %v1224 = vunpack.c.l.s4 1983009808
  %v1225 = vunpack.c.0.s8 %v1224
  %v1226 = vlaneseq
  %v1227 = vshrl.u32 %v1226, 7
  %v1228 = vsub.s32 %v1225, %v1227
  %v1229 = vrot.slane %v1050, %v1228
  %v1231 = vunpack.c.l.s4 1983009808
  %v1232 = vunpack.c.0.s8 %v1231
  %v1233 = vlaneseq
  %v1234 = vshrl.u32 %v1233, 7
  %v1235 = vsub.s32 %v1232, %v1234
  %v1236 = vrot.slane %v1222, %v1235
  %v1237 = vcombine.high %v1229, %v1229
  %v1238 = vcombine.high %v1236, %v1236
  %v1239 = vcombine.high %v1055, %v1055
  %v1241 = vunpack.c.l.s4 1983009808
  %v1242 = vunpack.c.0.s8 %v1241
  %v1243 = vlaneseq
  %v1244 = vshrl.u32 %v1243, 7
  %v1245 = vsub.s32 %v1242, %v1244
  %v1246 = vrot.slane %v1055, %v1245
  %v1248 = vunpack.c.l.s4 1983009808
  %v1249 = vunpack.c.0.s8 %v1248
  %v1250 = vlaneseq
  %v1251 = vshrl.u32 %v1250, 7
  %v1252 = vsub.s32 %v1249, %v1251
  %v1253 = vrot.slane %v1239, %v1252
  %v1254 = vcombine.high %v1246, %v1246
  %v1255 = vcombine.high %v1253, %v1253
  %v1256 = vcombine.high %v1060, %v1060
  %v1258 = vunpack.c.l.s4 1983009808
  %v1259 = vunpack.c.0.s8 %v1258
  %v1260 = vlaneseq
  %v1261 = vshrl.u32 %v1260, 7
  %v1262 = vsub.s32 %v1259, %v1261
  %v1263 = vrot.slane %v1060, %v1262
  %v1265 = vunpack.c.l.s4 1983009808
  %v1266 = vunpack.c.0.s8 %v1265
  %v1267 = vlaneseq
  %v1268 = vshrl.u32 %v1267, 7
  %v1269 = vsub.s32 %v1266, %v1268
  %v1270 = vrot.slane %v1256, %v1269
  %v1271 = vcombine.high %v1263, %v1263
  %v1272 = vcombine.high %v1270, %v1270
  %v1273 = vcombine.high %v1065, %v1065
  %v1275 = vunpack.c.l.s4 1983009808
  %v1276 = vunpack.c.0.s8 %v1275
  %v1277 = vlaneseq
  %v1278 = vshrl.u32 %v1277, 7
  %v1279 = vsub.s32 %v1276, %v1278
  %v1280 = vrot.slane %v1065, %v1279
  %v1282 = vunpack.c.l.s4 1983009808
  %v1283 = vunpack.c.0.s8 %v1282
  %v1284 = vlaneseq
  %v1285 = vshrl.u32 %v1284, 7
  %v1286 = vsub.s32 %v1283, %v1285
  %v1287 = vrot.slane %v1273, %v1286
  %v1288 = vcombine.high %v1280, %v1280
  %v1289 = vcombine.high %v1287, %v1287
  %v1291 = vunpack.c.l.s4 1983009808
  %v1292 = vunpack.c.0.s8 %v1291
  %v1293 = vlaneseq
  %v1294 = vshrl.u32 %v1293, 7
  %v1295 = vsub.s32 %v1292, %v1294
  %v1296 = vrot.slane %v1070, %v1295
  %v1297 = vcombine.high %v1296, %v1296
  %1298 = vmatprep.subr.mxu0 0.0
  %1299 = vmatpush1.msra.mxu0 0.0
  %1300 = vmatprep.subr.mxu0 0.0
  %1301 = vmatpush1.msra.mxu0 0.0
  %1302 = vmatprep.subr.mxu0 0.0
  %1303 = vmatpush1.msra.mxu0 0.0
  %1304 = vmatprep.subr.mxu0 0.0
  %1305 = vmatpush1.msra.mxu0 0.0
  %1306 = vmatprep.subr.mxu0 0.0
  %1307 = vmatpush1.msra.mxu0 0.0
  %1308 = vmatprep.subr.mxu0 0.0
  %1309 = vmatpush1.msra.mxu0 0.0
  %1310 = vmatprep.subr.mxu0 0.0
  %1311 = vmatpush1.msra.mxu0 0.0
  %1312 = vmatprep.subr.mxu0 0.0
  %1313 = vmatpush1.msra.mxu0 0.0
  %1314 = vmatprep.subr.mxu0 0.0
  %1315 = vmatpush1.msra.mxu0 0.0
  %1316 = vmatprep.subr.mxu0 0.0
  %1317 = vmatpush1.msra.mxu0 0.0
  %1318 = vmatprep.subr.mxu0 0.0
  %1319 = vmatpush1.msra.mxu0 0.0
  %1320 = vmatprep.subr.mxu0 0.0
  %1321 = vmatpush1.msra.mxu0 0.0
  %1322 = vmatprep.subr.mxu0 0.0
  %1323 = vmatpush1.msra.mxu0 %v67
  %1324 = vmatprep.subr.mxu0 0.0
  %1325 = vmatpush1.msra.mxu0 %v66
  %1326 = vmatprep.subr.mxu0 0.0
  %1327 = vmatpush1.msra.mxu0 %v65
  %1328 = vmatprep.subr.mxu0 0.0
  %1329 = vmatpush1.msra.mxu0 %v64
  %1330 = vmatprep.subr.mxu0 0.0
  %1331 = vmatpush2.msra.mxu0 0.0
  %1332 = vmatprep.subr.mxu0 0.0
  %1333 = vmatpush2.msra.mxu0 0.0
  %1334 = vmatprep.subr.mxu0 0.0
  %1335 = vmatpush2.msra.mxu0 0.0
  %1336 = vmatprep.subr.mxu0 0.0
  %1337 = vmatpush2.msra.mxu0 0.0
  %1338 = vmatprep.subr.mxu0 0.0
  %1339 = vmatpush2.msra.mxu0 0.0
  %1340 = vmatprep.subr.mxu0 0.0
  %1341 = vmatpush2.msra.mxu0 0.0
  %1342 = vmatprep.subr.mxu0 0.0
  %1343 = vmatpush2.msra.mxu0 0.0
  %1344 = vmatprep.subr.mxu0 0.0
  %1345 = vmatpush2.msra.mxu0 0.0
  %1346 = vmatprep.subr.mxu0 0.0
  %1347 = vmatpush2.msra.mxu0 0.0
  %1348 = vmatprep.subr.mxu0 0.0
  %1349 = vmatpush2.msra.mxu0 0.0
  %1350 = vmatprep.subr.mxu0 0.0
  %1351 = vmatpush2.msra.mxu0 0.0
  %1352 = vmatprep.subr.mxu0 0.0
  %1353 = vmatpush2.msra.mxu0 0.0
  %1354 = vmatprep.subr.mxu0 0.0
  %1355 = vmatpush2.msra.mxu0 0.0
  %1356 = vmatprep.subr.mxu0 0.0
  %1357 = vmatpush2.msra.mxu0 0.0
  %1358 = vmatprep.subr.mxu0 0.0
  %1359 = vmatpush2.msra.mxu0 0.0
  %1360 = vmatprep.subr.mxu0 0.0
  %1361 = vmatpush2.msra.mxu0 0.0
  %1362 = vmatprep.mubr.f32.mxu0 0.0
  %1363 = vmatmul.mubr.f32.gmra.mxu0 %v917
  %v1364 = vpop.f32.mrf.mxu0
  %v1365 = vadd.f32 0.0, %v1364
  %v1366 = vpop.f32.mrf.mxu0
  %1367 = vmatprep.mubr.f32.mxu0 0.0
  %1368 = vmatmul.mubr.f32.gmra.mxu0 %v919
  %v1369 = vpop.f32.mrf.mxu0
  %v1370 = vadd.f32 0.0, %v1369
  %v1371 = vpop.f32.mrf.mxu0
  %1372 = vmatprep.mubr.f32.mxu0 0.0
  %1373 = vmatmul.mubr.f32.gmra.mxu0 %v921
  %v1374 = vpop.f32.mrf.mxu0
  %v1375 = vadd.f32 0.0, %v1374
  %v1376 = vpop.f32.mrf.mxu0
  %1377 = vmatprep.mubr.f32.mxu0 0.0
  %1378 = vmatmul.mubr.f32.gmra.mxu0 %v923
  %v1379 = vpop.f32.mrf.mxu0
  %v1380 = vadd.f32 0.0, %v1379
  %v1381 = vpop.f32.mrf.mxu0
  %1382 = vmatprep.mubr.f32.mxu0 0.0
  %1383 = vmatmul.mubr.f32.gmra.mxu0 %v925
  %v1384 = vpop.f32.mrf.mxu0
  %v1385 = vadd.f32 0.0, %v1384
  %v1386 = vpop.f32.mrf.mxu0
  %1387 = vmatprep.mubr.f32.mxu0 0.0
  %1388 = vmatmul.mubr.f32.gmra.mxu0 %v927
  %v1389 = vpop.f32.mrf.mxu0
  %v1390 = vadd.f32 0.0, %v1389
  %v1391 = vpop.f32.mrf.mxu0
  %1392 = vmatprep.mubr.f32.mxu0 0.0
  %1393 = vmatmul.mubr.f32.gmra.mxu0 %v929
  %v1394 = vpop.f32.mrf.mxu0
  %v1395 = vadd.f32 0.0, %v1394
  %v1396 = vpop.f32.mrf.mxu0
  %1397 = vmatprep.mubr.f32.mxu0 0.0
  %1398 = vmatmul.mubr.f32.gmra.mxu0 %v931
  %v1399 = vpop.f32.mrf.mxu0
  %v1400 = vadd.f32 0.0, %v1399
  %v1401 = vpop.f32.mrf.mxu0
  %1402 = vmatprep.mubr.f32.mxu0 0.0
  %1403 = vmatmul.mubr.f32.gmra.mxu0 %v933
  %v1404 = vpop.f32.mrf.mxu0
  %v1405 = vadd.f32 0.0, %v1404
  %v1406 = vpop.f32.mrf.mxu0
  %1407 = vmatprep.mubr.f32.mxu0 0.0
  %1408 = vmatmul.mubr.f32.gmra.mxu0 %v935
  %v1409 = vpop.f32.mrf.mxu0
  %v1410 = vadd.f32 0.0, %v1409
  %v1411 = vpop.f32.mrf.mxu0
  %1412 = vmatprep.mubr.f32.mxu0 0.0
  %1413 = vmatmul.mubr.f32.gmra.mxu0 %v937
  %v1414 = vpop.f32.mrf.mxu0
  %v1415 = vadd.f32 0.0, %v1414
  %v1416 = vpop.f32.mrf.mxu0
  %1417 = vmatprep.mubr.f32.mxu0 0.0
  %1418 = vmatmul.mubr.f32.gmra.mxu0 %v939
  %v1419 = vpop.f32.mrf.mxu0
  %v1420 = vadd.f32 0.0, %v1419
  %v1421 = vpop.f32.mrf.mxu0
  %1422 = vmatprep.mubr.f32.mxu0 0.0
  %1423 = vmatmul.mubr.f32.gmra.mxu0 %v941
  %v1424 = vpop.f32.mrf.mxu0
  %v1425 = vadd.f32 0.0, %v1424
  %v1426 = vpop.f32.mrf.mxu0
  %1427 = vdwg.mxu0
  %v1441 = vcombine.high %v1365, %v1365
  %v1443 = vunpack.c.l.s4 1983009808
  %v1444 = vunpack.c.0.s8 %v1443
  %v1445 = vlaneseq
  %v1446 = vshrl.u32 %v1445, 7
  %v1447 = vsub.s32 %v1444, %v1446
  %v1448 = vrot.slane %v1365, %v1447
  %v1450 = vunpack.c.l.s4 1983009808
  %v1451 = vunpack.c.0.s8 %v1450
  %v1452 = vlaneseq
  %v1453 = vshrl.u32 %v1452, 7
  %v1454 = vsub.s32 %v1451, %v1453
  %v1455 = vrot.slane %v1441, %v1454
  %v1456 = vcombine.high %v1448, %v1448
  %v1457 = vcombine.high %v1455, %v1455
  %v1458 = vcombine.high %v1370, %v1370
  %v1460 = vunpack.c.l.s4 1983009808
  %v1461 = vunpack.c.0.s8 %v1460
  %v1462 = vlaneseq
  %v1463 = vshrl.u32 %v1462, 7
  %v1464 = vsub.s32 %v1461, %v1463
  %v1465 = vrot.slane %v1370, %v1464
  %v1467 = vunpack.c.l.s4 1983009808
  %v1468 = vunpack.c.0.s8 %v1467
  %v1469 = vlaneseq
  %v1470 = vshrl.u32 %v1469, 7
  %v1471 = vsub.s32 %v1468, %v1470
  %v1472 = vrot.slane %v1458, %v1471
  %v1473 = vcombine.high %v1465, %v1465
  %v1474 = vcombine.high %v1472, %v1472
  %v1475 = vcombine.high %v1375, %v1375
  %v1477 = vunpack.c.l.s4 1983009808
  %v1478 = vunpack.c.0.s8 %v1477
  %v1479 = vlaneseq
  %v1480 = vshrl.u32 %v1479, 7
  %v1481 = vsub.s32 %v1478, %v1480
  %v1482 = vrot.slane %v1375, %v1481
  %v1484 = vunpack.c.l.s4 1983009808
  %v1485 = vunpack.c.0.s8 %v1484
  %v1486 = vlaneseq
  %v1487 = vshrl.u32 %v1486, 7
  %v1488 = vsub.s32 %v1485, %v1487
  %v1489 = vrot.slane %v1475, %v1488
  %v1490 = vcombine.high %v1482, %v1482
  %v1491 = vcombine.high %v1489, %v1489
  %v1492 = vcombine.high %v1380, %v1380
  %v1494 = vunpack.c.l.s4 1983009808
  %v1495 = vunpack.c.0.s8 %v1494
  %v1496 = vlaneseq
  %v1497 = vshrl.u32 %v1496, 7
  %v1498 = vsub.s32 %v1495, %v1497
  %v1499 = vrot.slane %v1380, %v1498
  %v1501 = vunpack.c.l.s4 1983009808
  %v1502 = vunpack.c.0.s8 %v1501
  %v1503 = vlaneseq
  %v1504 = vshrl.u32 %v1503, 7
  %v1505 = vsub.s32 %v1502, %v1504
  %v1506 = vrot.slane %v1492, %v1505
  %v1507 = vcombine.high %v1499, %v1499
  %v1508 = vcombine.high %v1506, %v1506
  %v1509 = vcombine.high %v1385, %v1385
  %v1511 = vunpack.c.l.s4 1983009808
  %v1512 = vunpack.c.0.s8 %v1511
  %v1513 = vlaneseq
  %v1514 = vshrl.u32 %v1513, 7
  %v1515 = vsub.s32 %v1512, %v1514
  %v1516 = vrot.slane %v1385, %v1515
  %v1518 = vunpack.c.l.s4 1983009808
  %v1519 = vunpack.c.0.s8 %v1518
  %v1520 = vlaneseq
  %v1521 = vshrl.u32 %v1520, 7
  %v1522 = vsub.s32 %v1519, %v1521
  %v1523 = vrot.slane %v1509, %v1522
  %v1524 = vcombine.high %v1516, %v1516
  %v1525 = vcombine.high %v1523, %v1523
  %v1526 = vcombine.high %v1390, %v1390
  %v1528 = vunpack.c.l.s4 1983009808
  %v1529 = vunpack.c.0.s8 %v1528
  %v1530 = vlaneseq
  %v1531 = vshrl.u32 %v1530, 7
  %v1532 = vsub.s32 %v1529, %v1531
  %v1533 = vrot.slane %v1390, %v1532
  %v1535 = vunpack.c.l.s4 1983009808
  %v1536 = vunpack.c.0.s8 %v1535
  %v1537 = vlaneseq
  %v1538 = vshrl.u32 %v1537, 7
  %v1539 = vsub.s32 %v1536, %v1538
  %v1540 = vrot.slane %v1526, %v1539
  %v1541 = vcombine.high %v1533, %v1533
  %v1542 = vcombine.high %v1540, %v1540
  %v1543 = vcombine.high %v1395, %v1395
  %v1545 = vunpack.c.l.s4 1983009808
  %v1546 = vunpack.c.0.s8 %v1545
  %v1547 = vlaneseq
  %v1548 = vshrl.u32 %v1547, 7
  %v1549 = vsub.s32 %v1546, %v1548
  %v1550 = vrot.slane %v1395, %v1549
  %v1552 = vunpack.c.l.s4 1983009808
  %v1553 = vunpack.c.0.s8 %v1552
  %v1554 = vlaneseq
  %v1555 = vshrl.u32 %v1554, 7
  %v1556 = vsub.s32 %v1553, %v1555
  %v1557 = vrot.slane %v1543, %v1556
  %v1558 = vcombine.high %v1550, %v1550
  %v1559 = vcombine.high %v1557, %v1557
  %v1560 = vcombine.high %v1400, %v1400
  %v1562 = vunpack.c.l.s4 1983009808
  %v1563 = vunpack.c.0.s8 %v1562
  %v1564 = vlaneseq
  %v1565 = vshrl.u32 %v1564, 7
  %v1566 = vsub.s32 %v1563, %v1565
  %v1567 = vrot.slane %v1400, %v1566
  %v1569 = vunpack.c.l.s4 1983009808
  %v1570 = vunpack.c.0.s8 %v1569
  %v1571 = vlaneseq
  %v1572 = vshrl.u32 %v1571, 7
  %v1573 = vsub.s32 %v1570, %v1572
  %v1574 = vrot.slane %v1560, %v1573
  %v1575 = vcombine.high %v1567, %v1567
  %v1576 = vcombine.high %v1574, %v1574
  %v1577 = vcombine.high %v1405, %v1405
  %v1579 = vunpack.c.l.s4 1983009808
  %v1580 = vunpack.c.0.s8 %v1579
  %v1581 = vlaneseq
  %v1582 = vshrl.u32 %v1581, 7
  %v1583 = vsub.s32 %v1580, %v1582
  %v1584 = vrot.slane %v1405, %v1583
  %v1586 = vunpack.c.l.s4 1983009808
  %v1587 = vunpack.c.0.s8 %v1586
  %v1588 = vlaneseq
  %v1589 = vshrl.u32 %v1588, 7
  %v1590 = vsub.s32 %v1587, %v1589
  %v1591 = vrot.slane %v1577, %v1590
  %v1592 = vcombine.high %v1584, %v1584
  %v1593 = vcombine.high %v1591, %v1591
  %v1594 = vcombine.high %v1410, %v1410
  %v1596 = vunpack.c.l.s4 1983009808
  %v1597 = vunpack.c.0.s8 %v1596
  %v1598 = vlaneseq
  %v1599 = vshrl.u32 %v1598, 7
  %v1600 = vsub.s32 %v1597, %v1599
  %v1601 = vrot.slane %v1410, %v1600
  %v1603 = vunpack.c.l.s4 1983009808
  %v1604 = vunpack.c.0.s8 %v1603
  %v1605 = vlaneseq
  %v1606 = vshrl.u32 %v1605, 7
  %v1607 = vsub.s32 %v1604, %v1606
  %v1608 = vrot.slane %v1594, %v1607
  %v1609 = vcombine.high %v1601, %v1601
  %v1610 = vcombine.high %v1608, %v1608
  %v1611 = vcombine.high %v1415, %v1415
  %v1613 = vunpack.c.l.s4 1983009808
  %v1614 = vunpack.c.0.s8 %v1613
  %v1615 = vlaneseq
  %v1616 = vshrl.u32 %v1615, 7
  %v1617 = vsub.s32 %v1614, %v1616
  %v1618 = vrot.slane %v1415, %v1617
  %v1620 = vunpack.c.l.s4 1983009808
  %v1621 = vunpack.c.0.s8 %v1620
  %v1622 = vlaneseq
  %v1623 = vshrl.u32 %v1622, 7
  %v1624 = vsub.s32 %v1621, %v1623
  %v1625 = vrot.slane %v1611, %v1624
  %v1626 = vcombine.high %v1618, %v1618
  %v1627 = vcombine.high %v1625, %v1625
  %v1628 = vcombine.high %v1420, %v1420
  %v1630 = vunpack.c.l.s4 1983009808
  %v1631 = vunpack.c.0.s8 %v1630
  %v1632 = vlaneseq
  %v1633 = vshrl.u32 %v1632, 7
  %v1634 = vsub.s32 %v1631, %v1633
  %v1635 = vrot.slane %v1420, %v1634
  %v1637 = vunpack.c.l.s4 1983009808
  %v1638 = vunpack.c.0.s8 %v1637
  %v1639 = vlaneseq
  %v1640 = vshrl.u32 %v1639, 7
  %v1641 = vsub.s32 %v1638, %v1640
  %v1642 = vrot.slane %v1628, %v1641
  %v1643 = vcombine.high %v1635, %v1635
  %v1644 = vcombine.high %v1642, %v1642
  %v1646 = vunpack.c.l.s4 1983009808
  %v1647 = vunpack.c.0.s8 %v1646
  %v1648 = vlaneseq
  %v1649 = vshrl.u32 %v1648, 7
  %v1650 = vsub.s32 %v1647, %v1649
  %v1651 = vrot.slane %v1425, %v1650
  %v1652 = vcombine.high %v1651, %v1651
  %v1653 = vcombine.low %v412, %v464
  %v1654 = vcombine.low %v417, %v465
  %v1655 = vcombine.low %v422, %v466
  %v1656 = vcombine.low %v427, %v467
  %v1657 = vcombine.low %v1093, %v1101
  %v1658 = vcombine.low %v1100, %v1102
  %v1660 = vunpack.c.l.s4 1983009808
  %v1661 = vunpack.c.0.s8 %v1660
  %v1662 = vlaneseq
  %v1663 = vshrl.u32 %v1662, 7
  %v1664 = vsub.s32 %v1661, %v1663
  %v1665 = vrot.slane %v1657, %v1664
  %v1667 = vunpack.c.l.s4 1983009808
  %v1668 = vunpack.c.0.s8 %v1667
  %v1669 = vlaneseq
  %v1670 = vshrl.u32 %v1669, 7
  %v1671 = vsub.s32 %v1668, %v1670
  %v1672 = vrot.slane %v1658, %v1671
  %v1673 = vcombine.low %v1665, %v1672
  %v1674 = vcombine.low %v1110, %v1118
  %v1675 = vcombine.low %v1117, %v1119
  %v1677 = vunpack.c.l.s4 1983009808
  %v1678 = vunpack.c.0.s8 %v1677
  %v1679 = vlaneseq
  %v1680 = vshrl.u32 %v1679, 7
  %v1681 = vsub.s32 %v1678, %v1680
  %v1682 = vrot.slane %v1674, %v1681
  %v1684 = vunpack.c.l.s4 1983009808
  %v1685 = vunpack.c.0.s8 %v1684
  %v1686 = vlaneseq
  %v1687 = vshrl.u32 %v1686, 7
  %v1688 = vsub.s32 %v1685, %v1687
  %v1689 = vrot.slane %v1675, %v1688
  %v1690 = vcombine.low %v1682, %v1689
  %v1691 = vcombine.low %v1127, %v1135
  %v1692 = vcombine.low %v1134, %v1136
  %v1694 = vunpack.c.l.s4 1983009808
  %v1695 = vunpack.c.0.s8 %v1694
  %v1696 = vlaneseq
  %v1697 = vshrl.u32 %v1696, 7
  %v1698 = vsub.s32 %v1695, %v1697
  %v1699 = vrot.slane %v1691, %v1698
  %v1701 = vunpack.c.l.s4 1983009808
  %v1702 = vunpack.c.0.s8 %v1701
  %v1703 = vlaneseq
  %v1704 = vshrl.u32 %v1703, 7
  %v1705 = vsub.s32 %v1702, %v1704
  %v1706 = vrot.slane %v1692, %v1705
  %v1707 = vcombine.low %v1699, %v1706
  %v1708 = vcombine.low %v1144, %v1152
  %v1709 = vcombine.low %v1151, %v1153
  %v1711 = vunpack.c.l.s4 1983009808
  %v1712 = vunpack.c.0.s8 %v1711
  %v1713 = vlaneseq
  %v1714 = vshrl.u32 %v1713, 7
  %v1715 = vsub.s32 %v1712, %v1714
  %v1716 = vrot.slane %v1708, %v1715
  %v1718 = vunpack.c.l.s4 1983009808
  %v1719 = vunpack.c.0.s8 %v1718
  %v1720 = vlaneseq
  %v1721 = vshrl.u32 %v1720, 7
  %v1722 = vsub.s32 %v1719, %v1721
  %v1723 = vrot.slane %v1709, %v1722
  %v1724 = vcombine.low %v1716, %v1723
  %v1725 = vcombine.low %v1161, %v1169
  %v1726 = vcombine.low %v1168, %v1170
  %v1728 = vunpack.c.l.s4 1983009808
  %v1729 = vunpack.c.0.s8 %v1728
  %v1730 = vlaneseq
  %v1731 = vshrl.u32 %v1730, 7
  %v1732 = vsub.s32 %v1729, %v1731
  %v1733 = vrot.slane %v1725, %v1732
  %v1735 = vunpack.c.l.s4 1983009808
  %v1736 = vunpack.c.0.s8 %v1735
  %v1737 = vlaneseq
  %v1738 = vshrl.u32 %v1737, 7
  %v1739 = vsub.s32 %v1736, %v1738
  %v1740 = vrot.slane %v1726, %v1739
  %v1741 = vcombine.low %v1733, %v1740
  %v1742 = vcombine.low %v1178, %v1186
  %v1743 = vcombine.low %v1185, %v1187
  %v1745 = vunpack.c.l.s4 1983009808
  %v1746 = vunpack.c.0.s8 %v1745
  %v1747 = vlaneseq
  %v1748 = vshrl.u32 %v1747, 7
  %v1749 = vsub.s32 %v1746, %v1748
  %v1750 = vrot.slane %v1742, %v1749
  %v1752 = vunpack.c.l.s4 1983009808
  %v1753 = vunpack.c.0.s8 %v1752
  %v1754 = vlaneseq
  %v1755 = vshrl.u32 %v1754, 7
  %v1756 = vsub.s32 %v1753, %v1755
  %v1757 = vrot.slane %v1743, %v1756
  %v1758 = vcombine.low %v1750, %v1757
  %v1760 = vunpack.c.l.s4 1983009808
  %v1761 = vunpack.c.0.s8 %v1760
  %v1762 = vlaneseq
  %v1763 = vshrl.u32 %v1762, 7
  %v1764 = vsub.s32 %v1761, %v1763
  %v1765 = vrot.slane %v1195, %v1764
  %vm1766 = vcmask 130048
  %v1767 = vsel %vm1766, %v1653, 0
  %v1769 = vsel %vm1766, %v1654, 0
  %v1771 = vsel %vm1766, %v1655, 0
  %v1773 = vsel %vm1766, %v1656, 0
  %v1775 = vsel %vm1766, %v432, 0
  %v1777 = vsel %vm1766, %v1673, 0
  %v1779 = vsel %vm1766, %v1690, 0
  %v1781 = vsel %vm1766, %v1707, 0
  %v1783 = vsel %vm1766, %v1724, 0
  %v1785 = vsel %vm1766, %v1741, 0
  %v1787 = vsel %vm1766, %v1758, 0
  %v1789 = vsel %vm1766, %v1765, 0
  %1791 = vmatprep.subr.mxu0 0.0
  %1792 = vmatpush1.xpose.msra.mxu0 0.0
  %1793 = vmatprep.subr.mxu0 0.0
  %1794 = vmatpush1.xpose.msra.mxu0 0.0
  %1795 = vmatprep.subr.mxu0 0.0
  %1796 = vmatpush1.xpose.msra.mxu0 0.0
  %1797 = vmatprep.subr.mxu0 0.0
  %1798 = vmatpush1.xpose.msra.mxu0 0.0
  %1799 = vmatprep.subr.mxu0 0.0
  %1800 = vmatpush1.xpose.msra.mxu0 0.0
  %1801 = vmatprep.subr.mxu0 0.0
  %1802 = vmatpush1.xpose.msra.mxu0 0.0
  %1803 = vmatprep.subr.mxu0 0.0
  %1804 = vmatpush1.xpose.msra.mxu0 0.0
  %1805 = vmatprep.subr.mxu0 0.0
  %1806 = vmatpush1.xpose.msra.mxu0 0.0
  %1807 = vmatprep.subr.mxu0 0.0
  %1808 = vmatpush1.xpose.msra.mxu0 0.0
  %1809 = vmatprep.subr.mxu0 0.0
  %1810 = vmatpush1.xpose.msra.mxu0 %v1789
  %1811 = vmatprep.subr.mxu0 0.0
  %1812 = vmatpush1.xpose.msra.mxu0 %v1787
  %1813 = vmatprep.subr.mxu0 0.0
  %1814 = vmatpush1.xpose.msra.mxu0 %v1785
  %1815 = vmatprep.subr.mxu0 0.0
  %1816 = vmatpush1.xpose.msra.mxu0 %v1783
  %1817 = vmatprep.subr.mxu0 0.0
  %1818 = vmatpush1.xpose.msra.mxu0 %v1781
  %1819 = vmatprep.subr.mxu0 0.0
  %1820 = vmatpush1.xpose.msra.mxu0 %v1779
  %1821 = vmatprep.subr.mxu0 0.0
  %1822 = vmatpush1.xpose.msra.mxu0 %v1777
  %1823 = vmatprep.subr.mxu0 0.0
  %1824 = vmatpush2.xpose.msra.mxu0 0.0
  %1825 = vmatprep.subr.mxu0 0.0
  %1826 = vmatpush2.xpose.msra.mxu0 0.0
  %1827 = vmatprep.subr.mxu0 0.0
  %1828 = vmatpush2.xpose.msra.mxu0 0.0
  %1829 = vmatprep.subr.mxu0 0.0
  %1830 = vmatpush2.xpose.msra.mxu0 0.0
  %1831 = vmatprep.subr.mxu0 0.0
  %1832 = vmatpush2.xpose.msra.mxu0 0.0
  %1833 = vmatprep.subr.mxu0 0.0
  %1834 = vmatpush2.xpose.msra.mxu0 0.0
  %1835 = vmatprep.subr.mxu0 0.0
  %1836 = vmatpush2.xpose.msra.mxu0 0.0
  %1837 = vmatprep.subr.mxu0 0.0
  %1838 = vmatpush2.xpose.msra.mxu0 0.0
  %1839 = vmatprep.subr.mxu0 0.0
  %1840 = vmatpush2.xpose.msra.mxu0 0.0
  %1841 = vmatprep.subr.mxu0 0.0
  %1842 = vmatpush2.xpose.msra.mxu0 0.0
  %1843 = vmatprep.subr.mxu0 0.0
  %1844 = vmatpush2.xpose.msra.mxu0 0.0
  %1845 = vmatprep.subr.mxu0 0.0
  %1846 = vmatpush2.xpose.msra.mxu0 0.0
  %1847 = vmatprep.subr.mxu0 0.0
  %1848 = vmatpush2.xpose.msra.mxu0 0.0
  %1849 = vmatprep.subr.mxu0 0.0
  %1850 = vmatpush2.xpose.msra.mxu0 0.0
  %1851 = vmatprep.subr.mxu0 0.0
  %1852 = vmatpush2.xpose.msra.mxu0 0.0
  %1853 = vmatprep.subr.mxu0 0.0
  %1854 = vmatpush2.xpose.msra.mxu0 0.0
  %1855 = vmatprep.mubr.f32.mxu0 0.0
  %1856 = vmatmul.mubr.f32.gmra.mxu0 %v1767
  %v1857 = vpop.f32.mrf.mxu0
  %v1858 = vadd.f32 0.0, %v1857
  %v1859 = vpop.f32.mrf.mxu0
  %1860 = vmatprep.mubr.f32.mxu0 0.0
  %1861 = vmatmul.mubr.f32.gmra.mxu0 %v1769
  %v1862 = vpop.f32.mrf.mxu0
  %v1863 = vadd.f32 0.0, %v1862
  %v1864 = vpop.f32.mrf.mxu0
  %1865 = vmatprep.mubr.f32.mxu0 0.0
  %1866 = vmatmul.mubr.f32.gmra.mxu0 %v1771
  %v1867 = vpop.f32.mrf.mxu0
  %v1868 = vadd.f32 0.0, %v1867
  %v1869 = vpop.f32.mrf.mxu0
  %1870 = vmatprep.mubr.f32.mxu0 0.0
  %1871 = vmatmul.mubr.f32.gmra.mxu0 %v1773
  %v1872 = vpop.f32.mrf.mxu0
  %v1873 = vadd.f32 0.0, %v1872
  %v1874 = vpop.f32.mrf.mxu0
  %1875 = vmatprep.mubr.f32.mxu0 0.0
  %1876 = vmatmul.mubr.f32.gmra.mxu0 %v1775
  %v1877 = vpop.f32.mrf.mxu0
  %v1878 = vadd.f32 0.0, %v1877
  %v1879 = vpop.f32.mrf.mxu0
  %1880 = vdwg.mxu0
  %v1881 = vcombine.low %v468, %v437
  %v1882 = vcombine.low %v469, %v442
  %v1883 = vcombine.low %v470, %v447
  %v1884 = vcombine.low %v471, %v452
  %v1885 = vcombine.low %v1203, %v1202
  %v1886 = vcombine.low %v1204, %v1212
  %v1888 = vunpack.c.l.s4 1983009808
  %v1889 = vunpack.c.0.s8 %v1888
  %v1890 = vlaneseq
  %v1891 = vshrl.u32 %v1890, 7
  %v1892 = vsub.s32 %v1889, %v1891
  %v1893 = vrot.slane %v1885, %v1892
  %v1895 = vunpack.c.l.s4 1983009808
  %v1896 = vunpack.c.0.s8 %v1895
  %v1897 = vlaneseq
  %v1898 = vshrl.u32 %v1897, 7
  %v1899 = vsub.s32 %v1896, %v1898
  %v1900 = vrot.slane %v1886, %v1899
  %v1901 = vcombine.low %v1893, %v1900
  %v1902 = vcombine.low %v1220, %v1219
  %v1903 = vcombine.low %v1221, %v1229
  %v1905 = vunpack.c.l.s4 1983009808
  %v1906 = vunpack.c.0.s8 %v1905
  %v1907 = vlaneseq
  %v1908 = vshrl.u32 %v1907, 7
  %v1909 = vsub.s32 %v1906, %v1908
  %v1910 = vrot.slane %v1902, %v1909
  %v1912 = vunpack.c.l.s4 1983009808
  %v1913 = vunpack.c.0.s8 %v1912
  %v1914 = vlaneseq
  %v1915 = vshrl.u32 %v1914, 7
  %v1916 = vsub.s32 %v1913, %v1915
  %v1917 = vrot.slane %v1903, %v1916
  %v1918 = vcombine.low %v1910, %v1917
  %v1919 = vcombine.low %v1237, %v1236
  %v1920 = vcombine.low %v1238, %v1246
  %v1922 = vunpack.c.l.s4 1983009808
  %v1923 = vunpack.c.0.s8 %v1922
  %v1924 = vlaneseq
  %v1925 = vshrl.u32 %v1924, 7
  %v1926 = vsub.s32 %v1923, %v1925
  %v1927 = vrot.slane %v1919, %v1926
  %v1929 = vunpack.c.l.s4 1983009808
  %v1930 = vunpack.c.0.s8 %v1929
  %v1931 = vlaneseq
  %v1932 = vshrl.u32 %v1931, 7
  %v1933 = vsub.s32 %v1930, %v1932
  %v1934 = vrot.slane %v1920, %v1933
  %v1935 = vcombine.low %v1927, %v1934
  %v1936 = vcombine.low %v1254, %v1253
  %v1937 = vcombine.low %v1255, %v1263
  %v1939 = vunpack.c.l.s4 1983009808
  %v1940 = vunpack.c.0.s8 %v1939
  %v1941 = vlaneseq
  %v1942 = vshrl.u32 %v1941, 7
  %v1943 = vsub.s32 %v1940, %v1942
  %v1944 = vrot.slane %v1936, %v1943
  %v1946 = vunpack.c.l.s4 1983009808
  %v1947 = vunpack.c.0.s8 %v1946
  %v1948 = vlaneseq
  %v1949 = vshrl.u32 %v1948, 7
  %v1950 = vsub.s32 %v1947, %v1949
  %v1951 = vrot.slane %v1937, %v1950
  %v1952 = vcombine.low %v1944, %v1951
  %v1953 = vcombine.low %v1271, %v1270
  %v1954 = vcombine.low %v1272, %v1280
  %v1956 = vunpack.c.l.s4 1983009808
  %v1957 = vunpack.c.0.s8 %v1956
  %v1958 = vlaneseq
  %v1959 = vshrl.u32 %v1958, 7
  %v1960 = vsub.s32 %v1957, %v1959
  %v1961 = vrot.slane %v1953, %v1960
  %v1963 = vunpack.c.l.s4 1983009808
  %v1964 = vunpack.c.0.s8 %v1963
  %v1965 = vlaneseq
  %v1966 = vshrl.u32 %v1965, 7
  %v1967 = vsub.s32 %v1964, %v1966
  %v1968 = vrot.slane %v1954, %v1967
  %v1969 = vcombine.low %v1961, %v1968
  %v1970 = vcombine.low %v1288, %v1287
  %v1971 = vcombine.low %v1289, %v1296
  %v1973 = vunpack.c.l.s4 1983009808
  %v1974 = vunpack.c.0.s8 %v1973
  %v1975 = vlaneseq
  %v1976 = vshrl.u32 %v1975, 7
  %v1977 = vsub.s32 %v1974, %v1976
  %v1978 = vrot.slane %v1970, %v1977
  %v1980 = vunpack.c.l.s4 1983009808
  %v1981 = vunpack.c.0.s8 %v1980
  %v1982 = vlaneseq
  %v1983 = vshrl.u32 %v1982, 7
  %v1984 = vsub.s32 %v1981, %v1983
  %v1985 = vrot.slane %v1971, %v1984
  %v1986 = vcombine.low %v1978, %v1985
  %v1988 = vunpack.c.l.s4 1983009808
  %v1989 = vunpack.c.0.s8 %v1988
  %v1990 = vlaneseq
  %v1991 = vshrl.u32 %v1990, 7
  %v1992 = vsub.s32 %v1989, %v1991
  %v1993 = vrot.slane %v1297, %v1992
  %v1994 = vsel %vm1766, %v1881, 0
  %v1996 = vsel %vm1766, %v1882, 0
  %v1998 = vsel %vm1766, %v1883, 0
  %v2000 = vsel %vm1766, %v1884, 0
  %v2002 = vsel %vm1766, %v472, 0
  %v2004 = vsel %vm1766, %v1901, 0
  %v2006 = vsel %vm1766, %v1918, 0
  %v2008 = vsel %vm1766, %v1935, 0
  %v2010 = vsel %vm1766, %v1952, 0
  %v2012 = vsel %vm1766, %v1969, 0
  %v2014 = vsel %vm1766, %v1986, 0
  %v2016 = vsel %vm1766, %v1993, 0
  %2018 = vmatprep.subr.mxu0 0.0
  %2019 = vmatpush1.xpose.msra.mxu0 0.0
  %2020 = vmatprep.subr.mxu0 0.0
  %2021 = vmatpush1.xpose.msra.mxu0 0.0
  %2022 = vmatprep.subr.mxu0 0.0
  %2023 = vmatpush1.xpose.msra.mxu0 0.0
  %2024 = vmatprep.subr.mxu0 0.0
  %2025 = vmatpush1.xpose.msra.mxu0 0.0
  %2026 = vmatprep.subr.mxu0 0.0
  %2027 = vmatpush1.xpose.msra.mxu0 0.0
  %2028 = vmatprep.subr.mxu0 0.0
  %2029 = vmatpush1.xpose.msra.mxu0 0.0
  %2030 = vmatprep.subr.mxu0 0.0
  %2031 = vmatpush1.xpose.msra.mxu0 0.0
  %2032 = vmatprep.subr.mxu0 0.0
  %2033 = vmatpush1.xpose.msra.mxu0 0.0
  %2034 = vmatprep.subr.mxu0 0.0
  %2035 = vmatpush1.xpose.msra.mxu0 0.0
  %2036 = vmatprep.subr.mxu0 0.0
  %2037 = vmatpush1.xpose.msra.mxu0 %v2016
  %2038 = vmatprep.subr.mxu0 0.0
  %2039 = vmatpush1.xpose.msra.mxu0 %v2014
  %2040 = vmatprep.subr.mxu0 0.0
  %2041 = vmatpush1.xpose.msra.mxu0 %v2012
  %2042 = vmatprep.subr.mxu0 0.0
  %2043 = vmatpush1.xpose.msra.mxu0 %v2010
  %2044 = vmatprep.subr.mxu0 0.0
  %2045 = vmatpush1.xpose.msra.mxu0 %v2008
  %2046 = vmatprep.subr.mxu0 0.0
  %2047 = vmatpush1.xpose.msra.mxu0 %v2006
  %2048 = vmatprep.subr.mxu0 0.0
  %2049 = vmatpush1.xpose.msra.mxu0 %v2004
  %2050 = vmatprep.subr.mxu0 0.0
  %2051 = vmatpush2.xpose.msra.mxu0 0.0
  %2052 = vmatprep.subr.mxu0 0.0
  %2053 = vmatpush2.xpose.msra.mxu0 0.0
  %2054 = vmatprep.subr.mxu0 0.0
  %2055 = vmatpush2.xpose.msra.mxu0 0.0
  %2056 = vmatprep.subr.mxu0 0.0
  %2057 = vmatpush2.xpose.msra.mxu0 0.0
  %2058 = vmatprep.subr.mxu0 0.0
  %2059 = vmatpush2.xpose.msra.mxu0 0.0
  %2060 = vmatprep.subr.mxu0 0.0
  %2061 = vmatpush2.xpose.msra.mxu0 0.0
  %2062 = vmatprep.subr.mxu0 0.0
  %2063 = vmatpush2.xpose.msra.mxu0 0.0
  %2064 = vmatprep.subr.mxu0 0.0
  %2065 = vmatpush2.xpose.msra.mxu0 0.0
  %2066 = vmatprep.subr.mxu0 0.0
  %2067 = vmatpush2.xpose.msra.mxu0 0.0
  %2068 = vmatprep.subr.mxu0 0.0
  %2069 = vmatpush2.xpose.msra.mxu0 0.0
  %2070 = vmatprep.subr.mxu0 0.0
  %2071 = vmatpush2.xpose.msra.mxu0 0.0
  %2072 = vmatprep.subr.mxu0 0.0
  %2073 = vmatpush2.xpose.msra.mxu0 0.0
  %2074 = vmatprep.subr.mxu0 0.0
  %2075 = vmatpush2.xpose.msra.mxu0 0.0
  %2076 = vmatprep.subr.mxu0 0.0
  %2077 = vmatpush2.xpose.msra.mxu0 0.0
  %2078 = vmatprep.subr.mxu0 0.0
  %2079 = vmatpush2.xpose.msra.mxu0 0.0
  %2080 = vmatprep.subr.mxu0 0.0
  %2081 = vmatpush2.xpose.msra.mxu0 0.0
  %2082 = vmatprep.mubr.f32.mxu0 0.0
  %2083 = vmatmul.mubr.f32.gmra.mxu0 %v1994
  %v2084 = vpop.f32.mrf.mxu0
  %v2085 = vadd.f32 0.0, %v2084
  %v2086 = vpop.f32.mrf.mxu0
  %2087 = vmatprep.mubr.f32.mxu0 0.0
  %2088 = vmatmul.mubr.f32.gmra.mxu0 %v1996
  %v2089 = vpop.f32.mrf.mxu0
  %v2090 = vadd.f32 0.0, %v2089
  %v2091 = vpop.f32.mrf.mxu0
  %2092 = vmatprep.mubr.f32.mxu0 0.0
  %2093 = vmatmul.mubr.f32.gmra.mxu0 %v1998
  %v2094 = vpop.f32.mrf.mxu0
  %v2095 = vadd.f32 0.0, %v2094
  %v2096 = vpop.f32.mrf.mxu0
  %2097 = vmatprep.mubr.f32.mxu0 0.0
  %2098 = vmatmul.mubr.f32.gmra.mxu0 %v2000
  %v2099 = vpop.f32.mrf.mxu0
  %v2100 = vadd.f32 0.0, %v2099
  %v2101 = vpop.f32.mrf.mxu0
  %2102 = vmatprep.mubr.f32.mxu0 0.0
  %2103 = vmatmul.mubr.f32.gmra.mxu0 %v2002
  %v2104 = vpop.f32.mrf.mxu0
  %v2105 = vadd.f32 0.0, %v2104
  %v2106 = vpop.f32.mrf.mxu0
  %2107 = vdwg.mxu0
  %vm2108 = vcmask 408576
  %v2109 = vsel %vm2108, %v1858, -inf
  %2110 = vmax.xlane.f32.xlu0 %v2109
  %v2111 = vpop.xlane.xlu0 %2110
  %v2112 = vsel %vm2108, %v1863, -inf
  %2113 = vmax.xlane.f32.xlu0 %v2112
  %v2114 = vpop.xlane.xlu0 %2113
  %v2115 = vsel %vm2108, %v1868, -inf
  %2116 = vmax.xlane.f32.xlu0 %v2115
  %v2117 = vpop.xlane.xlu0 %2116
  %v2118 = vsel %vm2108, %v1873, -inf
  %2119 = vmax.xlane.f32.xlu0 %v2118
  %v2120 = vpop.xlane.xlu0 %2119
  %vm2121 = vcmask 404480
  %v2122 = vsel %vm2121, %v1878, -inf
  %2123 = vmax.xlane.f32.xlu0 %v2122
  %v2124 = vpop.xlane.xlu0 %2123
  %v2125 = vsel %vm2108, %v2085, -inf
  %2126 = vmax.xlane.f32.xlu0 %v2125
  %v2127 = vpop.xlane.xlu0 %2126
  %v2128 = vsel %vm2108, %v2090, -inf
  %2129 = vmax.xlane.f32.xlu0 %v2128
  %v2130 = vpop.xlane.xlu0 %2129
  %v2131 = vsel %vm2108, %v2095, -inf
  %2132 = vmax.xlane.f32.xlu0 %v2131
  %v2133 = vpop.xlane.xlu0 %2132
  %v2134 = vsel %vm2108, %v2100, -inf
  %2135 = vmax.xlane.f32.xlu0 %v2134
  %v2136 = vpop.xlane.xlu0 %2135
  %v2137 = vsel %vm2121, %v2105, -inf
  %2138 = vmax.xlane.f32.xlu0 %v2137
  %v2139 = vpop.xlane.xlu0 %2138
  %v2140 = vsub.f32 %v1858, %v2111
  %v2141 = vsub.f32 %v1863, %v2114
  %v2142 = vsub.f32 %v1868, %v2117
  %v2143 = vsub.f32 %v1873, %v2120
  %v2144 = vsub.f32 %v1878, %v2124
  %v2145 = vsub.f32 %v2085, %v2127
  %v2146 = vsub.f32 %v2090, %v2130
  %v2147 = vsub.f32 %v2095, %v2133
  %v2148 = vsub.f32 %v2100, %v2136
  %v2149 = vsub.f32 %v2105, %v2139
  %v2150 = vmul.f32 %v2140, 1.442695
  %v2151 = vpow.pop %v2150
  %v2152 = vmul.f32 %v2141, 1.442695
  %v2153 = vpow.pop %v2152
  %v2154 = vmul.f32 %v2142, 1.442695
  %v2155 = vpow.pop %v2154
  %v2156 = vmul.f32 %v2143, 1.442695
  %v2157 = vpow.pop %v2156
  %v2158 = vmul.f32 %v2144, 1.442695
  %v2159 = vpow.pop %v2158
  %v2160 = vmul.f32 %v2145, 1.442695
  %v2161 = vpow.pop %v2160
  %v2162 = vmul.f32 %v2146, 1.442695
  %v2163 = vpow.pop %v2162
  %v2164 = vmul.f32 %v2147, 1.442695
  %v2165 = vpow.pop %v2164
  %v2166 = vmul.f32 %v2148, 1.442695
  %v2167 = vpow.pop %v2166
  %v2168 = vmul.f32 %v2149, 1.442695
  %v2169 = vpow.pop %v2168
  %v2170 = vsel %vm2108, %v2151, 0.0
  %2171 = vadd.xlane.f32.xlu0 %v2170
  %v2172 = vpop.xlane.xlu0 %2171
  %v2173 = vsel %vm2108, %v2153, 0.0
  %2174 = vadd.xlane.f32.xlu0 %v2173
  %v2175 = vpop.xlane.xlu0 %2174
  %v2176 = vsel %vm2108, %v2155, 0.0
  %2177 = vadd.xlane.f32.xlu0 %v2176
  %v2178 = vpop.xlane.xlu0 %2177
  %v2179 = vsel %vm2108, %v2157, 0.0
  %2180 = vadd.xlane.f32.xlu0 %v2179
  %v2181 = vpop.xlane.xlu0 %2180
  %v2182 = vsel %vm2121, %v2159, 0.0
  %2183 = vadd.xlane.f32.xlu0 %v2182
  %v2184 = vpop.xlane.xlu0 %2183
  %v2185 = vsel %vm2108, %v2161, 0.0
  %2186 = vadd.xlane.f32.xlu0 %v2185
  %v2187 = vpop.xlane.xlu0 %2186
  %v2188 = vsel %vm2108, %v2163, 0.0
  %2189 = vadd.xlane.f32.xlu0 %v2188
  %v2190 = vpop.xlane.xlu0 %2189
  %v2191 = vsel %vm2108, %v2165, 0.0
  %2192 = vadd.xlane.f32.xlu0 %v2191
  %v2193 = vpop.xlane.xlu0 %2192
  %v2194 = vsel %vm2108, %v2167, 0.0
  %2195 = vadd.xlane.f32.xlu0 %v2194
  %v2196 = vpop.xlane.xlu0 %2195
  %v2197 = vsel %vm2121, %v2169, 0.0
  %2198 = vadd.xlane.f32.xlu0 %v2197
  %v2199 = vpop.xlane.xlu0 %2198
  %v2200 = vrcp.pop %v2172
  %v2201 = vrcp.pop %v2175
  %v2202 = vrcp.pop %v2178
  %v2203 = vrcp.pop %v2181
  %v2204 = vrcp.pop %v2184
  %v2205 = vrcp.pop %v2187
  %v2206 = vrcp.pop %v2190
  %v2207 = vrcp.pop %v2193
  %v2208 = vrcp.pop %v2196
  %v2209 = vrcp.pop %v2199
  %v2210 = vmul.f32 %v2151, %v2200
  %v2211 = vmul.f32 %v2153, %v2201
  %v2212 = vmul.f32 %v2155, %v2202
  %v2213 = vmul.f32 %v2157, %v2203
  %v2214 = vmul.f32 %v2159, %v2204
  %v2215 = vmul.f32 %v2161, %v2205
  %v2216 = vmul.f32 %v2163, %v2206
  %v2217 = vmul.f32 %v2165, %v2207
  %v2218 = vmul.f32 %v2167, %v2208
  %v2219 = vmul.f32 %v2169, %v2209
  %v2220 = vcombine.low %v1448, %v1456
  %v2221 = vcombine.low %v1455, %v1457
  %v2223 = vunpack.c.l.s4 1983009808
  %v2224 = vunpack.c.0.s8 %v2223
  %v2225 = vlaneseq
  %v2226 = vshrl.u32 %v2225, 7
  %v2227 = vsub.s32 %v2224, %v2226
  %v2228 = vrot.slane %v2220, %v2227
  %v2230 = vunpack.c.l.s4 1983009808
  %v2231 = vunpack.c.0.s8 %v2230
  %v2232 = vlaneseq
  %v2233 = vshrl.u32 %v2232, 7
  %v2234 = vsub.s32 %v2231, %v2233
  %v2235 = vrot.slane %v2221, %v2234
  %v2236 = vcombine.low %v2228, %v2235
  %v2237 = vcombine.low %v1465, %v1473
  %v2238 = vcombine.low %v1472, %v1474
  %v2240 = vunpack.c.l.s4 1983009808
  %v2241 = vunpack.c.0.s8 %v2240
  %v2242 = vlaneseq
  %v2243 = vshrl.u32 %v2242, 7
  %v2244 = vsub.s32 %v2241, %v2243
  %v2245 = vrot.slane %v2237, %v2244
  %v2247 = vunpack.c.l.s4 1983009808
  %v2248 = vunpack.c.0.s8 %v2247
  %v2249 = vlaneseq
  %v2250 = vshrl.u32 %v2249, 7
  %v2251 = vsub.s32 %v2248, %v2250
  %v2252 = vrot.slane %v2238, %v2251
  %v2253 = vcombine.low %v2245, %v2252
  %v2254 = vcombine.low %v1482, %v1490
  %v2255 = vcombine.low %v1489, %v1491
  %v2257 = vunpack.c.l.s4 1983009808
  %v2258 = vunpack.c.0.s8 %v2257
  %v2259 = vlaneseq
  %v2260 = vshrl.u32 %v2259, 7
  %v2261 = vsub.s32 %v2258, %v2260
  %v2262 = vrot.slane %v2254, %v2261
  %v2264 = vunpack.c.l.s4 1983009808
  %v2265 = vunpack.c.0.s8 %v2264
  %v2266 = vlaneseq
  %v2267 = vshrl.u32 %v2266, 7
  %v2268 = vsub.s32 %v2265, %v2267
  %v2269 = vrot.slane %v2255, %v2268
  %v2270 = vcombine.low %v2262, %v2269
  %v2271 = vcombine.low %v1499, %v1507
  %v2272 = vcombine.low %v1506, %v1508
  %v2274 = vunpack.c.l.s4 1983009808
  %v2275 = vunpack.c.0.s8 %v2274
  %v2276 = vlaneseq
  %v2277 = vshrl.u32 %v2276, 7
  %v2278 = vsub.s32 %v2275, %v2277
  %v2279 = vrot.slane %v2271, %v2278
  %v2281 = vunpack.c.l.s4 1983009808
  %v2282 = vunpack.c.0.s8 %v2281
  %v2283 = vlaneseq
  %v2284 = vshrl.u32 %v2283, 7
  %v2285 = vsub.s32 %v2282, %v2284
  %v2286 = vrot.slane %v2272, %v2285
  %v2287 = vcombine.low %v2279, %v2286
  %v2288 = vcombine.low %v1516, %v1524
  %v2289 = vcombine.low %v1523, %v1525
  %v2291 = vunpack.c.l.s4 1983009808
  %v2292 = vunpack.c.0.s8 %v2291
  %v2293 = vlaneseq
  %v2294 = vshrl.u32 %v2293, 7
  %v2295 = vsub.s32 %v2292, %v2294
  %v2296 = vrot.slane %v2288, %v2295
  %v2298 = vunpack.c.l.s4 1983009808
  %v2299 = vunpack.c.0.s8 %v2298
  %v2300 = vlaneseq
  %v2301 = vshrl.u32 %v2300, 7
  %v2302 = vsub.s32 %v2299, %v2301
  %v2303 = vrot.slane %v2289, %v2302
  %v2304 = vcombine.low %v2296, %v2303
  %v2305 = vcombine.low %v1533, %v1541
  %v2306 = vcombine.low %v1540, %v1542
  %v2308 = vunpack.c.l.s4 1983009808
  %v2309 = vunpack.c.0.s8 %v2308
  %v2310 = vlaneseq
  %v2311 = vshrl.u32 %v2310, 7
  %v2312 = vsub.s32 %v2309, %v2311
  %v2313 = vrot.slane %v2305, %v2312
  %v2315 = vunpack.c.l.s4 1983009808
  %v2316 = vunpack.c.0.s8 %v2315
  %v2317 = vlaneseq
  %v2318 = vshrl.u32 %v2317, 7
  %v2319 = vsub.s32 %v2316, %v2318
  %v2320 = vrot.slane %v2306, %v2319
  %v2321 = vcombine.low %v2313, %v2320
  %v2323 = vunpack.c.l.s4 1983009808
  %v2324 = vunpack.c.0.s8 %v2323
  %v2325 = vlaneseq
  %v2326 = vshrl.u32 %v2325, 7
  %v2327 = vsub.s32 %v2324, %v2326
  %v2328 = vrot.slane %v1550, %v2327
  %v2336 = vsel %vm2108, %v2210, 0
  %v2339 = vsel %vm2108, %v2211, 0
  %v2342 = vsel %vm2108, %v2212, 0
  %v2345 = vsel %vm2108, %v2213, 0
  %v2348 = vsel %vm2108, %v2214, 0
  %vm2350 = vcmask 1041408
  %v2351 = vsel %vm2350, %v2328, 0
  %2353 = vmatprep.subr.mxu0 0.0
  %2354 = vmatpush1.msra.mxu0 0.0
  %2355 = vmatprep.subr.mxu0 0.0
  %2356 = vmatpush1.msra.mxu0 0.0
  %2357 = vmatprep.subr.mxu0 0.0
  %2358 = vmatpush1.msra.mxu0 0.0
  %2359 = vmatprep.subr.mxu0 0.0
  %2360 = vmatpush1.msra.mxu0 0.0
  %2361 = vmatprep.subr.mxu0 0.0
  %2362 = vmatpush1.msra.mxu0 0.0
  %2363 = vmatprep.subr.mxu0 0.0
  %2364 = vmatpush1.msra.mxu0 0.0
  %2365 = vmatprep.subr.mxu0 0.0
  %2366 = vmatpush1.msra.mxu0 0.0
  %2367 = vmatprep.subr.mxu0 0.0
  %2368 = vmatpush1.msra.mxu0 0.0
  %2369 = vmatprep.subr.mxu0 0.0
  %2370 = vmatpush1.msra.mxu0 0.0
  %2371 = vmatprep.subr.mxu0 0.0
  %2372 = vmatpush1.msra.mxu0 %v2351
  %2373 = vmatprep.subr.mxu0 0.0
  %2374 = vmatpush1.msra.mxu0 %v2321
  %2375 = vmatprep.subr.mxu0 0.0
  %2376 = vmatpush1.msra.mxu0 %v2304
  %2377 = vmatprep.subr.mxu0 0.0
  %2378 = vmatpush1.msra.mxu0 %v2287
  %2379 = vmatprep.subr.mxu0 0.0
  %2380 = vmatpush1.msra.mxu0 %v2270
  %2381 = vmatprep.subr.mxu0 0.0
  %2382 = vmatpush1.msra.mxu0 %v2253
  %2383 = vmatprep.subr.mxu0 0.0
  %2384 = vmatpush1.msra.mxu0 %v2236
  %2385 = vmatprep.subr.mxu0 0.0
  %2386 = vmatpush2.msra.mxu0 0.0
  %2387 = vmatprep.subr.mxu0 0.0
  %2388 = vmatpush2.msra.mxu0 0.0
  %2389 = vmatprep.subr.mxu0 0.0
  %2390 = vmatpush2.msra.mxu0 0.0
  %2391 = vmatprep.subr.mxu0 0.0
  %2392 = vmatpush2.msra.mxu0 0.0
  %2393 = vmatprep.subr.mxu0 0.0
  %2394 = vmatpush2.msra.mxu0 0.0
  %2395 = vmatprep.subr.mxu0 0.0
  %2396 = vmatpush2.msra.mxu0 0.0
  %2397 = vmatprep.subr.mxu0 0.0
  %2398 = vmatpush2.msra.mxu0 0.0
  %2399 = vmatprep.subr.mxu0 0.0
  %2400 = vmatpush2.msra.mxu0 0.0
  %2401 = vmatprep.subr.mxu0 0.0
  %2402 = vmatpush2.msra.mxu0 0.0
  %2403 = vmatprep.subr.mxu0 0.0
  %2404 = vmatpush2.msra.mxu0 0.0
  %2405 = vmatprep.subr.mxu0 0.0
  %2406 = vmatpush2.msra.mxu0 0.0
  %2407 = vmatprep.subr.mxu0 0.0
  %2408 = vmatpush2.msra.mxu0 0.0
  %2409 = vmatprep.subr.mxu0 0.0
  %2410 = vmatpush2.msra.mxu0 0.0
  %2411 = vmatprep.subr.mxu0 0.0
  %2412 = vmatpush2.msra.mxu0 0.0
  %2413 = vmatprep.subr.mxu0 0.0
  %2414 = vmatpush2.msra.mxu0 0.0
  %2415 = vmatprep.subr.mxu0 0.0
  %2416 = vmatpush2.msra.mxu0 0.0
  %2417 = vmatprep.mubr.f32.mxu0 0.0
  %2418 = vmatmul.mubr.f32.gmra.mxu0 %v2336
  %v2419 = vpop.f32.mrf.mxu0
  %v2420 = vadd.f32 0.0, %v2419
  %v2421 = vpop.f32.mrf.mxu0
  %2422 = vmatprep.mubr.f32.mxu0 0.0
  %2423 = vmatmul.mubr.f32.gmra.mxu0 %v2339
  %v2424 = vpop.f32.mrf.mxu0
  %v2425 = vadd.f32 0.0, %v2424
  %v2426 = vpop.f32.mrf.mxu0
  %2427 = vmatprep.mubr.f32.mxu0 0.0
  %2428 = vmatmul.mubr.f32.gmra.mxu0 %v2342
  %v2429 = vpop.f32.mrf.mxu0
  %v2430 = vadd.f32 0.0, %v2429
  %v2431 = vpop.f32.mrf.mxu0
  %2432 = vmatprep.mubr.f32.mxu0 0.0
  %2433 = vmatmul.mubr.f32.gmra.mxu0 %v2345
  %v2434 = vpop.f32.mrf.mxu0
  %v2435 = vadd.f32 0.0, %v2434
  %v2436 = vpop.f32.mrf.mxu0
  %2437 = vmatprep.mubr.f32.mxu0 0.0
  %2438 = vmatmul.mubr.f32.gmra.mxu0 %v2348
  %v2439 = vpop.f32.mrf.mxu0
  %v2440 = vadd.f32 0.0, %v2439
  %v2441 = vpop.f32.mrf.mxu0
  %2442 = vdwg.mxu0
  %v2443 = vcombine.low %v1558, %v1557
  %v2444 = vcombine.low %v1559, %v1567
  %v2446 = vunpack.c.l.s4 1983009808
  %v2447 = vunpack.c.0.s8 %v2446
  %v2448 = vlaneseq
  %v2449 = vshrl.u32 %v2448, 7
  %v2450 = vsub.s32 %v2447, %v2449
  %v2451 = vrot.slane %v2443, %v2450
  %v2453 = vunpack.c.l.s4 1983009808
  %v2454 = vunpack.c.0.s8 %v2453
  %v2455 = vlaneseq
  %v2456 = vshrl.u32 %v2455, 7
  %v2457 = vsub.s32 %v2454, %v2456
  %v2458 = vrot.slane %v2444, %v2457
  %v2459 = vcombine.low %v2451, %v2458
  %v2460 = vcombine.low %v1575, %v1574
  %v2461 = vcombine.low %v1576, %v1584
  %v2463 = vunpack.c.l.s4 1983009808
  %v2464 = vunpack.c.0.s8 %v2463
  %v2465 = vlaneseq
  %v2466 = vshrl.u32 %v2465, 7
  %v2467 = vsub.s32 %v2464, %v2466
  %v2468 = vrot.slane %v2460, %v2467
  %v2470 = vunpack.c.l.s4 1983009808
  %v2471 = vunpack.c.0.s8 %v2470
  %v2472 = vlaneseq
  %v2473 = vshrl.u32 %v2472, 7
  %v2474 = vsub.s32 %v2471, %v2473
  %v2475 = vrot.slane %v2461, %v2474
  %v2476 = vcombine.low %v2468, %v2475
  %v2477 = vcombine.low %v1592, %v1591
  %v2478 = vcombine.low %v1593, %v1601
  %v2480 = vunpack.c.l.s4 1983009808
  %v2481 = vunpack.c.0.s8 %v2480
  %v2482 = vlaneseq
  %v2483 = vshrl.u32 %v2482, 7
  %v2484 = vsub.s32 %v2481, %v2483
  %v2485 = vrot.slane %v2477, %v2484
  %v2487 = vunpack.c.l.s4 1983009808
  %v2488 = vunpack.c.0.s8 %v2487
  %v2489 = vlaneseq
  %v2490 = vshrl.u32 %v2489, 7
  %v2491 = vsub.s32 %v2488, %v2490
  %v2492 = vrot.slane %v2478, %v2491
  %v2493 = vcombine.low %v2485, %v2492
  %v2494 = vcombine.low %v1609, %v1608
  %v2495 = vcombine.low %v1610, %v1618
  %v2497 = vunpack.c.l.s4 1983009808
  %v2498 = vunpack.c.0.s8 %v2497
  %v2499 = vlaneseq
  %v2500 = vshrl.u32 %v2499, 7
  %v2501 = vsub.s32 %v2498, %v2500
  %v2502 = vrot.slane %v2494, %v2501
  %v2504 = vunpack.c.l.s4 1983009808
  %v2505 = vunpack.c.0.s8 %v2504
  %v2506 = vlaneseq
  %v2507 = vshrl.u32 %v2506, 7
  %v2508 = vsub.s32 %v2505, %v2507
  %v2509 = vrot.slane %v2495, %v2508
  %v2510 = vcombine.low %v2502, %v2509
  %v2511 = vcombine.low %v1626, %v1625
  %v2512 = vcombine.low %v1627, %v1635
  %v2514 = vunpack.c.l.s4 1983009808
  %v2515 = vunpack.c.0.s8 %v2514
  %v2516 = vlaneseq
  %v2517 = vshrl.u32 %v2516, 7
  %v2518 = vsub.s32 %v2515, %v2517
  %v2519 = vrot.slane %v2511, %v2518
  %v2521 = vunpack.c.l.s4 1983009808
  %v2522 = vunpack.c.0.s8 %v2521
  %v2523 = vlaneseq
  %v2524 = vshrl.u32 %v2523, 7
  %v2525 = vsub.s32 %v2522, %v2524
  %v2526 = vrot.slane %v2512, %v2525
  %v2527 = vcombine.low %v2519, %v2526
  %v2528 = vcombine.low %v1643, %v1642
  %v2529 = vcombine.low %v1644, %v1651
  %v2531 = vunpack.c.l.s4 1983009808
  %v2532 = vunpack.c.0.s8 %v2531
  %v2533 = vlaneseq
  %v2534 = vshrl.u32 %v2533, 7
  %v2535 = vsub.s32 %v2532, %v2534
  %v2536 = vrot.slane %v2528, %v2535
  %v2538 = vunpack.c.l.s4 1983009808
  %v2539 = vunpack.c.0.s8 %v2538
  %v2540 = vlaneseq
  %v2541 = vshrl.u32 %v2540, 7
  %v2542 = vsub.s32 %v2539, %v2541
  %v2543 = vrot.slane %v2529, %v2542
  %v2544 = vcombine.low %v2536, %v2543
  %v2546 = vunpack.c.l.s4 1983009808
  %v2547 = vunpack.c.0.s8 %v2546
  %v2548 = vlaneseq
  %v2549 = vshrl.u32 %v2548, 7
  %v2550 = vsub.s32 %v2547, %v2549
  %v2551 = vrot.slane %v1652, %v2550
  %v2559 = vsel %vm2108, %v2215, 0
  %v2562 = vsel %vm2108, %v2216, 0
  %v2565 = vsel %vm2108, %v2217, 0
  %v2568 = vsel %vm2108, %v2218, 0
  %v2571 = vsel %vm2108, %v2219, 0
  %v2573 = vsel %vm2350, %v2551, 0
  %2575 = vmatprep.subr.mxu0 0.0
  %2576 = vmatpush1.msra.mxu0 0.0
  %2577 = vmatprep.subr.mxu0 0.0
  %2578 = vmatpush1.msra.mxu0 0.0
  %2579 = vmatprep.subr.mxu0 0.0
  %2580 = vmatpush1.msra.mxu0 0.0
  %2581 = vmatprep.subr.mxu0 0.0
  %2582 = vmatpush1.msra.mxu0 0.0
  %2583 = vmatprep.subr.mxu0 0.0
  %2584 = vmatpush1.msra.mxu0 0.0
  %2585 = vmatprep.subr.mxu0 0.0
  %2586 = vmatpush1.msra.mxu0 0.0
  %2587 = vmatprep.subr.mxu0 0.0
  %2588 = vmatpush1.msra.mxu0 0.0
  %2589 = vmatprep.subr.mxu0 0.0
  %2590 = vmatpush1.msra.mxu0 0.0
  %2591 = vmatprep.subr.mxu0 0.0
  %2592 = vmatpush1.msra.mxu0 0.0
  %2593 = vmatprep.subr.mxu0 0.0
  %2594 = vmatpush1.msra.mxu0 %v2573
  %2595 = vmatprep.subr.mxu0 0.0
  %2596 = vmatpush1.msra.mxu0 %v2544
  %2597 = vmatprep.subr.mxu0 0.0
  %2598 = vmatpush1.msra.mxu0 %v2527
  %2599 = vmatprep.subr.mxu0 0.0
  %2600 = vmatpush1.msra.mxu0 %v2510
  %2601 = vmatprep.subr.mxu0 0.0
  %2602 = vmatpush1.msra.mxu0 %v2493
  %2603 = vmatprep.subr.mxu0 0.0
  %2604 = vmatpush1.msra.mxu0 %v2476
  %2605 = vmatprep.subr.mxu0 0.0
  %2606 = vmatpush1.msra.mxu0 %v2459
  %2607 = vmatprep.subr.mxu0 0.0
  %2608 = vmatpush2.msra.mxu0 0.0
  %2609 = vmatprep.subr.mxu0 0.0
  %2610 = vmatpush2.msra.mxu0 0.0
  %2611 = vmatprep.subr.mxu0 0.0
  %2612 = vmatpush2.msra.mxu0 0.0
  %2613 = vmatprep.subr.mxu0 0.0
  %2614 = vmatpush2.msra.mxu0 0.0
  %2615 = vmatprep.subr.mxu0 0.0
  %2616 = vmatpush2.msra.mxu0 0.0
  %2617 = vmatprep.subr.mxu0 0.0
  %2618 = vmatpush2.msra.mxu0 0.0
  %2619 = vmatprep.subr.mxu0 0.0
  %2620 = vmatpush2.msra.mxu0 0.0
  %2621 = vmatprep.subr.mxu0 0.0
  %2622 = vmatpush2.msra.mxu0 0.0
  %2623 = vmatprep.subr.mxu0 0.0
  %2624 = vmatpush2.msra.mxu0 0.0
  %2625 = vmatprep.subr.mxu0 0.0
  %2626 = vmatpush2.msra.mxu0 0.0
  %2627 = vmatprep.subr.mxu0 0.0
  %2628 = vmatpush2.msra.mxu0 0.0
  %2629 = vmatprep.subr.mxu0 0.0
  %2630 = vmatpush2.msra.mxu0 0.0
  %2631 = vmatprep.subr.mxu0 0.0
  %2632 = vmatpush2.msra.mxu0 0.0
  %2633 = vmatprep.subr.mxu0 0.0
  %2634 = vmatpush2.msra.mxu0 0.0
  %2635 = vmatprep.subr.mxu0 0.0
  %2636 = vmatpush2.msra.mxu0 0.0
  %2637 = vmatprep.subr.mxu0 0.0
  %2638 = vmatpush2.msra.mxu0 0.0
  %2639 = vmatprep.mubr.f32.mxu0 0.0
  %2640 = vmatmul.mubr.f32.gmra.mxu0 %v2559
  %v2641 = vpop.f32.mrf.mxu0
  %v2642 = vadd.f32 0.0, %v2641
  %v2643 = vpop.f32.mrf.mxu0
  %2644 = vmatprep.mubr.f32.mxu0 0.0
  %2645 = vmatmul.mubr.f32.gmra.mxu0 %v2562
  %v2646 = vpop.f32.mrf.mxu0
  %v2647 = vadd.f32 0.0, %v2646
  %v2648 = vpop.f32.mrf.mxu0
  %2649 = vmatprep.mubr.f32.mxu0 0.0
  %2650 = vmatmul.mubr.f32.gmra.mxu0 %v2565
  %v2651 = vpop.f32.mrf.mxu0
  %v2652 = vadd.f32 0.0, %v2651
  %v2653 = vpop.f32.mrf.mxu0
  %2654 = vmatprep.mubr.f32.mxu0 0.0
  %2655 = vmatmul.mubr.f32.gmra.mxu0 %v2568
  %v2656 = vpop.f32.mrf.mxu0
  %v2657 = vadd.f32 0.0, %v2656
  %v2658 = vpop.f32.mrf.mxu0
  %2659 = vmatprep.mubr.f32.mxu0 0.0
  %2660 = vmatmul.mubr.f32.gmra.mxu0 %v2571
  %v2661 = vpop.f32.mrf.mxu0
  %v2662 = vadd.f32 0.0, %v2661
  %v2663 = vpop.f32.mrf.mxu0
  %2664 = vdwg.mxu0
  %2665 = vrot.lane.b32.xlu0 %v1653, 112
  %v2666 = vpop.permute.xlu0 %2665
  %2667 = vrot.lane.b32.xlu0 %v1654, 112
  %v2668 = vpop.permute.xlu0 %2667
  %2669 = vrot.lane.b32.xlu0 %v1655, 112
  %v2670 = vpop.permute.xlu0 %2669
  %2671 = vrot.lane.b32.xlu0 %v1656, 112
  %v2672 = vpop.permute.xlu0 %2671
  %2673 = vrot.lane.b32.xlu0 %v432, 112
  %v2674 = vpop.permute.xlu0 %2673
  %2675 = vrot.lane.b32.xlu0 %v1673, 112
  %v2676 = vpop.permute.xlu0 %2675
  %2677 = vrot.lane.b32.xlu0 %v1690, 112
  %v2678 = vpop.permute.xlu0 %2677
  %2679 = vrot.lane.b32.xlu0 %v1707, 112
  %v2680 = vpop.permute.xlu0 %2679
  %2681 = vrot.lane.b32.xlu0 %v1724, 112
  %v2682 = vpop.permute.xlu0 %2681
  %2683 = vrot.lane.b32.xlu0 %v1741, 112
  %v2684 = vpop.permute.xlu0 %2683
  %2685 = vrot.lane.b32.xlu0 %v1758, 112
  %v2686 = vpop.permute.xlu0 %2685
  %2687 = vrot.lane.b32.xlu0 %v1765, 112
  %v2688 = vpop.permute.xlu0 %2687
  %v2689 = vsel %vm1766, %v2666, 0
  %v2691 = vsel %vm1766, %v2668, 0
  %v2693 = vsel %vm1766, %v2670, 0
  %v2695 = vsel %vm1766, %v2672, 0
  %v2697 = vsel %vm1766, %v2674, 0
  %v2699 = vsel %vm1766, %v2676, 0
  %v2701 = vsel %vm1766, %v2678, 0
  %v2703 = vsel %vm1766, %v2680, 0
  %v2705 = vsel %vm1766, %v2682, 0
  %v2707 = vsel %vm1766, %v2684, 0
  %v2709 = vsel %vm1766, %v2686, 0
  %v2711 = vsel %vm1766, %v2688, 0
  %2713 = vmatprep.subr.mxu0 0.0
  %2714 = vmatpush1.xpose.msra.mxu0 0.0
  %2715 = vmatprep.subr.mxu0 0.0
  %2716 = vmatpush1.xpose.msra.mxu0 0.0
  %2717 = vmatprep.subr.mxu0 0.0
  %2718 = vmatpush1.xpose.msra.mxu0 0.0
  %2719 = vmatprep.subr.mxu0 0.0
  %2720 = vmatpush1.xpose.msra.mxu0 0.0
  %2721 = vmatprep.subr.mxu0 0.0
  %2722 = vmatpush1.xpose.msra.mxu0 0.0
  %2723 = vmatprep.subr.mxu0 0.0
  %2724 = vmatpush1.xpose.msra.mxu0 0.0
  %2725 = vmatprep.subr.mxu0 0.0
  %2726 = vmatpush1.xpose.msra.mxu0 0.0
  %2727 = vmatprep.subr.mxu0 0.0
  %2728 = vmatpush1.xpose.msra.mxu0 0.0
  %2729 = vmatprep.subr.mxu0 0.0
  %2730 = vmatpush1.xpose.msra.mxu0 0.0
  %2731 = vmatprep.subr.mxu0 0.0
  %2732 = vmatpush1.xpose.msra.mxu0 %v2711
  %2733 = vmatprep.subr.mxu0 0.0
  %2734 = vmatpush1.xpose.msra.mxu0 %v2709
  %2735 = vmatprep.subr.mxu0 0.0
  %2736 = vmatpush1.xpose.msra.mxu0 %v2707
  %2737 = vmatprep.subr.mxu0 0.0
  %2738 = vmatpush1.xpose.msra.mxu0 %v2705
  %2739 = vmatprep.subr.mxu0 0.0
  %2740 = vmatpush1.xpose.msra.mxu0 %v2703
  %2741 = vmatprep.subr.mxu0 0.0
  %2742 = vmatpush1.xpose.msra.mxu0 %v2701
  %2743 = vmatprep.subr.mxu0 0.0
  %2744 = vmatpush1.xpose.msra.mxu0 %v2699
  %2745 = vmatprep.subr.mxu0 0.0
  %2746 = vmatpush2.xpose.msra.mxu0 0.0
  %2747 = vmatprep.subr.mxu0 0.0
  %2748 = vmatpush2.xpose.msra.mxu0 0.0
  %2749 = vmatprep.subr.mxu0 0.0
  %2750 = vmatpush2.xpose.msra.mxu0 0.0
  %2751 = vmatprep.subr.mxu0 0.0
  %2752 = vmatpush2.xpose.msra.mxu0 0.0
  %2753 = vmatprep.subr.mxu0 0.0
  %2754 = vmatpush2.xpose.msra.mxu0 0.0
  %2755 = vmatprep.subr.mxu0 0.0
  %2756 = vmatpush2.xpose.msra.mxu0 0.0
  %2757 = vmatprep.subr.mxu0 0.0
  %2758 = vmatpush2.xpose.msra.mxu0 0.0
  %2759 = vmatprep.subr.mxu0 0.0
  %2760 = vmatpush2.xpose.msra.mxu0 0.0
  %2761 = vmatprep.subr.mxu0 0.0
  %2762 = vmatpush2.xpose.msra.mxu0 0.0
  %2763 = vmatprep.subr.mxu0 0.0
  %2764 = vmatpush2.xpose.msra.mxu0 0.0
  %2765 = vmatprep.subr.mxu0 0.0
  %2766 = vmatpush2.xpose.msra.mxu0 0.0
  %2767 = vmatprep.subr.mxu0 0.0
  %2768 = vmatpush2.xpose.msra.mxu0 0.0
  %2769 = vmatprep.subr.mxu0 0.0
  %2770 = vmatpush2.xpose.msra.mxu0 0.0
  %2771 = vmatprep.subr.mxu0 0.0
  %2772 = vmatpush2.xpose.msra.mxu0 0.0
  %2773 = vmatprep.subr.mxu0 0.0
  %2774 = vmatpush2.xpose.msra.mxu0 0.0
  %2775 = vmatprep.subr.mxu0 0.0
  %2776 = vmatpush2.xpose.msra.mxu0 0.0
  %2777 = vmatprep.mubr.f32.mxu0 0.0
  %2778 = vmatmul.mubr.f32.gmra.mxu0 %v2689
  %v2779 = vpop.f32.mrf.mxu0
  %v2780 = vadd.f32 0.0, %v2779
  %v2781 = vpop.f32.mrf.mxu0
  %2782 = vmatprep.mubr.f32.mxu0 0.0
  %2783 = vmatmul.mubr.f32.gmra.mxu0 %v2691
  %v2784 = vpop.f32.mrf.mxu0
  %v2785 = vadd.f32 0.0, %v2784
  %v2786 = vpop.f32.mrf.mxu0
  %2787 = vmatprep.mubr.f32.mxu0 0.0
  %2788 = vmatmul.mubr.f32.gmra.mxu0 %v2693
  %v2789 = vpop.f32.mrf.mxu0
  %v2790 = vadd.f32 0.0, %v2789
  %v2791 = vpop.f32.mrf.mxu0
  %2792 = vmatprep.mubr.f32.mxu0 0.0
  %2793 = vmatmul.mubr.f32.gmra.mxu0 %v2695
  %v2794 = vpop.f32.mrf.mxu0
  %v2795 = vadd.f32 0.0, %v2794
  %v2796 = vpop.f32.mrf.mxu0
  %2797 = vmatprep.mubr.f32.mxu0 0.0
  %2798 = vmatmul.mubr.f32.gmra.mxu0 %v2697
  %v2799 = vpop.f32.mrf.mxu0
  %v2800 = vadd.f32 0.0, %v2799
  %v2801 = vpop.f32.mrf.mxu0
  %2802 = vdwg.mxu0
  %2803 = vrot.lane.b32.xlu0 %v1881, 112
  %v2804 = vpop.permute.xlu0 %2803
  %2805 = vrot.lane.b32.xlu0 %v1882, 112
  %v2806 = vpop.permute.xlu0 %2805
  %2807 = vrot.lane.b32.xlu0 %v1883, 112
  %v2808 = vpop.permute.xlu0 %2807
  %2809 = vrot.lane.b32.xlu0 %v1884, 112
  %v2810 = vpop.permute.xlu0 %2809
  %2811 = vrot.lane.b32.xlu0 %v472, 112
  %v2812 = vpop.permute.xlu0 %2811
  %2813 = vrot.lane.b32.xlu0 %v1901, 112
  %v2814 = vpop.permute.xlu0 %2813
  %2815 = vrot.lane.b32.xlu0 %v1918, 112
  %v2816 = vpop.permute.xlu0 %2815
  %2817 = vrot.lane.b32.xlu0 %v1935, 112
  %v2818 = vpop.permute.xlu0 %2817
  %2819 = vrot.lane.b32.xlu0 %v1952, 112
  %v2820 = vpop.permute.xlu0 %2819
  %2821 = vrot.lane.b32.xlu0 %v1969, 112
  %v2822 = vpop.permute.xlu0 %2821
  %2823 = vrot.lane.b32.xlu0 %v1986, 112
  %v2824 = vpop.permute.xlu0 %2823
  %2825 = vrot.lane.b32.xlu0 %v1993, 112
  %v2826 = vpop.permute.xlu0 %2825
  %v2827 = vsel %vm1766, %v2804, 0
  %v2829 = vsel %vm1766, %v2806, 0
  %v2831 = vsel %vm1766, %v2808, 0
  %v2833 = vsel %vm1766, %v2810, 0
  %v2835 = vsel %vm1766, %v2812, 0
  %v2837 = vsel %vm1766, %v2814, 0
  %v2839 = vsel %vm1766, %v2816, 0
  %v2841 = vsel %vm1766, %v2818, 0
  %v2843 = vsel %vm1766, %v2820, 0
  %v2845 = vsel %vm1766, %v2822, 0
  %v2847 = vsel %vm1766, %v2824, 0
  %v2849 = vsel %vm1766, %v2826, 0
  %2851 = vmatprep.subr.mxu0 0.0
  %2852 = vmatpush1.xpose.msra.mxu0 0.0
  %2853 = vmatprep.subr.mxu0 0.0
  %2854 = vmatpush1.xpose.msra.mxu0 0.0
  %2855 = vmatprep.subr.mxu0 0.0
  %2856 = vmatpush1.xpose.msra.mxu0 0.0
  %2857 = vmatprep.subr.mxu0 0.0
  %2858 = vmatpush1.xpose.msra.mxu0 0.0
  %2859 = vmatprep.subr.mxu0 0.0
  %2860 = vmatpush1.xpose.msra.mxu0 0.0
  %2861 = vmatprep.subr.mxu0 0.0
  %2862 = vmatpush1.xpose.msra.mxu0 0.0
  %2863 = vmatprep.subr.mxu0 0.0
  %2864 = vmatpush1.xpose.msra.mxu0 0.0
  %2865 = vmatprep.subr.mxu0 0.0
  %2866 = vmatpush1.xpose.msra.mxu0 0.0
  %2867 = vmatprep.subr.mxu0 0.0
  %2868 = vmatpush1.xpose.msra.mxu0 0.0
  %2869 = vmatprep.subr.mxu0 0.0
  %2870 = vmatpush1.xpose.msra.mxu0 %v2849
  %2871 = vmatprep.subr.mxu0 0.0
  %2872 = vmatpush1.xpose.msra.mxu0 %v2847
  %2873 = vmatprep.subr.mxu0 0.0
  %2874 = vmatpush1.xpose.msra.mxu0 %v2845
  %2875 = vmatprep.subr.mxu0 0.0
  %2876 = vmatpush1.xpose.msra.mxu0 %v2843
  %2877 = vmatprep.subr.mxu0 0.0
  %2878 = vmatpush1.xpose.msra.mxu0 %v2841
  %2879 = vmatprep.subr.mxu0 0.0
  %2880 = vmatpush1.xpose.msra.mxu0 %v2839
  %2881 = vmatprep.subr.mxu0 0.0
  %2882 = vmatpush1.xpose.msra.mxu0 %v2837
  %2883 = vmatprep.subr.mxu0 0.0
  %2884 = vmatpush2.xpose.msra.mxu0 0.0
  %2885 = vmatprep.subr.mxu0 0.0
  %2886 = vmatpush2.xpose.msra.mxu0 0.0
  %2887 = vmatprep.subr.mxu0 0.0
  %2888 = vmatpush2.xpose.msra.mxu0 0.0
  %2889 = vmatprep.subr.mxu0 0.0
  %2890 = vmatpush2.xpose.msra.mxu0 0.0
  %2891 = vmatprep.subr.mxu0 0.0
  %2892 = vmatpush2.xpose.msra.mxu0 0.0
  %2893 = vmatprep.subr.mxu0 0.0
  %2894 = vmatpush2.xpose.msra.mxu0 0.0
  %2895 = vmatprep.subr.mxu0 0.0
  %2896 = vmatpush2.xpose.msra.mxu0 0.0
  %2897 = vmatprep.subr.mxu0 0.0
  %2898 = vmatpush2.xpose.msra.mxu0 0.0
  %2899 = vmatprep.subr.mxu0 0.0
  %2900 = vmatpush2.xpose.msra.mxu0 0.0
  %2901 = vmatprep.subr.mxu0 0.0
  %2902 = vmatpush2.xpose.msra.mxu0 0.0
  %2903 = vmatprep.subr.mxu0 0.0
  %2904 = vmatpush2.xpose.msra.mxu0 0.0
  %2905 = vmatprep.subr.mxu0 0.0
  %2906 = vmatpush2.xpose.msra.mxu0 0.0
  %2907 = vmatprep.subr.mxu0 0.0
  %2908 = vmatpush2.xpose.msra.mxu0 0.0
  %2909 = vmatprep.subr.mxu0 0.0
  %2910 = vmatpush2.xpose.msra.mxu0 0.0
  %2911 = vmatprep.subr.mxu0 0.0
  %2912 = vmatpush2.xpose.msra.mxu0 0.0
  %2913 = vmatprep.subr.mxu0 0.0
  %2914 = vmatpush2.xpose.msra.mxu0 0.0
  %2915 = vmatprep.mubr.f32.mxu0 0.0
  %2916 = vmatmul.mubr.f32.gmra.mxu0 %v2827
  %v2917 = vpop.f32.mrf.mxu0
  %v2918 = vadd.f32 0.0, %v2917
  %v2919 = vpop.f32.mrf.mxu0
  %2920 = vmatprep.mubr.f32.mxu0 0.0
  %2921 = vmatmul.mubr.f32.gmra.mxu0 %v2829
  %v2922 = vpop.f32.mrf.mxu0
  %v2923 = vadd.f32 0.0, %v2922
  %v2924 = vpop.f32.mrf.mxu0
  %2925 = vmatprep.mubr.f32.mxu0 0.0
  %2926 = vmatmul.mubr.f32.gmra.mxu0 %v2831
  %v2927 = vpop.f32.mrf.mxu0
  %v2928 = vadd.f32 0.0, %v2927
  %v2929 = vpop.f32.mrf.mxu0
  %2930 = vmatprep.mubr.f32.mxu0 0.0
  %2931 = vmatmul.mubr.f32.gmra.mxu0 %v2833
  %v2932 = vpop.f32.mrf.mxu0
  %v2933 = vadd.f32 0.0, %v2932
  %v2934 = vpop.f32.mrf.mxu0
  %2935 = vmatprep.mubr.f32.mxu0 0.0
  %2936 = vmatmul.mubr.f32.gmra.mxu0 %v2835
  %v2937 = vpop.f32.mrf.mxu0
  %v2938 = vadd.f32 0.0, %v2937
  %v2939 = vpop.f32.mrf.mxu0
  %2940 = vdwg.mxu0
  %v2941 = vsel %vm2108, %v2780, -inf
  %2942 = vmax.xlane.f32.xlu0 %v2941
  %v2943 = vpop.xlane.xlu0 %2942
  %v2944 = vsel %vm2108, %v2785, -inf
  %2945 = vmax.xlane.f32.xlu0 %v2944
  %v2946 = vpop.xlane.xlu0 %2945
  %v2947 = vsel %vm2108, %v2790, -inf
  %2948 = vmax.xlane.f32.xlu0 %v2947
  %v2949 = vpop.xlane.xlu0 %2948
  %v2950 = vsel %vm2108, %v2795, -inf
  %2951 = vmax.xlane.f32.xlu0 %v2950
  %v2952 = vpop.xlane.xlu0 %2951
  %v2953 = vsel %vm2121, %v2800, -inf
  %2954 = vmax.xlane.f32.xlu0 %v2953
  %v2955 = vpop.xlane.xlu0 %2954
  %v2956 = vsel %vm2108, %v2918, -inf
  %2957 = vmax.xlane.f32.xlu0 %v2956
  %v2958 = vpop.xlane.xlu0 %2957
  %v2959 = vsel %vm2108, %v2923, -inf
  %2960 = vmax.xlane.f32.xlu0 %v2959
  %v2961 = vpop.xlane.xlu0 %2960
  %v2962 = vsel %vm2108, %v2928, -inf
  %2963 = vmax.xlane.f32.xlu0 %v2962
  %v2964 = vpop.xlane.xlu0 %2963
  %v2965 = vsel %vm2108, %v2933, -inf
  %2966 = vmax.xlane.f32.xlu0 %v2965
  %v2967 = vpop.xlane.xlu0 %2966
  %v2968 = vsel %vm2121, %v2938, -inf
  %2969 = vmax.xlane.f32.xlu0 %v2968
  %v2970 = vpop.xlane.xlu0 %2969
  %v2971 = vsub.f32 %v2780, %v2943
  %v2972 = vsub.f32 %v2785, %v2946
  %v2973 = vsub.f32 %v2790, %v2949
  %v2974 = vsub.f32 %v2795, %v2952
  %v2975 = vsub.f32 %v2800, %v2955
  %v2976 = vsub.f32 %v2918, %v2958
  %v2977 = vsub.f32 %v2923, %v2961
  %v2978 = vsub.f32 %v2928, %v2964
  %v2979 = vsub.f32 %v2933, %v2967
  %v2980 = vsub.f32 %v2938, %v2970
  %v2981 = vmul.f32 %v2971, 1.442695
  %v2982 = vpow.pop %v2981
  %v2983 = vmul.f32 %v2972, 1.442695
  %v2984 = vpow.pop %v2983
  %v2985 = vmul.f32 %v2973, 1.442695
  %v2986 = vpow.pop %v2985
  %v2987 = vmul.f32 %v2974, 1.442695
  %v2988 = vpow.pop %v2987
  %v2989 = vmul.f32 %v2975, 1.442695
  %v2990 = vpow.pop %v2989
  %v2991 = vmul.f32 %v2976, 1.442695
  %v2992 = vpow.pop %v2991
  %v2993 = vmul.f32 %v2977, 1.442695
  %v2994 = vpow.pop %v2993
  %v2995 = vmul.f32 %v2978, 1.442695
  %v2996 = vpow.pop %v2995
  %v2997 = vmul.f32 %v2979, 1.442695
  %v2998 = vpow.pop %v2997
  %v2999 = vmul.f32 %v2980, 1.442695
  %v3000 = vpow.pop %v2999
  %v3001 = vsel %vm2108, %v2982, 0.0
  %3002 = vadd.xlane.f32.xlu0 %v3001
  %v3003 = vpop.xlane.xlu0 %3002
  %v3004 = vsel %vm2108, %v2984, 0.0
  %3005 = vadd.xlane.f32.xlu0 %v3004
  %v3006 = vpop.xlane.xlu0 %3005
  %v3007 = vsel %vm2108, %v2986, 0.0
  %3008 = vadd.xlane.f32.xlu0 %v3007
  %v3009 = vpop.xlane.xlu0 %3008
  %v3010 = vsel %vm2108, %v2988, 0.0
  %3011 = vadd.xlane.f32.xlu0 %v3010
  %v3012 = vpop.xlane.xlu0 %3011
  %v3013 = vsel %vm2121, %v2990, 0.0
  %3014 = vadd.xlane.f32.xlu0 %v3013
  %v3015 = vpop.xlane.xlu0 %3014
  %v3016 = vsel %vm2108, %v2992, 0.0
  %3017 = vadd.xlane.f32.xlu0 %v3016
  %v3018 = vpop.xlane.xlu0 %3017
  %v3019 = vsel %vm2108, %v2994, 0.0
  %3020 = vadd.xlane.f32.xlu0 %v3019
  %v3021 = vpop.xlane.xlu0 %3020
  %v3022 = vsel %vm2108, %v2996, 0.0
  %3023 = vadd.xlane.f32.xlu0 %v3022
  %v3024 = vpop.xlane.xlu0 %3023
  %v3025 = vsel %vm2108, %v2998, 0.0
  %3026 = vadd.xlane.f32.xlu0 %v3025
  %v3027 = vpop.xlane.xlu0 %3026
  %v3028 = vsel %vm2121, %v3000, 0.0
  %3029 = vadd.xlane.f32.xlu0 %v3028
  %v3030 = vpop.xlane.xlu0 %3029
  %v3031 = vrcp.pop %v3003
  %v3032 = vrcp.pop %v3006
  %v3033 = vrcp.pop %v3009
  %v3034 = vrcp.pop %v3012
  %v3035 = vrcp.pop %v3015
  %v3036 = vrcp.pop %v3018
  %v3037 = vrcp.pop %v3021
  %v3038 = vrcp.pop %v3024
  %v3039 = vrcp.pop %v3027
  %v3040 = vrcp.pop %v3030
  %v3041 = vmul.f32 %v2982, %v3031
  %v3042 = vmul.f32 %v2984, %v3032
  %v3043 = vmul.f32 %v2986, %v3033
  %v3044 = vmul.f32 %v2988, %v3034
  %v3045 = vmul.f32 %v2990, %v3035
  %v3046 = vmul.f32 %v2992, %v3036
  %v3047 = vmul.f32 %v2994, %v3037
  %v3048 = vmul.f32 %v2996, %v3038
  %v3049 = vmul.f32 %v2998, %v3039
  %v3050 = vmul.f32 %v3000, %v3040
  %3051 = vrot.lane.b32.xlu0 %v2236, 112
  %v3052 = vpop.permute.xlu0 %3051
  %3053 = vrot.lane.b32.xlu0 %v2253, 112
  %v3054 = vpop.permute.xlu0 %3053
  %3055 = vrot.lane.b32.xlu0 %v2270, 112
  %v3056 = vpop.permute.xlu0 %3055
  %3057 = vrot.lane.b32.xlu0 %v2287, 112
  %v3058 = vpop.permute.xlu0 %3057
  %3059 = vrot.lane.b32.xlu0 %v2304, 112
  %v3060 = vpop.permute.xlu0 %3059
  %3061 = vrot.lane.b32.xlu0 %v2321, 112
  %v3062 = vpop.permute.xlu0 %3061
  %3063 = vrot.lane.b32.xlu0 %v2328, 112
  %v3064 = vpop.permute.xlu0 %3063
  %v3072 = vsel %vm2108, %v3041, 0
  %v3075 = vsel %vm2108, %v3042, 0
  %v3078 = vsel %vm2108, %v3043, 0
  %v3081 = vsel %vm2108, %v3044, 0
  %v3084 = vsel %vm2108, %v3045, 0
  %v3086 = vsel %vm2350, %v3064, 0
  %3088 = vmatprep.subr.mxu0 0.0
  %3089 = vmatpush1.msra.mxu0 0.0
  %3090 = vmatprep.subr.mxu0 0.0
  %3091 = vmatpush1.msra.mxu0 0.0
  %3092 = vmatprep.subr.mxu0 0.0
  %3093 = vmatpush1.msra.mxu0 0.0
  %3094 = vmatprep.subr.mxu0 0.0
  %3095 = vmatpush1.msra.mxu0 0.0
  %3096 = vmatprep.subr.mxu0 0.0
  %3097 = vmatpush1.msra.mxu0 0.0
  %3098 = vmatprep.subr.mxu0 0.0
  %3099 = vmatpush1.msra.mxu0 0.0
  %3100 = vmatprep.subr.mxu0 0.0
  %3101 = vmatpush1.msra.mxu0 0.0
  %3102 = vmatprep.subr.mxu0 0.0
  %3103 = vmatpush1.msra.mxu0 0.0
  %3104 = vmatprep.subr.mxu0 0.0
  %3105 = vmatpush1.msra.mxu0 0.0
  %3106 = vmatprep.subr.mxu0 0.0
  %3107 = vmatpush1.msra.mxu0 %v3086
  %3108 = vmatprep.subr.mxu0 0.0
  %3109 = vmatpush1.msra.mxu0 %v3062
  %3110 = vmatprep.subr.mxu0 0.0
  %3111 = vmatpush1.msra.mxu0 %v3060
  %3112 = vmatprep.subr.mxu0 0.0
  %3113 = vmatpush1.msra.mxu0 %v3058
  %3114 = vmatprep.subr.mxu0 0.0
  %3115 = vmatpush1.msra.mxu0 %v3056
  %3116 = vmatprep.subr.mxu0 0.0
  %3117 = vmatpush1.msra.mxu0 %v3054
  %3118 = vmatprep.subr.mxu0 0.0
  %3119 = vmatpush1.msra.mxu0 %v3052
  %3120 = vmatprep.subr.mxu0 0.0
  %3121 = vmatpush2.msra.mxu0 0.0
  %3122 = vmatprep.subr.mxu0 0.0
  %3123 = vmatpush2.msra.mxu0 0.0
  %3124 = vmatprep.subr.mxu0 0.0
  %3125 = vmatpush2.msra.mxu0 0.0
  %3126 = vmatprep.subr.mxu0 0.0
  %3127 = vmatpush2.msra.mxu0 0.0
  %3128 = vmatprep.subr.mxu0 0.0
  %3129 = vmatpush2.msra.mxu0 0.0
  %3130 = vmatprep.subr.mxu0 0.0
  %3131 = vmatpush2.msra.mxu0 0.0
  %3132 = vmatprep.subr.mxu0 0.0
  %3133 = vmatpush2.msra.mxu0 0.0
  %3134 = vmatprep.subr.mxu0 0.0
  %3135 = vmatpush2.msra.mxu0 0.0
  %3136 = vmatprep.subr.mxu0 0.0
  %3137 = vmatpush2.msra.mxu0 0.0
  %3138 = vmatprep.subr.mxu0 0.0
  %3139 = vmatpush2.msra.mxu0 0.0
  %3140 = vmatprep.subr.mxu0 0.0
  %3141 = vmatpush2.msra.mxu0 0.0
  %3142 = vmatprep.subr.mxu0 0.0
  %3143 = vmatpush2.msra.mxu0 0.0
  %3144 = vmatprep.subr.mxu0 0.0
  %3145 = vmatpush2.msra.mxu0 0.0
  %3146 = vmatprep.subr.mxu0 0.0
  %3147 = vmatpush2.msra.mxu0 0.0
  %3148 = vmatprep.subr.mxu0 0.0
  %3149 = vmatpush2.msra.mxu0 0.0
  %3150 = vmatprep.subr.mxu0 0.0
  %3151 = vmatpush2.msra.mxu0 0.0
  %3152 = vmatprep.mubr.f32.mxu0 0.0
  %3153 = vmatmul.mubr.f32.gmra.mxu0 %v3072
  %v3154 = vpop.f32.mrf.mxu0
  %v3155 = vadd.f32 0.0, %v3154
  %v3156 = vpop.f32.mrf.mxu0
  %3157 = vmatprep.mubr.f32.mxu0 0.0
  %3158 = vmatmul.mubr.f32.gmra.mxu0 %v3075
  %v3159 = vpop.f32.mrf.mxu0
  %v3160 = vadd.f32 0.0, %v3159
  %v3161 = vpop.f32.mrf.mxu0
  %3162 = vmatprep.mubr.f32.mxu0 0.0
  %3163 = vmatmul.mubr.f32.gmra.mxu0 %v3078
  %v3164 = vpop.f32.mrf.mxu0
  %v3165 = vadd.f32 0.0, %v3164
  %v3166 = vpop.f32.mrf.mxu0
  %3167 = vmatprep.mubr.f32.mxu0 0.0
  %3168 = vmatmul.mubr.f32.gmra.mxu0 %v3081
  %v3169 = vpop.f32.mrf.mxu0
  %v3170 = vadd.f32 0.0, %v3169
  %v3171 = vpop.f32.mrf.mxu0
  %3172 = vmatprep.mubr.f32.mxu0 0.0
  %3173 = vmatmul.mubr.f32.gmra.mxu0 %v3084
  %v3174 = vpop.f32.mrf.mxu0
  %v3175 = vadd.f32 0.0, %v3174
  %v3176 = vpop.f32.mrf.mxu0
  %3177 = vdwg.mxu0
  %3178 = vrot.lane.b32.xlu0 %v2459, 112
  %v3179 = vpop.permute.xlu0 %3178
  %3180 = vrot.lane.b32.xlu0 %v2476, 112
  %v3181 = vpop.permute.xlu0 %3180
  %3182 = vrot.lane.b32.xlu0 %v2493, 112
  %v3183 = vpop.permute.xlu0 %3182
  %3184 = vrot.lane.b32.xlu0 %v2510, 112
  %v3185 = vpop.permute.xlu0 %3184
  %3186 = vrot.lane.b32.xlu0 %v2527, 112
  %v3187 = vpop.permute.xlu0 %3186
  %3188 = vrot.lane.b32.xlu0 %v2544, 112
  %v3189 = vpop.permute.xlu0 %3188
  %3190 = vrot.lane.b32.xlu0 %v2551, 112
  %v3191 = vpop.permute.xlu0 %3190
  %v3199 = vsel %vm2108, %v3046, 0
  %v3202 = vsel %vm2108, %v3047, 0
  %v3205 = vsel %vm2108, %v3048, 0
  %v3208 = vsel %vm2108, %v3049, 0
  %v3211 = vsel %vm2108, %v3050, 0
  %v3213 = vsel %vm2350, %v3191, 0
  %3215 = vmatprep.subr.mxu0 0.0
  %3216 = vmatpush1.msra.mxu0 0.0
  %3217 = vmatprep.subr.mxu0 0.0
  %3218 = vmatpush1.msra.mxu0 0.0
  %3219 = vmatprep.subr.mxu0 0.0
  %3220 = vmatpush1.msra.mxu0 0.0
  %3221 = vmatprep.subr.mxu0 0.0
  %3222 = vmatpush1.msra.mxu0 0.0
  %3223 = vmatprep.subr.mxu0 0.0
  %3224 = vmatpush1.msra.mxu0 0.0
  %3225 = vmatprep.subr.mxu0 0.0
  %3226 = vmatpush1.msra.mxu0 0.0
  %3227 = vmatprep.subr.mxu0 0.0
  %3228 = vmatpush1.msra.mxu0 0.0
  %3229 = vmatprep.subr.mxu0 0.0
  %3230 = vmatpush1.msra.mxu0 0.0
  %3231 = vmatprep.subr.mxu0 0.0
  %3232 = vmatpush1.msra.mxu0 0.0
  %3233 = vmatprep.subr.mxu0 0.0
  %3234 = vmatpush1.msra.mxu0 %v3213
  %3235 = vmatprep.subr.mxu0 0.0
  %3236 = vmatpush1.msra.mxu0 %v3189
  %3237 = vmatprep.subr.mxu0 0.0
  %3238 = vmatpush1.msra.mxu0 %v3187
  %3239 = vmatprep.subr.mxu0 0.0
  %3240 = vmatpush1.msra.mxu0 %v3185
  %3241 = vmatprep.subr.mxu0 0.0
  %3242 = vmatpush1.msra.mxu0 %v3183
  %3243 = vmatprep.subr.mxu0 0.0
  %3244 = vmatpush1.msra.mxu0 %v3181
  %3245 = vmatprep.subr.mxu0 0.0
  %3246 = vmatpush1.msra.mxu0 %v3179
  %3247 = vmatprep.subr.mxu0 0.0
  %3248 = vmatpush2.msra.mxu0 0.0
  %3249 = vmatprep.subr.mxu0 0.0
  %3250 = vmatpush2.msra.mxu0 0.0
  %3251 = vmatprep.subr.mxu0 0.0
  %3252 = vmatpush2.msra.mxu0 0.0
  %3253 = vmatprep.subr.mxu0 0.0
  %3254 = vmatpush2.msra.mxu0 0.0
  %3255 = vmatprep.subr.mxu0 0.0
  %3256 = vmatpush2.msra.mxu0 0.0
  %3257 = vmatprep.subr.mxu0 0.0
  %3258 = vmatpush2.msra.mxu0 0.0
  %3259 = vmatprep.subr.mxu0 0.0
  %3260 = vmatpush2.msra.mxu0 0.0
  %3261 = vmatprep.subr.mxu0 0.0
  %3262 = vmatpush2.msra.mxu0 0.0
  %3263 = vmatprep.subr.mxu0 0.0
  %3264 = vmatpush2.msra.mxu0 0.0
  %3265 = vmatprep.subr.mxu0 0.0
  %3266 = vmatpush2.msra.mxu0 0.0
  %3267 = vmatprep.subr.mxu0 0.0
  %3268 = vmatpush2.msra.mxu0 0.0
  %3269 = vmatprep.subr.mxu0 0.0
  %3270 = vmatpush2.msra.mxu0 0.0
  %3271 = vmatprep.subr.mxu0 0.0
  %3272 = vmatpush2.msra.mxu0 0.0
  %3273 = vmatprep.subr.mxu0 0.0
  %3274 = vmatpush2.msra.mxu0 0.0
  %3275 = vmatprep.subr.mxu0 0.0
  %3276 = vmatpush2.msra.mxu0 0.0
  %3277 = vmatprep.subr.mxu0 0.0
  %3278 = vmatpush2.msra.mxu0 0.0
  %3279 = vmatprep.mubr.f32.mxu0 0.0
  %3280 = vmatmul.mubr.f32.gmra.mxu0 %v3199
  %v3281 = vpop.f32.mrf.mxu0
  %v3282 = vadd.f32 0.0, %v3281
  %v3283 = vpop.f32.mrf.mxu0
  %3284 = vmatprep.mubr.f32.mxu0 0.0
  %3285 = vmatmul.mubr.f32.gmra.mxu0 %v3202
  %v3286 = vpop.f32.mrf.mxu0
  %v3287 = vadd.f32 0.0, %v3286
  %v3288 = vpop.f32.mrf.mxu0
  %3289 = vmatprep.mubr.f32.mxu0 0.0
  %3290 = vmatmul.mubr.f32.gmra.mxu0 %v3205
  %v3291 = vpop.f32.mrf.mxu0
  %v3292 = vadd.f32 0.0, %v3291
  %v3293 = vpop.f32.mrf.mxu0
  %3294 = vmatprep.mubr.f32.mxu0 0.0
  %3295 = vmatmul.mubr.f32.gmra.mxu0 %v3208
  %v3296 = vpop.f32.mrf.mxu0
  %v3297 = vadd.f32 0.0, %v3296
  %v3298 = vpop.f32.mrf.mxu0
  %3299 = vmatprep.mubr.f32.mxu0 0.0
  %3300 = vmatmul.mubr.f32.gmra.mxu0 %v3211
  %v3301 = vpop.f32.mrf.mxu0
  %v3302 = vadd.f32 0.0, %v3301
  %v3303 = vpop.f32.mrf.mxu0
  %3304 = vdwg.mxu0
  %3315 = vrot.lane.b32.xlu0 %v3155, 16
  %v3316 = vpop.permute.xlu0 %3315
  %3317 = vrot.lane.b32.xlu0 %v3160, 16
  %v3318 = vpop.permute.xlu0 %3317
  %3319 = vrot.lane.b32.xlu0 %v3165, 16
  %v3320 = vpop.permute.xlu0 %3319
  %3321 = vrot.lane.b32.xlu0 %v3170, 16
  %v3322 = vpop.permute.xlu0 %3321
  %3323 = vrot.lane.b32.xlu0 %v3175, 16
  %v3324 = vpop.permute.xlu0 %3323
  %3325 = vrot.lane.b32.xlu0 %v3282, 16
  %v3326 = vpop.permute.xlu0 %3325
  %3327 = vrot.lane.b32.xlu0 %v3287, 16
  %v3328 = vpop.permute.xlu0 %3327
  %3329 = vrot.lane.b32.xlu0 %v3292, 16
  %v3330 = vpop.permute.xlu0 %3329
  %3331 = vrot.lane.b32.xlu0 %v3297, 16
  %v3332 = vpop.permute.xlu0 %3331
  %3333 = vrot.lane.b32.xlu0 %v3302, 16
  %v3334 = vpop.permute.xlu0 %3333
  %v3345 = vsel %vm1766, %v2420, %v3316
  %v3346 = vsel %vm1766, %v2425, %v3318
  %v3347 = vsel %vm1766, %v2430, %v3320
  %v3348 = vsel %vm1766, %v2435, %v3322
  %v3349 = vsel %vm1766, %v2440, %v3324
  %v3350 = vsel %vm1766, %v2642, %v3326
  %v3351 = vsel %vm1766, %v2647, %v3328
  %v3352 = vsel %vm1766, %v2652, %v3330
  %v3353 = vsel %vm1766, %v2657, %v3332
  %v3354 = vsel %vm1766, %v2662, %v3334
  %v3356 = vlaneseq
  %v3357 = vshrl.u32 %v3356, 7
  %v3358 = vsub.s32 0, %v3357
  %v3359 = vrot.slane %v74, %v3358
  %v3370 = vcombine.high %v3345, %v3345
  %v3371 = vcombine.high %v3346, %v3346
  %v3372 = vcombine.high %v3347, %v3347
  %v3373 = vcombine.high %v3348, %v3348
  %v3374 = vcombine.high %v3350, %v3350
  %v3375 = vcombine.high %v3351, %v3351
  %v3376 = vcombine.high %v3352, %v3352
  %v3377 = vcombine.high %v3353, %v3353
  %v3378 = vcombine.high %v3359, %v3359
  %v3379 = vcombine.low %v3345, %v3370
  %v3380 = vcombine.low %v3346, %v3371
  %v3381 = vcombine.low %v3347, %v3372
  %v3382 = vcombine.low %v3348, %v3373
  %v3383 = vcombine.low %v3349, %v3350
  %v3384 = vcombine.low %v3374, %v3351
  %v3385 = vcombine.low %v3375, %v3352
  %v3386 = vcombine.low %v3376, %v3353
  %v3387 = vcombine.low %v3377, %v3354
  %v3388 = vcombine.low %v3359, %v3378
  %v3389 = vcombine.low %v3359, %v3359
  %v3390 = vcombine.low %v3378, %v3359
  %v3394 = vsel %vm75, %v3379, 0
  %v3396 = vsel %vm75, %v3380, 0
  %v3398 = vsel %vm75, %v3381, 0
  %v3400 = vsel %vm75, %v3382, 0
  %v3402 = vsel %vm75, %v3383, 0
  %v3404 = vsel %vm75, %v3384, 0
  %v3406 = vsel %vm75, %v3385, 0
  %v3408 = vsel %vm75, %v3386, 0
  %v3410 = vsel %vm75, %v3387, 0
  %3412 = vmatprep.subr.mxu0 0.0
  %3413 = vmatpush1.msra.mxu0 0.0
  %3414 = vmatprep.subr.mxu0 0.0
  %3415 = vmatpush1.msra.mxu0 0.0
  %3416 = vmatprep.subr.mxu0 0.0
  %3417 = vmatpush1.msra.mxu0 0.0
  %3418 = vmatprep.subr.mxu0 0.0
  %3419 = vmatpush1.msra.mxu0 0.0
  %3420 = vmatprep.subr.mxu0 0.0
  %3421 = vmatpush1.msra.mxu0 0.0
  %3422 = vmatprep.subr.mxu0 0.0
  %3423 = vmatpush1.msra.mxu0 0.0
  %3424 = vmatprep.subr.mxu0 0.0
  %3425 = vmatpush1.msra.mxu0 0.0
  %3426 = vmatprep.subr.mxu0 0.0
  %3427 = vmatpush1.msra.mxu0 0.0
  %3428 = vmatprep.subr.mxu0 0.0
  %3429 = vmatpush1.msra.mxu0 0.0
  %3430 = vmatprep.subr.mxu0 0.0
  %3431 = vmatpush1.msra.mxu0 0.0
  %3432 = vmatprep.subr.mxu0 0.0
  %3433 = vmatpush1.msra.mxu0 0.0
  %3434 = vmatprep.subr.mxu0 0.0
  %3435 = vmatpush1.msra.mxu0 0.0
  %3436 = vmatprep.subr.mxu0 0.0
  %3437 = vmatpush1.msra.mxu0 %v71
  %3438 = vmatprep.subr.mxu0 0.0
  %3439 = vmatpush1.msra.mxu0 %v70
  %3440 = vmatprep.subr.mxu0 0.0
  %3441 = vmatpush1.msra.mxu0 %v69
  %3442 = vmatprep.subr.mxu0 0.0
  %3443 = vmatpush1.msra.mxu0 %v68
  %3444 = vmatprep.subr.mxu0 0.0
  %3445 = vmatpush2.msra.mxu0 0.0
  %3446 = vmatprep.subr.mxu0 0.0
  %3447 = vmatpush2.msra.mxu0 0.0
  %3448 = vmatprep.subr.mxu0 0.0
  %3449 = vmatpush2.msra.mxu0 0.0
  %3450 = vmatprep.subr.mxu0 0.0
  %3451 = vmatpush2.msra.mxu0 0.0
  %3452 = vmatprep.subr.mxu0 0.0
  %3453 = vmatpush2.msra.mxu0 0.0
  %3454 = vmatprep.subr.mxu0 0.0
  %3455 = vmatpush2.msra.mxu0 0.0
  %3456 = vmatprep.subr.mxu0 0.0
  %3457 = vmatpush2.msra.mxu0 0.0
  %3458 = vmatprep.subr.mxu0 0.0
  %3459 = vmatpush2.msra.mxu0 0.0
  %3460 = vmatprep.subr.mxu0 0.0
  %3461 = vmatpush2.msra.mxu0 0.0
  %3462 = vmatprep.subr.mxu0 0.0
  %3463 = vmatpush2.msra.mxu0 0.0
  %3464 = vmatprep.subr.mxu0 0.0
  %3465 = vmatpush2.msra.mxu0 0.0
  %3466 = vmatprep.subr.mxu0 0.0
  %3467 = vmatpush2.msra.mxu0 0.0
  %3468 = vmatprep.subr.mxu0 0.0
  %3469 = vmatpush2.msra.mxu0 0.0
  %3470 = vmatprep.subr.mxu0 0.0
  %3471 = vmatpush2.msra.mxu0 0.0
  %3472 = vmatprep.subr.mxu0 0.0
  %3473 = vmatpush2.msra.mxu0 0.0
  %3474 = vmatprep.subr.mxu0 0.0
  %3475 = vmatpush2.msra.mxu0 0.0
  %3476 = vmatprep.mubr.f32.mxu0 0.0
  %3477 = vmatmul.mubr.f32.gmra.mxu0 %v3394
  %v3478 = vpop.f32.mrf.mxu0
  %v3479 = vadd.f32 %v3388, %v3478
  %v3480 = vpop.f32.mrf.mxu0
  %3481 = vmatprep.mubr.f32.mxu0 0.0
  %3482 = vmatmul.mubr.f32.gmra.mxu0 %v3396
  %v3483 = vpop.f32.mrf.mxu0
  %v3484 = vadd.f32 %v3388, %v3483
  %v3485 = vpop.f32.mrf.mxu0
  %3486 = vmatprep.mubr.f32.mxu0 0.0
  %3487 = vmatmul.mubr.f32.gmra.mxu0 %v3398
  %v3488 = vpop.f32.mrf.mxu0
  %v3489 = vadd.f32 %v3388, %v3488
  %v3490 = vpop.f32.mrf.mxu0
  %3491 = vmatprep.mubr.f32.mxu0 0.0
  %3492 = vmatmul.mubr.f32.gmra.mxu0 %v3400
  %v3493 = vpop.f32.mrf.mxu0
  %v3494 = vadd.f32 %v3388, %v3493
  %v3495 = vpop.f32.mrf.mxu0
  %3496 = vmatprep.mubr.f32.mxu0 0.0
  %3497 = vmatmul.mubr.f32.gmra.mxu0 %v3402
  %v3498 = vpop.f32.mrf.mxu0
  %v3499 = vadd.f32 %v3389, %v3498
  %v3500 = vpop.f32.mrf.mxu0
  %3501 = vmatprep.mubr.f32.mxu0 0.0
  %3502 = vmatmul.mubr.f32.gmra.mxu0 %v3404
  %v3503 = vpop.f32.mrf.mxu0
  %v3504 = vadd.f32 %v3390, %v3503
  %v3505 = vpop.f32.mrf.mxu0
  %3506 = vmatprep.mubr.f32.mxu0 0.0
  %3507 = vmatmul.mubr.f32.gmra.mxu0 %v3406
  %v3508 = vpop.f32.mrf.mxu0
  %v3509 = vadd.f32 %v3390, %v3508
  %v3510 = vpop.f32.mrf.mxu0
  %3511 = vmatprep.mubr.f32.mxu0 0.0
  %3512 = vmatmul.mubr.f32.gmra.mxu0 %v3408
  %v3513 = vpop.f32.mrf.mxu0
  %v3514 = vadd.f32 %v3390, %v3513
  %v3515 = vpop.f32.mrf.mxu0
  %3516 = vmatprep.mubr.f32.mxu0 0.0
  %3517 = vmatmul.mubr.f32.gmra.mxu0 %v3410
  %v3518 = vpop.f32.mrf.mxu0
  %v3519 = vadd.f32 %v3390, %v3518
  %v3520 = vpop.f32.mrf.mxu0
  %3521 = vdwg.mxu0
  %v3531 = vcombine.high %v3479, %v3479
  %v3532 = vcombine.high %v3484, %v3484
  %v3533 = vcombine.high %v3489, %v3489
  %v3534 = vcombine.high %v3494, %v3494
  %v3535 = vcombine.high %v3499, %v3499
  %v3536 = vcombine.high %v3504, %v3504
  %v3537 = vcombine.high %v3509, %v3509
  %v3538 = vcombine.high %v3514, %v3514
  %v3539 = vcombine.high %v3519, %v3519
  %v3541 = vcombine.low %v3479, %v3531
  %v3542 = vcombine.low %v3484, %v3532
  %v3543 = vcombine.low %v3489, %v3533
  %v3544 = vcombine.low %v3494, %v3534
  %v3545 = vcombine.low %v3535, %v3504
  %v3546 = vcombine.low %v3536, %v3509
  %v3547 = vcombine.low %v3537, %v3514
  %v3548 = vcombine.low %v3538, %v3519
  %3557 = vst.msk [vmem:[%s9] sm:$0xff] %vm75, %v3541
  %3558 = vst.msk [vmem:[%s9 + $0x8] sm:$0xff] %vm75, %v3542
  %3559 = vst.msk [vmem:[%s9 + $0x10] sm:$0xff] %vm75, %v3543
  %3560 = vst.msk [vmem:[%s9 + $0x18] sm:$0xff] %vm75, %v3544
  %vm3561 = vcmask 257024
  %3562 = vst.msk [vmem:[%s9 + $0x20] sm:$0xf] %vm3561, %v3499
  %3563 = vst.msk [vmem:[%s9 + $0x28] sm:$0xff] %vm75, %v3545
  %3564 = vst.msk [vmem:[%s9 + $0x30] sm:$0xff] %vm75, %v3546
  %3565 = vst.msk [vmem:[%s9 + $0x38] sm:$0xff] %vm75, %v3547
  %3566 = vst.msk [vmem:[%s9 + $0x40] sm:$0xff] %vm75, %v3548
  %3567 = vst.msk [vmem:[%s9 + $0x48] sm:$0xf] %vm3561, %v3539
  // Predicated region
  $region38: #{tpu_custom_call.1} parent=0 // pred_check
    _
  $region39: #{tpu_custom_call.1} parent=0 // pred_check_branch
    %3569 = sbr.rel (0) target = $region41
  $region40: #{tpu_custom_call.1} parent=0 // pred_region
    _
  $region41: #{tpu_custom_call.1} parent=0 // pred_fallthru
    _
  // Predicated region
  $region42: #{tpu_custom_call.1} parent=0 // pred_check
    _
  $region43: #{tpu_custom_call.1} parent=0 // pred_check_branch
    %3571 = sbr.rel (0) target = $region45
  $region44: #{tpu_custom_call.1} parent=0 // pred_region
    _
  $region45: #{tpu_custom_call.1} parent=0 // pred_fallthru
    _

</llo_original>
